<compile_context>
chip_gen: v5e
topology: v5e:2x2
jax: 0.10.0
libtpu: 0.0.40
codegen_flags: <defaults>
</compile_context>

<pallas_src>
import functools

import jax
import jax.numpy as jnp
from jax.experimental import pallas as pl
from jax.experimental.pallas import tpu as pltpu


# ---------------------------------------------------------------------------
# Helpers
# ---------------------------------------------------------------------------
def _round_up(x, m):
    return ((x + m - 1) // m) * m


_MAX_VMEM_LIMIT = 32 * 1024 * 1024      # safe scoped-VMEM cap on v5e/v6e/v7x
_PATCH_BLOCK_BYTES = 8 * 1024 * 1024    # cap for one (tm, K) bf16 patch block


# ---------------------------------------------------------------------------
# Kernel 1: single-shot MXU matmul (full-K block) + optional fused LeakyReLU
# ---------------------------------------------------------------------------
def _matmul_act_kernel(p_ref, w_ref, o_ref, *, apply_act, slope):
    acc = jnp.dot(p_ref[...], w_ref[...], preferred_element_type=jnp.float32)
    if apply_act:
        acc = jnp.where(acc > 0, acc, slope * acc)    # LeakyReLU(0.2)
    o_ref[...] = acc.astype(o_ref.dtype)


# ---------------------------------------------------------------------------
# Kernel 2: matmul + per-tile channel sum / sum-of-squares (BatchNorm layers)
# NOTE: only sublane row 0 of s_ref / ss_ref carries data; the 8-row broadcast
# keeps the side-output store tile-aligned.
# ---------------------------------------------------------------------------
def _matmul_stats_kernel(p_ref, w_ref, o_ref, s_ref, ss_ref):
    acc = jnp.dot(p_ref[...], w_ref[...], preferred_element_type=jnp.float32)
    o_ref[...] = acc
    s = jnp.sum(acc, axis=0, keepdims=True)            # (1, tn)
    ss = jnp.sum(acc * acc, axis=0, keepdims=True)     # (1, tn)
    s_ref[...] = jnp.broadcast_to(s, s_ref.shape)      # (1, 8, tn)
    ss_ref[...] = jnp.broadcast_to(ss, ss_ref.shape)


def conv_matmul(patches, w_bf16, *, with_stats, apply_act=False, slope=0.2,
                out_dtype=jnp.float32, tm_target=1024, tn_target=256):
    """patches: (M, K) (any float dtype), w_bf16: (K, C_pad) bf16, C_pad%128==0.

    Returns (y_pad (M_pad, C_pad), stats) where stats is
    (sums (gm, 8, C_pad) f32, sumsq (gm, 8, C_pad) f32) if with_stats else None.
    BN-layer outputs stay f32; other layers use `out_dtype`.
    """
    M, K = patches.shape
    Kw, C_pad = w_bf16.shape
    assert Kw == K and C_pad % 128 == 0

    # Full-K block; pick tm (mult of 16, bf16 sublane packing), cap by VMEM.
    tm = min(tm_target, _round_up(M, 16))
    while tm > 16 and tm * K * 2 > _PATCH_BLOCK_BYTES:
        tm //= 2
    tm = max(16, (tm // 16) * 16)
    M_pad = _round_up(M, tm)

    tn = tn_target if C_pad % tn_target == 0 else 128

    p = patches.astype(jnp.bfloat16)
    if M_pad > M:
        p = jnp.pad(p, ((0, M_pad - M), (0, 0)))

    gm, gn = M_pad // tm, C_pad // tn
    out_bytes = 4 if with_stats else jnp.dtype(out_dtype).itemsize

    # Per-call VMEM budget (double buffered) with headroom, capped for v7x.
    need = 2 * (tm * K * 2 + K * tn * 2 + tm * tn * out_bytes)
    if with_stats:
        need += 4 * (8 * tn * 4)
    vmem_limit = int(min(need + (6 << 20), _MAX_VMEM_LIMIT))

    in_specs = [
        pl.BlockSpec((tm, K), lambda i, j: (i, 0)),
        pl.BlockSpec((K, tn), lambda i, j: (0, j)),
    ]
    out_spec_y = pl.BlockSpec((tm, tn), lambda i, j: (i, j))

    cparams = pltpu.CompilerParams(
        dimension_semantics=("parallel", "parallel"),
        vmem_limit_bytes=vmem_limit)

    bytes_accessed = M_pad * K * 2 + K * C_pad * 2 + M_pad * C_pad * out_bytes
    if with_stats:
        bytes_accessed += 2 * gm * 8 * C_pad * 4
    cost = pl.CostEstimate(flops=2 * M_pad * K * C_pad, transcendentals=0,
                           bytes_accessed=int(bytes_accessed))

    if with_stats:
        out_shape = (
            jax.ShapeDtypeStruct((M_pad, C_pad), jnp.float32),
            jax.ShapeDtypeStruct((gm, 8, C_pad), jnp.float32),
            jax.ShapeDtypeStruct((gm, 8, C_pad), jnp.float32),
        )
        out_specs = (
            out_spec_y,
            pl.BlockSpec((1, 8, tn), lambda i, j: (i, 0, j)),
            pl.BlockSpec((1, 8, tn), lambda i, j: (i, 0, j)),
        )
        kernel = _matmul_stats_kernel
    else:
        out_shape = jax.ShapeDtypeStruct((M_pad, C_pad), out_dtype)
        out_specs = out_spec_y
        kernel = functools.partial(_matmul_act_kernel, apply_act=apply_act,
                                   slope=slope)

    res = pl.pallas_call(
        kernel,
        out_shape=out_shape,
        grid_spec=pltpu.PrefetchScalarGridSpec(
            num_scalar_prefetch=0,
            grid=(gm, gn),
            in_specs=in_specs,
            out_specs=out_specs),
        compiler_params=cparams,
        cost_estimate=cost,
    )(p, w_bf16)

    if with_stats:
        y_pad, sums, sumsq = res
        return y_pad, (sums, sumsq)
    return res, None


# ---------------------------------------------------------------------------
# Kernel 3: fused BatchNorm-affine + LeakyReLU, bf16 output (memory-bound)
# ---------------------------------------------------------------------------
def _affine_act_kernel(y_ref, s_ref, b_ref, o_ref, *, slope):
    y = y_ref[...] * s_ref[...] + b_ref[...]
    o_ref[...] = jnp.where(y > 0, y, slope * y).astype(o_ref.dtype)


def bn_leaky(y_pad, scale, shift, *, slope=0.2, tm_target=2048):
    """y_pad: (M_pad, C_pad) f32; scale/shift: (1, C_pad) f32 -> bf16 output."""
    M_pad, C_pad = y_pad.shape
    if M_pad <= tm_target:
        tm = M_pad
    else:
        tm = tm_target
        while M_pad % tm:
            tm //= 2
        tm = max(tm, 16)
    grid = (M_pad // tm,)

    need = 2 * (tm * C_pad * 4 + tm * C_pad * 2) + 4 * (C_pad * 4)
    vmem_limit = int(min(need + (6 << 20), _MAX_VMEM_LIMIT))

    return pl.pallas_call(
        functools.partial(_affine_act_kernel, slope=slope),
        out_shape=jax.ShapeDtypeStruct((M_pad, C_pad), jnp.bfloat16),
        grid_spec=pltpu.PrefetchScalarGridSpec(
            num_scalar_prefetch=0,
            grid=grid,
            in_specs=[
                pl.BlockSpec((tm, C_pad), lambda i: (i, 0)),
                pl.BlockSpec((1, C_pad), lambda i: (0, 0)),
                pl.BlockSpec((1, C_pad), lambda i: (0, 0)),
            ],
            out_specs=pl.BlockSpec((tm, C_pad), lambda i: (i, 0))),
        compiler_params=pltpu.CompilerParams(
            dimension_semantics=("parallel",),
            vmem_limit_bytes=vmem_limit),
    )(y_pad, scale, shift)


# ---------------------------------------------------------------------------
# Glue: NHWC im2col (dtype-preserving) + weight / param handling
# ---------------------------------------------------------------------------
def im2col_nhwc(x, kh, kw, stride, pad):
    """x: (N, H, W, C) -> patches (N*Ho*Wo, kh*kw*C) in (kh, kw, C) order."""
    N, H, W, C = x.shape
    xp = jnp.pad(x, ((0, 0), (pad, pad), (pad, pad), (0, 0)))
    Ho = (H + 2 * pad - kh) // stride + 1
    Wo = (W + 2 * pad - kw) // stride + 1
    cols = []
    for i in range(kh):
        for j in range(kw):
            cols.append(xp[:, i:i + Ho * stride:stride,
                               j:j + Wo * stride:stride, :])
    p = jnp.stack(cols, axis=3)                        # (N, Ho, Wo, kh*kw, C)
    return p.reshape(N * Ho * Wo, kh * kw * C), Ho, Wo


def _flatten_pad_bf16(w):
    # PyTorch (C_out, C_in, kh, kw) -> (kh*kw*C_in, C_out_pad) bf16, matching
    # the im2col patch ordering; C_out padded to 128 for lane-dense stores.
    c_out = w.shape[0]
    wm = jnp.transpose(w, (2, 3, 1, 0)).reshape(-1, c_out)
    c_pad = _round_up(c_out, 128)
    if c_pad > c_out:
        wm = jnp.pad(wm, ((0, 0), (0, c_pad - c_out)))
    return wm.astype(jnp.bfloat16)


def make_params(key, nc=3, ndf=64):
    """DCGAN-style init: conv weights ~ N(0, 0.02), gamma ~ N(1, 0.02)."""
    def conv_w(k, c_out, c_in, kh, kw):
        return 0.02 * jax.random.normal(k, (c_out, c_in, kh, kw), jnp.float32)

    keys = jax.random.split(key, 9)
    return {
        "w1": conv_w(keys[0], ndf,     nc,      4, 4),
        "w2": conv_w(keys[1], ndf * 2, ndf,     4, 4),
        "w3": conv_w(keys[2], ndf * 4, ndf * 2, 4, 4),
        "w4": conv_w(keys[3], ndf * 8, ndf * 4, 4, 4),
        "w5": conv_w(keys[4], 1,       ndf * 8, 2, 2),
        "g2": 1.0 + 0.02 * jax.random.normal(keys[5], (ndf * 2,), jnp.float32),
        "g3": 1.0 + 0.02 * jax.random.normal(keys[6], (ndf * 4,), jnp.float32),
        "g4": 1.0 + 0.02 * jax.random.normal(keys[7], (ndf * 8,), jnp.float32),
        "b2": jnp.zeros((ndf * 2,), jnp.float32),
        "b3": jnp.zeros((ndf * 4,), jnp.float32),
        "b4": jnp.zeros((ndf * 8,), jnp.float32),
    }


# ---------------------------------------------------------------------------
# Forward pass (matches Discriminator.forward: raw final conv output, no
# Sigmoid, BatchNorm in training mode, output.view(-1,1).squeeze(1))
# ---------------------------------------------------------------------------
def discriminator_forward(x_nchw, params, eps=1e-5, slope=0.2):
    """x_nchw: (N, 3, 32, 32) f32 -> (N,) f32."""
    x = jnp.transpose(x_nchw, (0, 2, 3, 1)).astype(jnp.bfloat16)  # NHWC bf16
    N = x.shape[0]

    # Flatten / pad / cast all conv weights once, outside the per-layer loop.
    w_flat = {k: _flatten_pad_bf16(params[k])
              for k in ("w1", "w2", "w3", "w4", "w5")}

    # Layer 1: Conv(nc -> ndf, 4, 2, 1) + LeakyReLU (no BN), bf16 epilogue
    c1 = params["w1"].shape[0]
    p, Ho, Wo = im2col_nhwc(x, 4, 4, 2, 1)
    M = N * Ho * Wo
    y, _ = conv_matmul(p, w_flat["w1"], with_stats=False, apply_act=True,
                       slope=slope, out_dtype=jnp.bfloat16)
    x = y[:M, :c1].reshape(N, Ho, Wo, c1)

    # Layers 2-4: Conv + BatchNorm (batch stats over N,H,W) + LeakyReLU
    for wi, gi, bi in (("w2", "g2", "b2"), ("w3", "g3", "b3"),
                       ("w4", "g4", "b4")):
        c_out = params[wi].shape[0]
        p, Ho, Wo = im2col_nhwc(x, 4, 4, 2, 1)
        M = N * Ho * Wo

        y_pad, (sums, sumsq) = conv_matmul(p, w_flat[wi], with_stats=True)
        C_pad = y_pad.shape[1]

        # Finalize global channel stats (zero-padded rows/cols contribute 0).
        sum_c = jnp.sum(sums[:, 0, :], axis=0)       # (C_pad,)
        sumsq_c = jnp.sum(sumsq[:, 0, :], axis=0)    # (C_pad,)
        mean = sum_c / M
        var = jnp.maximum(sumsq_c / M - mean * mean, 0.0)   # biased variance
        inv = jax.lax.rsqrt(var + eps)
        gamma = jnp.pad(params[gi], (0, C_pad - c_out))
        beta = jnp.pad(params[bi], (0, C_pad - c_out))
        scale = (gamma * inv).reshape(1, C_pad)
        shift = (beta - mean * gamma * inv).reshape(1, C_pad)

        y_bf16 = bn_leaky(y_pad, scale, shift, slope=slope)
        x = y_bf16[:M, :c_out].reshape(N, Ho, Wo, c_out)

    # Layer 5: Conv(ndf*8 -> 1, 2, 2, 0); single grid step, C_out padded to
    # 128 lanes in the pre-flattened weight, valid column sliced here.
    p, Ho, Wo = im2col_nhwc(x, 2, 2, 2, 0)
    M = N * Ho * Wo
    y, _ = conv_matmul(p, w_flat["w5"], with_stats=False, apply_act=False,
                       out_dtype=jnp.float32)
    return y[:M, 0]                                  # view(-1,1).squeeze(1)


if __name__ == "__main__":
    key = jax.random.PRNGKey(0)
    k_param, k_in = jax.random.split(key)

    # 32x32 input is required for the final 2x2/stride-2 conv to reach 1x1;
    # keep batch and ndf small for the demo.
    batch, nc, ndf = 2, 3, 16
    params = make_params(k_param, nc=nc, ndf=ndf)
    x = jax.random.normal(k_in, (batch, nc, 32, 32), jnp.float32)

    fwd = jax.jit(discriminator_forward)
    out = jax.block_until_ready(fwd(x, params))
    assert out.shape == (batch,), out.shape
    assert bool(jnp.all(jnp.isfinite(out)))
    print("KERNEL_OK")
</pallas_src>

<mosaic_0001>
module attributes {stable_mosaic.version = 11 : i64} {
  func.func @_matmul_act_kernel(%arg0: i32, %arg1: i32, %arg2: memref<512x48xbf16, #tpu.memory_space<vmem>>, %arg3: memref<48x128xbf16, #tpu.memory_space<vmem>>, %arg4: memref<512x128xbf16, #tpu.memory_space<vmem>>) attributes {dimension_semantics = [#tpu.dimension_semantics<parallel>, #tpu.dimension_semantics<parallel>], iteration_bounds = array<i64: 1, 1>, scalar_prefetch = 0 : i64, scratch_operands = 0 : i64, tpu.core_type = #tpu.core_type<tc>, window_params = [{transform_indices = @transform_0, window_bounds = array<i64: 512, 48>}, {transform_indices = @transform_1, window_bounds = array<i64: 48, 128>}, {transform_indices = @transform_2, window_bounds = array<i64: 512, 128>}]} {
    %c0 = arith.constant 0 : index
    %c0_0 = arith.constant 0 : index
    %0 = vector.load %arg2[%c0, %c0_0] : memref<512x48xbf16, #tpu.memory_space<vmem>>, vector<512x48xbf16>
    %c0_1 = arith.constant 0 : index
    %c0_2 = arith.constant 0 : index
    %1 = vector.load %arg3[%c0_1, %c0_2] : memref<48x128xbf16, #tpu.memory_space<vmem>>, vector<48x128xbf16>
    %cst = arith.constant dense<0.000000e+00> : vector<512x128xf32>
    %2 = tpu.matmul %0, %1, %cst {dimension_numbers = #tpu.dot_dimension_numbers<[1], [0], [0], [1], [0, 0, 1, 1], [], []>} : vector<512x48xbf16>, vector<48x128xbf16>, vector<512x128xf32> -> vector<512x128xf32>
    %cst_3 = arith.constant 0.000000e+00 : f32
    %3 = vector.broadcast %cst_3 : f32 to vector<512x128xf32>
    %4 = arith.cmpf ogt, %2, %3 : vector<512x128xf32>
    %cst_4 = arith.constant 2.000000e-01 : f32
    %5 = vector.broadcast %cst_4 : f32 to vector<512x128xf32>
    %6 = arith.mulf %5, %2 : vector<512x128xf32>
    %7 = arith.select %4, %2, %6 : vector<512x128xi1>, vector<512x128xf32>
    %8 = arith.truncf %7 : vector<512x128xf32> to vector<512x128xbf16>
    %c0_5 = arith.constant 0 : index
    %c0_6 = arith.constant 0 : index
    %9 = vector.load %arg4[%c0_5, %c0_6] : memref<512x128xbf16, #tpu.memory_space<vmem>>, vector<512x128xbf16>
    tpu.vector_store %arg4[%c0_5, %c0_6], %8 {strides = array<i32>} : memref<512x128xbf16, #tpu.memory_space<vmem>>, vector<512x128xbf16>,
    return
  }
  func.func @transform_0(%arg0: i32, %arg1: i32) -> (i32, i32) {
    %c0_i32 = arith.constant 0 : i32
    %c0_i32_0 = arith.constant 0 : i32
    return %arg0, %c0_i32 : i32, i32
  }
  func.func @transform_1(%arg0: i32, %arg1: i32) -> (i32, i32) {
    %c0_i32 = arith.constant 0 : i32
    %c0_i32_0 = arith.constant 0 : i32
    return %c0_i32, %arg1 : i32, i32
  }
  func.func @transform_2(%arg0: i32, %arg1: i32) -> (i32, i32) {
    %c0_i32 = arith.constant 0 : i32
    return %arg0, %arg1 : i32, i32
  }
}

module attributes {stable_mosaic.version = 11 : i64} {
  func.func @_matmul_stats_kernel(%arg0: i32, %arg1: i32, %arg2: memref<128x256xbf16, #tpu.memory_space<vmem>>, %arg3: memref<256x128xbf16, #tpu.memory_space<vmem>>, %arg4: memref<128x128xf32, #tpu.memory_space<vmem>>, %arg5: memref<1x8x128xf32, #tpu.memory_space<vmem>>, %arg6: memref<1x8x128xf32, #tpu.memory_space<vmem>>) attributes {dimension_semantics = [#tpu.dimension_semantics<parallel>, #tpu.dimension_semantics<parallel>], iteration_bounds = array<i64: 1, 1>, scalar_prefetch = 0 : i64, scratch_operands = 0 : i64, tpu.core_type = #tpu.core_type<tc>, window_params = [{transform_indices = @transform_0, window_bounds = array<i64: 128, 256>}, {transform_indices = @transform_1, window_bounds = array<i64: 256, 128>}, {transform_indices = @transform_2, window_bounds = array<i64: 128, 128>}, {transform_indices = @transform_3, window_bounds = array<i64: 1, 8, 128>}, {transform_indices = @transform_4, window_bounds = array<i64: 1, 8, 128>}]} {
    %c0 = arith.constant 0 : index
    %c0_0 = arith.constant 0 : index
    %0 = vector.load %arg2[%c0, %c0_0] : memref<128x256xbf16, #tpu.memory_space<vmem>>, vector<128x256xbf16>
    %c0_1 = arith.constant 0 : index
    %c0_2 = arith.constant 0 : index
    %1 = vector.load %arg3[%c0_1, %c0_2] : memref<256x128xbf16, #tpu.memory_space<vmem>>, vector<256x128xbf16>
    %cst = arith.constant dense<0.000000e+00> : vector<128x128xf32>
    %2 = tpu.matmul %0, %1, %cst {dimension_numbers = #tpu.dot_dimension_numbers<[1], [0], [0], [1], [0, 0, 1, 1], [], []>} : vector<128x256xbf16>, vector<256x128xbf16>, vector<128x128xf32> -> vector<128x128xf32>
    %c0_3 = arith.constant 0 : index
    %c0_4 = arith.constant 0 : index
    %3 = vector.load %arg4[%c0_3, %c0_4] : memref<128x128xf32, #tpu.memory_space<vmem>>, vector<128x128xf32>
    tpu.vector_store %arg4[%c0_3, %c0_4], %2 {strides = array<i32>} : memref<128x128xf32, #tpu.memory_space<vmem>>, vector<128x128xf32>,
    %cst_5 = arith.constant dense<0.000000e+00> : vector<128xf32>
    %4 = vector.multi_reduction <add>, %2, %cst_5 [0] : vector<128x128xf32> to vector<128xf32>
    %5 = vector.shape_cast %4 : vector<128xf32> to vector<1x128xf32>
    %6 = arith.mulf %2, %2 : vector<128x128xf32>
    %cst_6 = arith.constant dense<0.000000e+00> : vector<128xf32>
    %7 = vector.multi_reduction <add>, %6, %cst_6 [0] : vector<128x128xf32> to vector<128xf32>
    %8 = vector.shape_cast %7 : vector<128xf32> to vector<1x128xf32>
    %9 = vector.shape_cast %5 : vector<1x128xf32> to vector<1x1x128xf32>
    %10 = vector.broadcast %9 : vector<1x1x128xf32> to vector<1x8x128xf32>
    %c0_7 = arith.constant 0 : index
    %c0_8 = arith.constant 0 : index
    %c0_9 = arith.constant 0 : index
    %11 = vector.load %arg5[%c0_7, %c0_8, %c0_9] : memref<1x8x128xf32, #tpu.memory_space<vmem>>, vector<1x8x128xf32>
    tpu.vector_store %arg5[%c0_7, %c0_8, %c0_9], %10 {strides = array<i32>} : memref<1x8x128xf32, #tpu.memory_space<vmem>>, vector<1x8x128xf32>,
    %12 = vector.shape_cast %8 : vector<1x128xf32> to vector<1x1x128xf32>
    %13 = vector.broadcast %12 : vector<1x1x128xf32> to vector<1x8x128xf32>
    %c0_10 = arith.constant 0 : index
    %c0_11 = arith.constant 0 : index
    %c0_12 = arith.constant 0 : index
    %14 = vector.load %arg6[%c0_10, %c0_11, %c0_12] : memref<1x8x128xf32, #tpu.memory_space<vmem>>, vector<1x8x128xf32>
    tpu.vector_store %arg6[%c0_10, %c0_11, %c0_12], %13 {strides = array<i32>} : memref<1x8x128xf32, #tpu.memory_space<vmem>>, vector<1x8x128xf32>,
    return
  }
  func.func @transform_0(%arg0: i32, %arg1: i32) -> (i32, i32) {
    %c0_i32 = arith.constant 0 : i32
    %c0_i32_0 = arith.constant 0 : i32
    return %arg0, %c0_i32 : i32, i32
  }
  func.func @transform_1(%arg0: i32, %arg1: i32) -> (i32, i32) {
    %c0_i32 = arith.constant 0 : i32
    %c0_i32_0 = arith.constant 0 : i32
    return %c0_i32, %arg1 : i32, i32
  }
  func.func @transform_2(%arg0: i32, %arg1: i32) -> (i32, i32) {
    %c0_i32 = arith.constant 0 : i32
    return %arg0, %arg1 : i32, i32
  }
  func.func @transform_3(%arg0: i32, %arg1: i32) -> (i32, i32, i32) {
    %c0_i32 = arith.constant 0 : i32
    %c0_i32_0 = arith.constant 0 : i32
    return %arg0, %c0_i32, %arg1 : i32, i32, i32
  }
  func.func @transform_4(%arg0: i32, %arg1: i32) -> (i32, i32, i32) {
    %c0_i32 = arith.constant 0 : i32
    %c0_i32_0 = arith.constant 0 : i32
    return %arg0, %c0_i32, %arg1 : i32, i32, i32
  }
}

module attributes {stable_mosaic.version = 11 : i64} {
  func.func @_affine_act_kernel(%arg0: i32, %arg1: memref<128x128xf32, #tpu.memory_space<vmem>>, %arg2: memref<1x128xf32, #tpu.memory_space<vmem>>, %arg3: memref<1x128xf32, #tpu.memory_space<vmem>>, %arg4: memref<128x128xbf16, #tpu.memory_space<vmem>>) attributes {dimension_semantics = [#tpu.dimension_semantics<parallel>], iteration_bounds = array<i64: 1>, scalar_prefetch = 0 : i64, scratch_operands = 0 : i64, tpu.core_type = #tpu.core_type<tc>, window_params = [{transform_indices = @transform_0, window_bounds = array<i64: 128, 128>}, {pipeline_mode = #tpu.pipeline_mode<synchronous>, transform_indices = @transform_1, window_bounds = array<i64: 1, 128>}, {pipeline_mode = #tpu.pipeline_mode<synchronous>, transform_indices = @transform_2, window_bounds = array<i64: 1, 128>}, {transform_indices = @transform_3, window_bounds = array<i64: 128, 128>}]} {
    %c0 = arith.constant 0 : index
    %c0_0 = arith.constant 0 : index
    %0 = vector.load %arg1[%c0, %c0_0] : memref<128x128xf32, #tpu.memory_space<vmem>>, vector<128x128xf32>
    %c0_1 = arith.constant 0 : index
    %c0_2 = arith.constant 0 : index
    %1 = vector.load %arg2[%c0_1, %c0_2] : memref<1x128xf32, #tpu.memory_space<vmem>>, vector<1x128xf32>
    %2 = vector.broadcast %1 : vector<1x128xf32> to vector<128x128xf32>
    %3 = arith.mulf %0, %2 : vector<128x128xf32>
    %c0_3 = arith.constant 0 : index
    %c0_4 = arith.constant 0 : index
    %4 = vector.load %arg3[%c0_3, %c0_4] : memref<1x128xf32, #tpu.memory_space<vmem>>, vector<1x128xf32>
    %5 = vector.broadcast %4 : vector<1x128xf32> to vector<128x128xf32>
    %6 = arith.addf %3, %5 : vector<128x128xf32>
    %cst = arith.constant 0.000000e+00 : f32
    %7 = vector.broadcast %cst : f32 to vector<128x128xf32>
    %8 = arith.cmpf ogt, %6, %7 : vector<128x128xf32>
    %cst_5 = arith.constant 2.000000e-01 : f32
    %9 = vector.broadcast %cst_5 : f32 to vector<128x128xf32>
    %10 = arith.mulf %9, %6 : vector<128x128xf32>
    %11 = arith.select %8, %6, %10 : vector<128x128xi1>, vector<128x128xf32>
    %12 = arith.truncf %11 : vector<128x128xf32> to vector<128x128xbf16>
    %c0_6 = arith.constant 0 : index
    %c0_7 = arith.constant 0 : index
    %13 = vector.load %arg4[%c0_6, %c0_7] : memref<128x128xbf16, #tpu.memory_space<vmem>>, vector<128x128xbf16>
    tpu.vector_store %arg4[%c0_6, %c0_7], %12 {strides = array<i32>} : memref<128x128xbf16, #tpu.memory_space<vmem>>, vector<128x128xbf16>,
    return
  }
  func.func @transform_0(%arg0: i32) -> (i32, i32) {
    %c0_i32 = arith.constant 0 : i32
    %c0_i32_0 = arith.constant 0 : i32
    return %arg0, %c0_i32 : i32, i32
  }
  func.func @transform_1(%arg0: i32) -> (i32, i32) {
    %c0_i32 = arith.constant 0 : i32
    %c0_i32_0 = arith.constant 0 : i32
    %c0_i32_1 = arith.constant 0 : i32
    return %c0_i32, %c0_i32_0 : i32, i32
  }
  func.func @transform_2(%arg0: i32) -> (i32, i32) {
    %c0_i32 = arith.constant 0 : i32
    %c0_i32_0 = arith.constant 0 : i32
    %c0_i32_1 = arith.constant 0 : i32
    return %c0_i32, %c0_i32_0 : i32, i32
  }
  func.func @transform_3(%arg0: i32) -> (i32, i32) {
    %c0_i32 = arith.constant 0 : i32
    %c0_i32_0 = arith.constant 0 : i32
    return %arg0, %c0_i32 : i32, i32
  }
}

module attributes {stable_mosaic.version = 11 : i64} {
  func.func @_matmul_stats_kernel(%arg0: i32, %arg1: i32, %arg2: memref<32x512xbf16, #tpu.memory_space<vmem>>, %arg3: memref<512x128xbf16, #tpu.memory_space<vmem>>, %arg4: memref<32x128xf32, #tpu.memory_space<vmem>>, %arg5: memref<1x8x128xf32, #tpu.memory_space<vmem>>, %arg6: memref<1x8x128xf32, #tpu.memory_space<vmem>>) attributes {dimension_semantics = [#tpu.dimension_semantics<parallel>, #tpu.dimension_semantics<parallel>], iteration_bounds = array<i64: 1, 1>, scalar_prefetch = 0 : i64, scratch_operands = 0 : i64, tpu.core_type = #tpu.core_type<tc>, window_params = [{transform_indices = @transform_0, window_bounds = array<i64: 32, 512>}, {transform_indices = @transform_1, window_bounds = array<i64: 512, 128>}, {transform_indices = @transform_2, window_bounds = array<i64: 32, 128>}, {transform_indices = @transform_3, window_bounds = array<i64: 1, 8, 128>}, {transform_indices = @transform_4, window_bounds = array<i64: 1, 8, 128>}]} {
    %c0 = arith.constant 0 : index
    %c0_0 = arith.constant 0 : index
    %0 = vector.load %arg2[%c0, %c0_0] : memref<32x512xbf16, #tpu.memory_space<vmem>>, vector<32x512xbf16>
    %c0_1 = arith.constant 0 : index
    %c0_2 = arith.constant 0 : index
    %1 = vector.load %arg3[%c0_1, %c0_2] : memref<512x128xbf16, #tpu.memory_space<vmem>>, vector<512x128xbf16>
    %cst = arith.constant dense<0.000000e+00> : vector<32x128xf32>
    %2 = tpu.matmul %0, %1, %cst {dimension_numbers = #tpu.dot_dimension_numbers<[1], [0], [0], [1], [0, 0, 1, 1], [], []>} : vector<32x512xbf16>, vector<512x128xbf16>, vector<32x128xf32> -> vector<32x128xf32>
    %c0_3 = arith.constant 0 : index
    %c0_4 = arith.constant 0 : index
    %3 = vector.load %arg4[%c0_3, %c0_4] : memref<32x128xf32, #tpu.memory_space<vmem>>, vector<32x128xf32>
    tpu.vector_store %arg4[%c0_3, %c0_4], %2 {strides = array<i32>} : memref<32x128xf32, #tpu.memory_space<vmem>>, vector<32x128xf32>,
    %cst_5 = arith.constant dense<0.000000e+00> : vector<128xf32>
    %4 = vector.multi_reduction <add>, %2, %cst_5 [0] : vector<32x128xf32> to vector<128xf32>
    %5 = vector.shape_cast %4 : vector<128xf32> to vector<1x128xf32>
    %6 = arith.mulf %2, %2 : vector<32x128xf32>
    %cst_6 = arith.constant dense<0.000000e+00> : vector<128xf32>
    %7 = vector.multi_reduction <add>, %6, %cst_6 [0] : vector<32x128xf32> to vector<128xf32>
    %8 = vector.shape_cast %7 : vector<128xf32> to vector<1x128xf32>
    %9 = vector.shape_cast %5 : vector<1x128xf32> to vector<1x1x128xf32>
    %10 = vector.broadcast %9 : vector<1x1x128xf32> to vector<1x8x128xf32>
    %c0_7 = arith.constant 0 : index
    %c0_8 = arith.constant 0 : index
    %c0_9 = arith.constant 0 : index
    %11 = vector.load %arg5[%c0_7, %c0_8, %c0_9] : memref<1x8x128xf32, #tpu.memory_space<vmem>>, vector<1x8x128xf32>
    tpu.vector_store %arg5[%c0_7, %c0_8, %c0_9], %10 {strides = array<i32>} : memref<1x8x128xf32, #tpu.memory_space<vmem>>, vector<1x8x128xf32>,
    %12 = vector.shape_cast %8 : vector<1x128xf32> to vector<1x1x128xf32>
    %13 = vector.broadcast %12 : vector<1x1x128xf32> to vector<1x8x128xf32>
    %c0_10 = arith.constant 0 : index
    %c0_11 = arith.constant 0 : index
    %c0_12 = arith.constant 0 : index
    %14 = vector.load %arg6[%c0_10, %c0_11, %c0_12] : memref<1x8x128xf32, #tpu.memory_space<vmem>>, vector<1x8x128xf32>
    tpu.vector_store %arg6[%c0_10, %c0_11, %c0_12], %13 {strides = array<i32>} : memref<1x8x128xf32, #tpu.memory_space<vmem>>, vector<1x8x128xf32>,
    return
  }
  func.func @transform_0(%arg0: i32, %arg1: i32) -> (i32, i32) {
    %c0_i32 = arith.constant 0 : i32
    %c0_i32_0 = arith.constant 0 : i32
    return %arg0, %c0_i32 : i32, i32
  }
  func.func @transform_1(%arg0: i32, %arg1: i32) -> (i32, i32) {
    %c0_i32 = arith.constant 0 : i32
    %c0_i32_0 = arith.constant 0 : i32
    return %c0_i32, %arg1 : i32, i32
  }
  func.func @transform_2(%arg0: i32, %arg1: i32) -> (i32, i32) {
    %c0_i32 = arith.constant 0 : i32
    return %arg0, %arg1 : i32, i32
  }
  func.func @transform_3(%arg0: i32, %arg1: i32) -> (i32, i32, i32) {
    %c0_i32 = arith.constant 0 : i32
    %c0_i32_0 = arith.constant 0 : i32
    return %arg0, %c0_i32, %arg1 : i32, i32, i32
  }
  func.func @transform_4(%arg0: i32, %arg1: i32) -> (i32, i32, i32) {
    %c0_i32 = arith.constant 0 : i32
    %c0_i32_0 = arith.constant 0 : i32
    return %arg0, %c0_i32, %arg1 : i32, i32, i32
  }
}

module attributes {stable_mosaic.version = 11 : i64} {
  func.func @_affine_act_kernel(%arg0: i32, %arg1: memref<32x128xf32, #tpu.memory_space<vmem>>, %arg2: memref<1x128xf32, #tpu.memory_space<vmem>>, %arg3: memref<1x128xf32, #tpu.memory_space<vmem>>, %arg4: memref<32x128xbf16, #tpu.memory_space<vmem>>) attributes {dimension_semantics = [#tpu.dimension_semantics<parallel>], iteration_bounds = array<i64: 1>, scalar_prefetch = 0 : i64, scratch_operands = 0 : i64, tpu.core_type = #tpu.core_type<tc>, window_params = [{transform_indices = @transform_0, window_bounds = array<i64: 32, 128>}, {pipeline_mode = #tpu.pipeline_mode<synchronous>, transform_indices = @transform_1, window_bounds = array<i64: 1, 128>}, {pipeline_mode = #tpu.pipeline_mode<synchronous>, transform_indices = @transform_2, window_bounds = array<i64: 1, 128>}, {transform_indices = @transform_3, window_bounds = array<i64: 32, 128>}]} {
    %c0 = arith.constant 0 : index
    %c0_0 = arith.constant 0 : index
    %0 = vector.load %arg1[%c0, %c0_0] : memref<32x128xf32, #tpu.memory_space<vmem>>, vector<32x128xf32>
    %c0_1 = arith.constant 0 : index
    %c0_2 = arith.constant 0 : index
    %1 = vector.load %arg2[%c0_1, %c0_2] : memref<1x128xf32, #tpu.memory_space<vmem>>, vector<1x128xf32>
    %2 = vector.broadcast %1 : vector<1x128xf32> to vector<32x128xf32>
    %3 = arith.mulf %0, %2 : vector<32x128xf32>
    %c0_3 = arith.constant 0 : index
    %c0_4 = arith.constant 0 : index
    %4 = vector.load %arg3[%c0_3, %c0_4] : memref<1x128xf32, #tpu.memory_space<vmem>>, vector<1x128xf32>
    %5 = vector.broadcast %4 : vector<1x128xf32> to vector<32x128xf32>
    %6 = arith.addf %3, %5 : vector<32x128xf32>
    %cst = arith.constant 0.000000e+00 : f32
    %7 = vector.broadcast %cst : f32 to vector<32x128xf32>
    %8 = arith.cmpf ogt, %6, %7 : vector<32x128xf32>
    %cst_5 = arith.constant 2.000000e-01 : f32
    %9 = vector.broadcast %cst_5 : f32 to vector<32x128xf32>
    %10 = arith.mulf %9, %6 : vector<32x128xf32>
    %11 = arith.select %8, %6, %10 : vector<32x128xi1>, vector<32x128xf32>
    %12 = arith.truncf %11 : vector<32x128xf32> to vector<32x128xbf16>
    %c0_6 = arith.constant 0 : index
    %c0_7 = arith.constant 0 : index
    %13 = vector.load %arg4[%c0_6, %c0_7] : memref<32x128xbf16, #tpu.memory_space<vmem>>, vector<32x128xbf16>
    tpu.vector_store %arg4[%c0_6, %c0_7], %12 {strides = array<i32>} : memref<32x128xbf16, #tpu.memory_space<vmem>>, vector<32x128xbf16>,
    return
  }
  func.func @transform_0(%arg0: i32) -> (i32, i32) {
    %c0_i32 = arith.constant 0 : i32
    %c0_i32_0 = arith.constant 0 : i32
    return %arg0, %c0_i32 : i32, i32
  }
  func.func @transform_1(%arg0: i32) -> (i32, i32) {
    %c0_i32 = arith.constant 0 : i32
    %c0_i32_0 = arith.constant 0 : i32
    %c0_i32_1 = arith.constant 0 : i32
    return %c0_i32, %c0_i32_0 : i32, i32
  }
  func.func @transform_2(%arg0: i32) -> (i32, i32) {
    %c0_i32 = arith.constant 0 : i32
    %c0_i32_0 = arith.constant 0 : i32
    %c0_i32_1 = arith.constant 0 : i32
    return %c0_i32, %c0_i32_0 : i32, i32
  }
  func.func @transform_3(%arg0: i32) -> (i32, i32) {
    %c0_i32 = arith.constant 0 : i32
    %c0_i32_0 = arith.constant 0 : i32
    return %arg0, %c0_i32 : i32, i32
  }
}

module attributes {stable_mosaic.version = 11 : i64} {
  func.func @_matmul_stats_kernel(%arg0: i32, %arg1: i32, %arg2: memref<16x1024xbf16, #tpu.memory_space<vmem>>, %arg3: memref<1024x128xbf16, #tpu.memory_space<vmem>>, %arg4: memref<16x128xf32, #tpu.memory_space<vmem>>, %arg5: memref<1x8x128xf32, #tpu.memory_space<vmem>>, %arg6: memref<1x8x128xf32, #tpu.memory_space<vmem>>) attributes {dimension_semantics = [#tpu.dimension_semantics<parallel>, #tpu.dimension_semantics<parallel>], iteration_bounds = array<i64: 1, 1>, scalar_prefetch = 0 : i64, scratch_operands = 0 : i64, tpu.core_type = #tpu.core_type<tc>, window_params = [{transform_indices = @transform_0, window_bounds = array<i64: 16, 1024>}, {transform_indices = @transform_1, window_bounds = array<i64: 1024, 128>}, {transform_indices = @transform_2, window_bounds = array<i64: 16, 128>}, {transform_indices = @transform_3, window_bounds = array<i64: 1, 8, 128>}, {transform_indices = @transform_4, window_bounds = array<i64: 1, 8, 128>}]} {
    %c0 = arith.constant 0 : index
    %c0_0 = arith.constant 0 : index
    %0 = vector.load %arg2[%c0, %c0_0] : memref<16x1024xbf16, #tpu.memory_space<vmem>>, vector<16x1024xbf16>
    %c0_1 = arith.constant 0 : index
    %c0_2 = arith.constant 0 : index
    %1 = vector.load %arg3[%c0_1, %c0_2] : memref<1024x128xbf16, #tpu.memory_space<vmem>>, vector<1024x128xbf16>
    %cst = arith.constant dense<0.000000e+00> : vector<16x128xf32>
    %2 = tpu.matmul %0, %1, %cst {dimension_numbers = #tpu.dot_dimension_numbers<[1], [0], [0], [1], [0, 0, 1, 1], [], []>} : vector<16x1024xbf16>, vector<1024x128xbf16>, vector<16x128xf32> -> vector<16x128xf32>
    %c0_3 = arith.constant 0 : index
    %c0_4 = arith.constant 0 : index
    %3 = vector.load %arg4[%c0_3, %c0_4] : memref<16x128xf32, #tpu.memory_space<vmem>>, vector<16x128xf32>
    tpu.vector_store %arg4[%c0_3, %c0_4], %2 {strides = array<i32>} : memref<16x128xf32, #tpu.memory_space<vmem>>, vector<16x128xf32>,
    %cst_5 = arith.constant dense<0.000000e+00> : vector<128xf32>
    %4 = vector.multi_reduction <add>, %2, %cst_5 [0] : vector<16x128xf32> to vector<128xf32>
    %5 = vector.shape_cast %4 : vector<128xf32> to vector<1x128xf32>
    %6 = arith.mulf %2, %2 : vector<16x128xf32>
    %cst_6 = arith.constant dense<0.000000e+00> : vector<128xf32>
    %7 = vector.multi_reduction <add>, %6, %cst_6 [0] : vector<16x128xf32> to vector<128xf32>
    %8 = vector.shape_cast %7 : vector<128xf32> to vector<1x128xf32>
    %9 = vector.shape_cast %5 : vector<1x128xf32> to vector<1x1x128xf32>
    %10 = vector.broadcast %9 : vector<1x1x128xf32> to vector<1x8x128xf32>
    %c0_7 = arith.constant 0 : index
    %c0_8 = arith.constant 0 : index
    %c0_9 = arith.constant 0 : index
    %11 = vector.load %arg5[%c0_7, %c0_8, %c0_9] : memref<1x8x128xf32, #tpu.memory_space<vmem>>, vector<1x8x128xf32>
    tpu.vector_store %arg5[%c0_7, %c0_8, %c0_9], %10 {strides = array<i32>} : memref<1x8x128xf32, #tpu.memory_space<vmem>>, vector<1x8x128xf32>,
    %12 = vector.shape_cast %8 : vector<1x128xf32> to vector<1x1x128xf32>
    %13 = vector.broadcast %12 : vector<1x1x128xf32> to vector<1x8x128xf32>
    %c0_10 = arith.constant 0 : index
    %c0_11 = arith.constant 0 : index
    %c0_12 = arith.constant 0 : index
    %14 = vector.load %arg6[%c0_10, %c0_11, %c0_12] : memref<1x8x128xf32, #tpu.memory_space<vmem>>, vector<1x8x128xf32>
    tpu.vector_store %arg6[%c0_10, %c0_11, %c0_12], %13 {strides = array<i32>} : memref<1x8x128xf32, #tpu.memory_space<vmem>>, vector<1x8x128xf32>,
    return
  }
  func.func @transform_0(%arg0: i32, %arg1: i32) -> (i32, i32) {
    %c0_i32 = arith.constant 0 : i32
    %c0_i32_0 = arith.constant 0 : i32
    return %arg0, %c0_i32 : i32, i32
  }
  func.func @transform_1(%arg0: i32, %arg1: i32) -> (i32, i32) {
    %c0_i32 = arith.constant 0 : i32
    %c0_i32_0 = arith.constant 0 : i32
    return %c0_i32, %arg1 : i32, i32
  }
  func.func @transform_2(%arg0: i32, %arg1: i32) -> (i32, i32) {
    %c0_i32 = arith.constant 0 : i32
    return %arg0, %arg1 : i32, i32
  }
  func.func @transform_3(%arg0: i32, %arg1: i32) -> (i32, i32, i32) {
    %c0_i32 = arith.constant 0 : i32
    %c0_i32_0 = arith.constant 0 : i32
    return %arg0, %c0_i32, %arg1 : i32, i32, i32
  }
  func.func @transform_4(%arg0: i32, %arg1: i32) -> (i32, i32, i32) {
    %c0_i32 = arith.constant 0 : i32
    %c0_i32_0 = arith.constant 0 : i32
    return %arg0, %c0_i32, %arg1 : i32, i32, i32
  }
}

module attributes {stable_mosaic.version = 11 : i64} {
  func.func @_affine_act_kernel(%arg0: i32, %arg1: memref<16x128xf32, #tpu.memory_space<vmem>>, %arg2: memref<1x128xf32, #tpu.memory_space<vmem>>, %arg3: memref<1x128xf32, #tpu.memory_space<vmem>>, %arg4: memref<16x128xbf16, #tpu.memory_space<vmem>>) attributes {dimension_semantics = [#tpu.dimension_semantics<parallel>], iteration_bounds = array<i64: 1>, scalar_prefetch = 0 : i64, scratch_operands = 0 : i64, tpu.core_type = #tpu.core_type<tc>, window_params = [{transform_indices = @transform_0, window_bounds = array<i64: 16, 128>}, {pipeline_mode = #tpu.pipeline_mode<synchronous>, transform_indices = @transform_1, window_bounds = array<i64: 1, 128>}, {pipeline_mode = #tpu.pipeline_mode<synchronous>, transform_indices = @transform_2, window_bounds = array<i64: 1, 128>}, {transform_indices = @transform_3, window_bounds = array<i64: 16, 128>}]} {
    %c0 = arith.constant 0 : index
    %c0_0 = arith.constant 0 : index
    %0 = vector.load %arg1[%c0, %c0_0] : memref<16x128xf32, #tpu.memory_space<vmem>>, vector<16x128xf32>
    %c0_1 = arith.constant 0 : index
    %c0_2 = arith.constant 0 : index
    %1 = vector.load %arg2[%c0_1, %c0_2] : memref<1x128xf32, #tpu.memory_space<vmem>>, vector<1x128xf32>
    %2 = vector.broadcast %1 : vector<1x128xf32> to vector<16x128xf32>
    %3 = arith.mulf %0, %2 : vector<16x128xf32>
    %c0_3 = arith.constant 0 : index
    %c0_4 = arith.constant 0 : index
    %4 = vector.load %arg3[%c0_3, %c0_4] : memref<1x128xf32, #tpu.memory_space<vmem>>, vector<1x128xf32>
    %5 = vector.broadcast %4 : vector<1x128xf32> to vector<16x128xf32>
    %6 = arith.addf %3, %5 : vector<16x128xf32>
    %cst = arith.constant 0.000000e+00 : f32
    %7 = vector.broadcast %cst : f32 to vector<16x128xf32>
    %8 = arith.cmpf ogt, %6, %7 : vector<16x128xf32>
    %cst_5 = arith.constant 2.000000e-01 : f32
    %9 = vector.broadcast %cst_5 : f32 to vector<16x128xf32>
    %10 = arith.mulf %9, %6 : vector<16x128xf32>
    %11 = arith.select %8, %6, %10 : vector<16x128xi1>, vector<16x128xf32>
    %12 = arith.truncf %11 : vector<16x128xf32> to vector<16x128xbf16>
    %c0_6 = arith.constant 0 : index
    %c0_7 = arith.constant 0 : index
    %13 = vector.load %arg4[%c0_6, %c0_7] : memref<16x128xbf16, #tpu.memory_space<vmem>>, vector<16x128xbf16>
    tpu.vector_store %arg4[%c0_6, %c0_7], %12 {strides = array<i32>} : memref<16x128xbf16, #tpu.memory_space<vmem>>, vector<16x128xbf16>,
    return
  }
  func.func @transform_0(%arg0: i32) -> (i32, i32) {
    %c0_i32 = arith.constant 0 : i32
    %c0_i32_0 = arith.constant 0 : i32
    return %arg0, %c0_i32 : i32, i32
  }
  func.func @transform_1(%arg0: i32) -> (i32, i32) {
    %c0_i32 = arith.constant 0 : i32
    %c0_i32_0 = arith.constant 0 : i32
    %c0_i32_1 = arith.constant 0 : i32
    return %c0_i32, %c0_i32_0 : i32, i32
  }
  func.func @transform_2(%arg0: i32) -> (i32, i32) {
    %c0_i32 = arith.constant 0 : i32
    %c0_i32_0 = arith.constant 0 : i32
    %c0_i32_1 = arith.constant 0 : i32
    return %c0_i32, %c0_i32_0 : i32, i32
  }
  func.func @transform_3(%arg0: i32) -> (i32, i32) {
    %c0_i32 = arith.constant 0 : i32
    %c0_i32_0 = arith.constant 0 : i32
    return %arg0, %c0_i32 : i32, i32
  }
}

module attributes {stable_mosaic.version = 11 : i64} {
  func.func @_matmul_act_kernel(%arg0: i32, %arg1: i32, %arg2: memref<16x512xbf16, #tpu.memory_space<vmem>>, %arg3: memref<512x128xbf16, #tpu.memory_space<vmem>>, %arg4: memref<16x128xf32, #tpu.memory_space<vmem>>) attributes {dimension_semantics = [#tpu.dimension_semantics<parallel>, #tpu.dimension_semantics<parallel>], iteration_bounds = array<i64: 1, 1>, scalar_prefetch = 0 : i64, scratch_operands = 0 : i64, tpu.core_type = #tpu.core_type<tc>, window_params = [{transform_indices = @transform_0, window_bounds = array<i64: 16, 512>}, {transform_indices = @transform_1, window_bounds = array<i64: 512, 128>}, {transform_indices = @transform_2, window_bounds = array<i64: 16, 128>}]} {
    %c0 = arith.constant 0 : index
    %c0_0 = arith.constant 0 : index
    %0 = vector.load %arg2[%c0, %c0_0] : memref<16x512xbf16, #tpu.memory_space<vmem>>, vector<16x512xbf16>
    %c0_1 = arith.constant 0 : index
    %c0_2 = arith.constant 0 : index
    %1 = vector.load %arg3[%c0_1, %c0_2] : memref<512x128xbf16, #tpu.memory_space<vmem>>, vector<512x128xbf16>
    %cst = arith.constant dense<0.000000e+00> : vector<16x128xf32>
    %2 = tpu.matmul %0, %1, %cst {dimension_numbers = #tpu.dot_dimension_numbers<[1], [0], [0], [1], [0, 0, 1, 1], [], []>} : vector<16x512xbf16>, vector<512x128xbf16>, vector<16x128xf32> -> vector<16x128xf32>
    %c0_3 = arith.constant 0 : index
    %c0_4 = arith.constant 0 : index
    %3 = vector.load %arg4[%c0_3, %c0_4] : memref<16x128xf32, #tpu.memory_space<vmem>>, vector<16x128xf32>
    tpu.vector_store %arg4[%c0_3, %c0_4], %2 {strides = array<i32>} : memref<16x128xf32, #tpu.memory_space<vmem>>, vector<16x128xf32>,
    return
  }
  func.func @transform_0(%arg0: i32, %arg1: i32) -> (i32, i32) {
    %c0_i32 = arith.constant 0 : i32
    %c0_i32_0 = arith.constant 0 : i32
    return %arg0, %c0_i32 : i32, i32
  }
  func.func @transform_1(%arg0: i32, %arg1: i32) -> (i32, i32) {
    %c0_i32 = arith.constant 0 : i32
    %c0_i32_0 = arith.constant 0 : i32
    return %c0_i32, %arg1 : i32, i32
  }
  func.func @transform_2(%arg0: i32, %arg1: i32) -> (i32, i32) {
    %c0_i32 = arith.constant 0 : i32
    return %arg0, %arg1 : i32, i32
  }
}

</mosaic_0001>

<llo_original>
// kernel: discriminator_forward.8
$region0: #{discriminator_forward.8}
  #allocation0 [shape = 'u32[]', space=smem, size = 0x4, offset = 0x4, fixed_abs, tag = 'smem constant byte address 0x4 - core index']
  #allocation1 [shape = 'u32[72,128]{1,0:T(1,128)}', space=vmem, size = 0x9000, scoped, tag = 'internal scratch']
  %s0 = inlined_call_operand.vmem [shape: bf16[512,48], index: 0, kind: input, shape index: {}]
  %s1 = inlined_call_operand.vmem [shape: bf16[48,128], index: 1, kind: input, shape index: {}]
  %s2 = inlined_call_operand.vmem [shape: bf16[512,128], index: 2, kind: output, shape index: {}]
  %s3 = sld [smem:[#allocation0]]
  $region18: #{discriminator_forward.8} parent=0
    _
  %s5 = ssub.s32 1, %s3
  %s6 = scalar_select 0, %s5, %s3
  // Predicated region
  $region2: #{discriminator_forward.8} parent=0 // pred_check
    _
  $region3: #{discriminator_forward.8} parent=0 // pred_check_branch
    %8 = sbr.rel (0) target = $region5
  $region4: #{discriminator_forward.8} parent=0 // pred_region
    _
  $region5: #{discriminator_forward.8} parent=0 // pred_fallthru
    _
  // Predicated region
  $region6: #{discriminator_forward.8} parent=0 // pred_check
    _
  $region7: #{discriminator_forward.8} parent=0 // pred_check_branch
    %10 = sbr.rel (0) target = $region9
  $region8: #{discriminator_forward.8} parent=0 // pred_region
    _
  $region9: #{discriminator_forward.8} parent=0 // pred_fallthru
    _
  %v12 = vld [vmem:[%s0] sm:$0xf]
  %v13 = vld [vmem:[%s0 + $0x4] sm:$0xf]
  %v14 = vld [vmem:[%s0 + $0x8] sm:$0xf]
  %v15 = vld [vmem:[%s0 + $0xc] sm:$0xf]
  %v16 = vld [vmem:[%s0 + $0x10] sm:$0xf]
  %v17 = vld [vmem:[%s0 + $0x14] sm:$0xf]
  %v18 = vld [vmem:[%s0 + $0x18] sm:$0xf]
  %v19 = vld [vmem:[%s0 + $0x1c] sm:$0xf]
  %v20 = vld [vmem:[%s0 + $0x20] sm:$0xf]
  %v21 = vld [vmem:[%s0 + $0x24] sm:$0xf]
  %v22 = vld [vmem:[%s0 + $0x28] sm:$0xf]
  %v23 = vld [vmem:[%s0 + $0x2c] sm:$0xf]
  %v24 = vld [vmem:[%s0 + $0x30] sm:$0xf]
  %v25 = vld [vmem:[%s0 + $0x34] sm:$0xf]
  %v26 = vld [vmem:[%s0 + $0x38] sm:$0xf]
  %v27 = vld [vmem:[%s0 + $0x3c] sm:$0xf]
  %v28 = vld [vmem:[%s0 + $0x40] sm:$0xf]
  %v29 = vld [vmem:[%s0 + $0x44] sm:$0xf]
  %v30 = vld [vmem:[%s0 + $0x48] sm:$0xf]
  %v31 = vld [vmem:[%s0 + $0x4c] sm:$0xf]
  %v32 = vld [vmem:[%s0 + $0x50] sm:$0xf]
  %v33 = vld [vmem:[%s0 + $0x54] sm:$0xf]
  %v34 = vld [vmem:[%s0 + $0x58] sm:$0xf]
  %v35 = vld [vmem:[%s0 + $0x5c] sm:$0xf]
  %v36 = vld [vmem:[%s0 + $0x60] sm:$0xf]
  %v37 = vld [vmem:[%s0 + $0x64] sm:$0xf]
  %v38 = vld [vmem:[%s0 + $0x68] sm:$0xf]
  %v39 = vld [vmem:[%s0 + $0x6c] sm:$0xf]
  %v40 = vld [vmem:[%s0 + $0x70] sm:$0xf]
  %v41 = vld [vmem:[%s0 + $0x74] sm:$0xf]
  %v42 = vld [vmem:[%s0 + $0x78] sm:$0xf]
  %v43 = vld [vmem:[%s0 + $0x7c] sm:$0xf]
  %v44 = vld [vmem:[%s0 + $0x80] sm:$0xf]
  %v45 = vld [vmem:[%s0 + $0x84] sm:$0xf]
  %v46 = vld [vmem:[%s0 + $0x88] sm:$0xf]
  %v47 = vld [vmem:[%s0 + $0x8c] sm:$0xf]
  %v48 = vld [vmem:[%s0 + $0x90] sm:$0xf]
  %v49 = vld [vmem:[%s0 + $0x94] sm:$0xf]
  %v50 = vld [vmem:[%s0 + $0x98] sm:$0xf]
  %v51 = vld [vmem:[%s0 + $0x9c] sm:$0xf]
  %v52 = vld [vmem:[%s0 + $0xa0] sm:$0xf]
  %v53 = vld [vmem:[%s0 + $0xa4] sm:$0xf]
  %v54 = vld [vmem:[%s0 + $0xa8] sm:$0xf]
  %v55 = vld [vmem:[%s0 + $0xac] sm:$0xf]
  %v56 = vld [vmem:[%s0 + $0xb0] sm:$0xf]
  %v57 = vld [vmem:[%s0 + $0xb4] sm:$0xf]
  %v58 = vld [vmem:[%s0 + $0xb8] sm:$0xf]
  %v59 = vld [vmem:[%s0 + $0xbc] sm:$0xf]
  %v60 = vld [vmem:[%s0 + $0xc0] sm:$0xf]
  %v61 = vld [vmem:[%s0 + $0xc4] sm:$0xf]
  %v62 = vld [vmem:[%s0 + $0xc8] sm:$0xf]
  %v63 = vld [vmem:[%s0 + $0xcc] sm:$0xf]
  %v64 = vld [vmem:[%s0 + $0xd0] sm:$0xf]
  %v65 = vld [vmem:[%s0 + $0xd4] sm:$0xf]
  %v66 = vld [vmem:[%s0 + $0xd8] sm:$0xf]
  %v67 = vld [vmem:[%s0 + $0xdc] sm:$0xf]
  %v68 = vld [vmem:[%s0 + $0xe0] sm:$0xf]
  %v69 = vld [vmem:[%s0 + $0xe4] sm:$0xf]
  %v70 = vld [vmem:[%s0 + $0xe8] sm:$0xf]
  %v71 = vld [vmem:[%s0 + $0xec] sm:$0xf]
  %v72 = vld [vmem:[%s0 + $0xf0] sm:$0xf]
  %v73 = vld [vmem:[%s0 + $0xf4] sm:$0xf]
  %v74 = vld [vmem:[%s0 + $0xf8] sm:$0xf]
  %v75 = vld [vmem:[%s0 + $0xfc] sm:$0xf]
  %v76 = vld [vmem:[%s1] sm:$0xf]
  %v77 = vld [vmem:[%s1 + $0x4] sm:$0xf]
  %v78 = vld [vmem:[%s1 + $0x8] sm:$0xf]
  %v79 = vld [vmem:[%s1 + $0xc] sm:$0xf]
  %v80 = vld [vmem:[%s1 + $0x10] sm:$0xf]
  %v81 = vld [vmem:[%s1 + $0x14] sm:$0xf]
  %v146 = vunpack.c.l.b16 %v12
  %v147 = vunpack.c.l.b16 %v13
  %v148 = vunpack.c.l.b16 %v14
  %v149 = vunpack.c.l.b16 %v15
  %v150 = vunpack.c.l.b16 %v16
  %v151 = vunpack.c.l.b16 %v17
  %v152 = vunpack.c.l.b16 %v18
  %v153 = vunpack.c.l.b16 %v19
  %v154 = vunpack.c.l.b16 %v20
  %v155 = vunpack.c.l.b16 %v21
  %v156 = vunpack.c.l.b16 %v22
  %v157 = vunpack.c.l.b16 %v23
  %v158 = vunpack.c.l.b16 %v24
  %v159 = vunpack.c.l.b16 %v25
  %v160 = vunpack.c.l.b16 %v26
  %v161 = vunpack.c.l.b16 %v27
  %v162 = vunpack.c.l.b16 %v28
  %v163 = vunpack.c.l.b16 %v29
  %v164 = vunpack.c.l.b16 %v30
  %v165 = vunpack.c.l.b16 %v31
  %v166 = vunpack.c.l.b16 %v32
  %v167 = vunpack.c.l.b16 %v33
  %v168 = vunpack.c.l.b16 %v34
  %v169 = vunpack.c.l.b16 %v35
  %v170 = vunpack.c.l.b16 %v36
  %v171 = vunpack.c.l.b16 %v37
  %v172 = vunpack.c.l.b16 %v38
  %v173 = vunpack.c.l.b16 %v39
  %v174 = vunpack.c.l.b16 %v40
  %v175 = vunpack.c.l.b16 %v41
  %v176 = vunpack.c.l.b16 %v42
  %v177 = vunpack.c.l.b16 %v43
  %v178 = vunpack.c.l.b16 %v44
  %v179 = vunpack.c.l.b16 %v45
  %v180 = vunpack.c.l.b16 %v46
  %v181 = vunpack.c.l.b16 %v47
  %v182 = vunpack.c.l.b16 %v48
  %v183 = vunpack.c.l.b16 %v49
  %v184 = vunpack.c.l.b16 %v50
  %v185 = vunpack.c.l.b16 %v51
  %v186 = vunpack.c.l.b16 %v52
  %v187 = vunpack.c.l.b16 %v53
  %v188 = vunpack.c.l.b16 %v54
  %v189 = vunpack.c.l.b16 %v55
  %v190 = vunpack.c.l.b16 %v56
  %v191 = vunpack.c.l.b16 %v57
  %v192 = vunpack.c.l.b16 %v58
  %v193 = vunpack.c.l.b16 %v59
  %v194 = vunpack.c.l.b16 %v60
  %v195 = vunpack.c.l.b16 %v61
  %v196 = vunpack.c.l.b16 %v62
  %v197 = vunpack.c.l.b16 %v63
  %v198 = vunpack.c.l.b16 %v64
  %v199 = vunpack.c.l.b16 %v65
  %v200 = vunpack.c.l.b16 %v66
  %v201 = vunpack.c.l.b16 %v67
  %v202 = vunpack.c.l.b16 %v68
  %v203 = vunpack.c.l.b16 %v69
  %v204 = vunpack.c.l.b16 %v70
  %v205 = vunpack.c.l.b16 %v71
  %v206 = vunpack.c.l.b16 %v72
  %v207 = vunpack.c.l.b16 %v73
  %v208 = vunpack.c.l.b16 %v74
  %v209 = vunpack.c.l.b16 %v75
  %v210 = vpack.c.b16 %v147, %v146
  %v211 = vpack.c.b16 %v149, %v148
  %v212 = vpack.c.b16 %v151, %v150
  %v213 = vpack.c.b16 %v153, %v152
  %v214 = vpack.c.b16 %v155, %v154
  %v215 = vpack.c.b16 %v157, %v156
  %v216 = vpack.c.b16 %v159, %v158
  %v217 = vpack.c.b16 %v161, %v160
  %v218 = vpack.c.b16 %v163, %v162
  %v219 = vpack.c.b16 %v165, %v164
  %v220 = vpack.c.b16 %v167, %v166
  %v221 = vpack.c.b16 %v169, %v168
  %v222 = vpack.c.b16 %v171, %v170
  %v223 = vpack.c.b16 %v173, %v172
  %v224 = vpack.c.b16 %v175, %v174
  %v225 = vpack.c.b16 %v177, %v176
  %v226 = vpack.c.b16 %v179, %v178
  %v227 = vpack.c.b16 %v181, %v180
  %v228 = vpack.c.b16 %v183, %v182
  %v229 = vpack.c.b16 %v185, %v184
  %v230 = vpack.c.b16 %v187, %v186
  %v231 = vpack.c.b16 %v189, %v188
  %v232 = vpack.c.b16 %v191, %v190
  %v233 = vpack.c.b16 %v193, %v192
  %v234 = vpack.c.b16 %v195, %v194
  %v235 = vpack.c.b16 %v197, %v196
  %v236 = vpack.c.b16 %v199, %v198
  %v237 = vpack.c.b16 %v201, %v200
  %v238 = vpack.c.b16 %v203, %v202
  %v239 = vpack.c.b16 %v205, %v204
  %v240 = vpack.c.b16 %v207, %v206
  %v241 = vpack.c.b16 %v209, %v208
  %v248 = vunpack.c.l.b16 %v76
  %v249 = vunpack.c.l.b16 %v77
  %v250 = vunpack.c.l.b16 %v78
  %v251 = vunpack.c.l.b16 %v79
  %v252 = vunpack.c.l.b16 %v80
  %v253 = vunpack.c.l.b16 %v81
  %v254 = vpack.c.b16 %v249, %v248
  %v255 = vpack.c.b16 %v251, %v250
  %v256 = vpack.c.b16 %v253, %v252
  %vm260 = vcmask 392192
  %v262 = vsel %vm260, %v210, 0
  %v265 = vsel %vm260, %v211, 0
  %v268 = vsel %vm260, %v212, 0
  %v271 = vsel %vm260, %v213, 0
  %v274 = vsel %vm260, %v214, 0
  %v277 = vsel %vm260, %v215, 0
  %v280 = vsel %vm260, %v216, 0
  %v283 = vsel %vm260, %v217, 0
  %v286 = vsel %vm260, %v218, 0
  %v289 = vsel %vm260, %v219, 0
  %v292 = vsel %vm260, %v220, 0
  %v295 = vsel %vm260, %v221, 0
  %v298 = vsel %vm260, %v222, 0
  %v301 = vsel %vm260, %v223, 0
  %v304 = vsel %vm260, %v224, 0
  %v307 = vsel %vm260, %v225, 0
  %v310 = vsel %vm260, %v226, 0
  %v313 = vsel %vm260, %v227, 0
  %v316 = vsel %vm260, %v228, 0
  %v319 = vsel %vm260, %v229, 0
  %v322 = vsel %vm260, %v230, 0
  %v325 = vsel %vm260, %v231, 0
  %v328 = vsel %vm260, %v232, 0
  %v331 = vsel %vm260, %v233, 0
  %v334 = vsel %vm260, %v234, 0
  %v337 = vsel %vm260, %v235, 0
  %v340 = vsel %vm260, %v236, 0
  %v343 = vsel %vm260, %v237, 0
  %v346 = vsel %vm260, %v238, 0
  %v349 = vsel %vm260, %v239, 0
  %v352 = vsel %vm260, %v240, 0
  %v355 = vsel %vm260, %v241, 0
  %357 = vmatpush.bf16.msra.mxu0 0
  %358 = vmatpush.bf16.msra.mxu0 0
  %359 = vmatpush.bf16.msra.mxu0 0
  %360 = vmatpush.bf16.msra.mxu0 0
  %361 = vmatpush.bf16.msra.mxu0 0
  %362 = vmatpush.bf16.msra.mxu0 %v256
  %363 = vmatpush.bf16.msra.mxu0 %v255
  %364 = vmatpush.bf16.msra.mxu0 %v254
  %365 = vmatmul.bf16.gmra.mxu0 %v262
  %v366 = vpop.f32.mrf.mxu0
  %v367 = vadd.f32 0.0, %v366
  %v368 = vpop.f32.mrf.mxu0
  %v369 = vadd.f32 0.0, %v368
  %370 = vmatmul.bf16.gmra.mxu0 %v265
  %v371 = vpop.f32.mrf.mxu0
  %v372 = vadd.f32 0.0, %v371
  %v373 = vpop.f32.mrf.mxu0
  %v374 = vadd.f32 0.0, %v373
  %375 = vmatmul.bf16.gmra.mxu0 %v268
  %v376 = vpop.f32.mrf.mxu0
  %v377 = vadd.f32 0.0, %v376
  %v378 = vpop.f32.mrf.mxu0
  %v379 = vadd.f32 0.0, %v378
  %380 = vmatmul.bf16.gmra.mxu0 %v271
  %v381 = vpop.f32.mrf.mxu0
  %v382 = vadd.f32 0.0, %v381
  %v383 = vpop.f32.mrf.mxu0
  %v384 = vadd.f32 0.0, %v383
  %385 = vmatmul.bf16.gmra.mxu0 %v274
  %v386 = vpop.f32.mrf.mxu0
  %v387 = vadd.f32 0.0, %v386
  %v388 = vpop.f32.mrf.mxu0
  %v389 = vadd.f32 0.0, %v388
  %390 = vmatmul.bf16.gmra.mxu0 %v277
  %v391 = vpop.f32.mrf.mxu0
  %v392 = vadd.f32 0.0, %v391
  %v393 = vpop.f32.mrf.mxu0
  %v394 = vadd.f32 0.0, %v393
  %395 = vmatmul.bf16.gmra.mxu0 %v280
  %v396 = vpop.f32.mrf.mxu0
  %v397 = vadd.f32 0.0, %v396
  %v398 = vpop.f32.mrf.mxu0
  %v399 = vadd.f32 0.0, %v398
  %400 = vmatmul.bf16.gmra.mxu0 %v283
  %v401 = vpop.f32.mrf.mxu0
  %v402 = vadd.f32 0.0, %v401
  %v403 = vpop.f32.mrf.mxu0
  %v404 = vadd.f32 0.0, %v403
  %405 = vmatmul.bf16.gmra.mxu0 %v286
  %v406 = vpop.f32.mrf.mxu0
  %v407 = vadd.f32 0.0, %v406
  %v408 = vpop.f32.mrf.mxu0
  %v409 = vadd.f32 0.0, %v408
  %410 = vmatmul.bf16.gmra.mxu0 %v289
  %v411 = vpop.f32.mrf.mxu0
  %v412 = vadd.f32 0.0, %v411
  %v413 = vpop.f32.mrf.mxu0
  %v414 = vadd.f32 0.0, %v413
  %415 = vmatmul.bf16.gmra.mxu0 %v292
  %v416 = vpop.f32.mrf.mxu0
  %v417 = vadd.f32 0.0, %v416
  %v418 = vpop.f32.mrf.mxu0
  %v419 = vadd.f32 0.0, %v418
  %420 = vmatmul.bf16.gmra.mxu0 %v295
  %v421 = vpop.f32.mrf.mxu0
  %v422 = vadd.f32 0.0, %v421
  %v423 = vpop.f32.mrf.mxu0
  %v424 = vadd.f32 0.0, %v423
  %425 = vmatmul.bf16.gmra.mxu0 %v298
  %v426 = vpop.f32.mrf.mxu0
  %v427 = vadd.f32 0.0, %v426
  %v428 = vpop.f32.mrf.mxu0
  %v429 = vadd.f32 0.0, %v428
  %430 = vmatmul.bf16.gmra.mxu0 %v301
  %v431 = vpop.f32.mrf.mxu0
  %v432 = vadd.f32 0.0, %v431
  %v433 = vpop.f32.mrf.mxu0
  %v434 = vadd.f32 0.0, %v433
  %435 = vmatmul.bf16.gmra.mxu0 %v304
  %v436 = vpop.f32.mrf.mxu0
  %v437 = vadd.f32 0.0, %v436
  %v438 = vpop.f32.mrf.mxu0
  %v439 = vadd.f32 0.0, %v438
  %440 = vmatmul.bf16.gmra.mxu0 %v307
  %v441 = vpop.f32.mrf.mxu0
  %v442 = vadd.f32 0.0, %v441
  %v443 = vpop.f32.mrf.mxu0
  %v444 = vadd.f32 0.0, %v443
  %445 = vmatmul.bf16.gmra.mxu0 %v310
  %v446 = vpop.f32.mrf.mxu0
  %v447 = vadd.f32 0.0, %v446
  %v448 = vpop.f32.mrf.mxu0
  %v449 = vadd.f32 0.0, %v448
  %450 = vmatmul.bf16.gmra.mxu0 %v313
  %v451 = vpop.f32.mrf.mxu0
  %v452 = vadd.f32 0.0, %v451
  %v453 = vpop.f32.mrf.mxu0
  %v454 = vadd.f32 0.0, %v453
  %455 = vmatmul.bf16.gmra.mxu0 %v316
  %v456 = vpop.f32.mrf.mxu0
  %v457 = vadd.f32 0.0, %v456
  %v458 = vpop.f32.mrf.mxu0
  %v459 = vadd.f32 0.0, %v458
  %460 = vmatmul.bf16.gmra.mxu0 %v319
  %v461 = vpop.f32.mrf.mxu0
  %v462 = vadd.f32 0.0, %v461
  %v463 = vpop.f32.mrf.mxu0
  %v464 = vadd.f32 0.0, %v463
  %465 = vmatmul.bf16.gmra.mxu0 %v322
  %v466 = vpop.f32.mrf.mxu0
  %v467 = vadd.f32 0.0, %v466
  %v468 = vpop.f32.mrf.mxu0
  %v469 = vadd.f32 0.0, %v468
  %470 = vmatmul.bf16.gmra.mxu0 %v325
  %v471 = vpop.f32.mrf.mxu0
  %v472 = vadd.f32 0.0, %v471
  %v473 = vpop.f32.mrf.mxu0
  %v474 = vadd.f32 0.0, %v473
  %475 = vmatmul.bf16.gmra.mxu0 %v328
  %v476 = vpop.f32.mrf.mxu0
  %v477 = vadd.f32 0.0, %v476
  %v478 = vpop.f32.mrf.mxu0
  %v479 = vadd.f32 0.0, %v478
  %480 = vmatmul.bf16.gmra.mxu0 %v331
  %v481 = vpop.f32.mrf.mxu0
  %v482 = vadd.f32 0.0, %v481
  %v483 = vpop.f32.mrf.mxu0
  %v484 = vadd.f32 0.0, %v483
  %485 = vmatmul.bf16.gmra.mxu0 %v334
  %v486 = vpop.f32.mrf.mxu0
  %v487 = vadd.f32 0.0, %v486
  %v488 = vpop.f32.mrf.mxu0
  %v489 = vadd.f32 0.0, %v488
  %490 = vmatmul.bf16.gmra.mxu0 %v337
  %v491 = vpop.f32.mrf.mxu0
  %v492 = vadd.f32 0.0, %v491
  %v493 = vpop.f32.mrf.mxu0
  %v494 = vadd.f32 0.0, %v493
  %495 = vmatmul.bf16.gmra.mxu0 %v340
  %v496 = vpop.f32.mrf.mxu0
  %v497 = vadd.f32 0.0, %v496
  %v498 = vpop.f32.mrf.mxu0
  %v499 = vadd.f32 0.0, %v498
  %500 = vmatmul.bf16.gmra.mxu0 %v343
  %v501 = vpop.f32.mrf.mxu0
  %v502 = vadd.f32 0.0, %v501
  %v503 = vpop.f32.mrf.mxu0
  %v504 = vadd.f32 0.0, %v503
  %505 = vmatmul.bf16.gmra.mxu0 %v346
  %v506 = vpop.f32.mrf.mxu0
  %v507 = vadd.f32 0.0, %v506
  %v508 = vpop.f32.mrf.mxu0
  %v509 = vadd.f32 0.0, %v508
  %510 = vmatmul.bf16.gmra.mxu0 %v349
  %v511 = vpop.f32.mrf.mxu0
  %v512 = vadd.f32 0.0, %v511
  %v513 = vpop.f32.mrf.mxu0
  %v514 = vadd.f32 0.0, %v513
  %515 = vmatmul.bf16.gmra.mxu0 %v352
  %v516 = vpop.f32.mrf.mxu0
  %v517 = vadd.f32 0.0, %v516
  %v518 = vpop.f32.mrf.mxu0
  %v519 = vadd.f32 0.0, %v518
  %520 = vmatmul.bf16.gmra.mxu0 %v355
  %v521 = vpop.f32.mrf.mxu0
  %v522 = vadd.f32 0.0, %v521
  %v523 = vpop.f32.mrf.mxu0
  %v524 = vadd.f32 0.0, %v523
  %525 = vdwg.mxu0
  %vm526 = vcmp.gt.f32.partialorder %v367, 0.0
  %vm527 = vcmp.gt.f32.partialorder %v369, 0.0
  %vm528 = vcmp.gt.f32.partialorder %v372, 0.0
  %vm529 = vcmp.gt.f32.partialorder %v374, 0.0
  %vm530 = vcmp.gt.f32.partialorder %v377, 0.0
  %vm531 = vcmp.gt.f32.partialorder %v379, 0.0
  %vm532 = vcmp.gt.f32.partialorder %v382, 0.0
  %vm533 = vcmp.gt.f32.partialorder %v384, 0.0
  %vm534 = vcmp.gt.f32.partialorder %v387, 0.0
  %vm535 = vcmp.gt.f32.partialorder %v389, 0.0
  %vm536 = vcmp.gt.f32.partialorder %v392, 0.0
  %vm537 = vcmp.gt.f32.partialorder %v394, 0.0
  %vm538 = vcmp.gt.f32.partialorder %v397, 0.0
  %vm539 = vcmp.gt.f32.partialorder %v399, 0.0
  %vm540 = vcmp.gt.f32.partialorder %v402, 0.0
  %vm541 = vcmp.gt.f32.partialorder %v404, 0.0
  %vm542 = vcmp.gt.f32.partialorder %v407, 0.0
  %vm543 = vcmp.gt.f32.partialorder %v409, 0.0
  %vm544 = vcmp.gt.f32.partialorder %v412, 0.0
  %vm545 = vcmp.gt.f32.partialorder %v414, 0.0
  %vm546 = vcmp.gt.f32.partialorder %v417, 0.0
  %vm547 = vcmp.gt.f32.partialorder %v419, 0.0
  %vm548 = vcmp.gt.f32.partialorder %v422, 0.0
  %vm549 = vcmp.gt.f32.partialorder %v424, 0.0
  %vm550 = vcmp.gt.f32.partialorder %v427, 0.0
  %vm551 = vcmp.gt.f32.partialorder %v429, 0.0
  %vm552 = vcmp.gt.f32.partialorder %v432, 0.0
  %vm553 = vcmp.gt.f32.partialorder %v434, 0.0
  %vm554 = vcmp.gt.f32.partialorder %v437, 0.0
  %vm555 = vcmp.gt.f32.partialorder %v439, 0.0
  %vm556 = vcmp.gt.f32.partialorder %v442, 0.0
  %vm557 = vcmp.gt.f32.partialorder %v444, 0.0
  %vm558 = vcmp.gt.f32.partialorder %v447, 0.0
  %vm559 = vcmp.gt.f32.partialorder %v449, 0.0
  %vm560 = vcmp.gt.f32.partialorder %v452, 0.0
  %vm561 = vcmp.gt.f32.partialorder %v454, 0.0
  %vm562 = vcmp.gt.f32.partialorder %v457, 0.0
  %vm563 = vcmp.gt.f32.partialorder %v459, 0.0
  %vm564 = vcmp.gt.f32.partialorder %v462, 0.0
  %vm565 = vcmp.gt.f32.partialorder %v464, 0.0
  %vm566 = vcmp.gt.f32.partialorder %v467, 0.0
  %vm567 = vcmp.gt.f32.partialorder %v469, 0.0
  %vm568 = vcmp.gt.f32.partialorder %v472, 0.0
  %vm569 = vcmp.gt.f32.partialorder %v474, 0.0
  %vm570 = vcmp.gt.f32.partialorder %v477, 0.0
  %vm571 = vcmp.gt.f32.partialorder %v479, 0.0
  %vm572 = vcmp.gt.f32.partialorder %v482, 0.0
  %vm573 = vcmp.gt.f32.partialorder %v484, 0.0
  %vm574 = vcmp.gt.f32.partialorder %v487, 0.0
  %vm575 = vcmp.gt.f32.partialorder %v489, 0.0
  %vm576 = vcmp.gt.f32.partialorder %v492, 0.0
  %vm577 = vcmp.gt.f32.partialorder %v494, 0.0
  %vm578 = vcmp.gt.f32.partialorder %v497, 0.0
  %vm579 = vcmp.gt.f32.partialorder %v499, 0.0
  %vm580 = vcmp.gt.f32.partialorder %v502, 0.0
  %vm581 = vcmp.gt.f32.partialorder %v504, 0.0
  %vm582 = vcmp.gt.f32.partialorder %v507, 0.0
  %vm583 = vcmp.gt.f32.partialorder %v509, 0.0
  %vm584 = vcmp.gt.f32.partialorder %v512, 0.0
  %vm585 = vcmp.gt.f32.partialorder %v514, 0.0
  %vm586 = vcmp.gt.f32.partialorder %v517, 0.0
  %vm587 = vcmp.gt.f32.partialorder %v519, 0.0
  %vm588 = vcmp.gt.f32.partialorder %v522, 0.0
  %vm589 = vcmp.gt.f32.partialorder %v524, 0.0
  %v590 = vmul.f32 %v367, 0.2
  %v591 = vmul.f32 %v369, 0.2
  %v592 = vmul.f32 %v372, 0.2
  %v593 = vmul.f32 %v374, 0.2
  %v594 = vmul.f32 %v377, 0.2
  %v595 = vmul.f32 %v379, 0.2
  %v596 = vmul.f32 %v382, 0.2
  %v597 = vmul.f32 %v384, 0.2
  %v598 = vmul.f32 %v387, 0.2
  %v599 = vmul.f32 %v389, 0.2
  %v600 = vmul.f32 %v392, 0.2
  %v601 = vmul.f32 %v394, 0.2
  %v602 = vmul.f32 %v397, 0.2
  %v603 = vmul.f32 %v399, 0.2
  %v604 = vmul.f32 %v402, 0.2
  %v605 = vmul.f32 %v404, 0.2
  %v606 = vmul.f32 %v407, 0.2
  %v607 = vmul.f32 %v409, 0.2
  %v608 = vmul.f32 %v412, 0.2
  %v609 = vmul.f32 %v414, 0.2
  %v610 = vmul.f32 %v417, 0.2
  %v611 = vmul.f32 %v419, 0.2
  %v612 = vmul.f32 %v422, 0.2
  %v613 = vmul.f32 %v424, 0.2
  %v614 = vmul.f32 %v427, 0.2
  %v615 = vmul.f32 %v429, 0.2
  %v616 = vmul.f32 %v432, 0.2
  %v617 = vmul.f32 %v434, 0.2
  %v618 = vmul.f32 %v437, 0.2
  %v619 = vmul.f32 %v439, 0.2
  %v620 = vmul.f32 %v442, 0.2
  %v621 = vmul.f32 %v444, 0.2
  %v622 = vmul.f32 %v447, 0.2
  %v623 = vmul.f32 %v449, 0.2
  %v624 = vmul.f32 %v452, 0.2
  %v625 = vmul.f32 %v454, 0.2
  %v626 = vmul.f32 %v457, 0.2
  %v627 = vmul.f32 %v459, 0.2
  %v628 = vmul.f32 %v462, 0.2
  %v629 = vmul.f32 %v464, 0.2
  %v630 = vmul.f32 %v467, 0.2
  %v631 = vmul.f32 %v469, 0.2
  %v632 = vmul.f32 %v472, 0.2
  %v633 = vmul.f32 %v474, 0.2
  %v634 = vmul.f32 %v477, 0.2
  %v635 = vmul.f32 %v479, 0.2
  %v636 = vmul.f32 %v482, 0.2
  %v637 = vmul.f32 %v484, 0.2
  %v638 = vmul.f32 %v487, 0.2
  %v639 = vmul.f32 %v489, 0.2
  %v640 = vmul.f32 %v492, 0.2
  %v641 = vmul.f32 %v494, 0.2
  %v642 = vmul.f32 %v497, 0.2
  %v643 = vmul.f32 %v499, 0.2
  %v644 = vmul.f32 %v502, 0.2
  %v645 = vmul.f32 %v504, 0.2
  %v646 = vmul.f32 %v507, 0.2
  %v647 = vmul.f32 %v509, 0.2
  %v648 = vmul.f32 %v512, 0.2
  %v649 = vmul.f32 %v514, 0.2
  %v650 = vmul.f32 %v517, 0.2
  %v651 = vmul.f32 %v519, 0.2
  %v652 = vmul.f32 %v522, 0.2
  %v653 = vmul.f32 %v524, 0.2
  %v654 = vsel %vm526, %v367, %v590
  %v655 = vsel %vm527, %v369, %v591
  %v656 = vsel %vm528, %v372, %v592
  %v657 = vsel %vm529, %v374, %v593
  %v658 = vsel %vm530, %v377, %v594
  %v659 = vsel %vm531, %v379, %v595
  %v660 = vsel %vm532, %v382, %v596
  %v661 = vsel %vm533, %v384, %v597
  %v662 = vsel %vm534, %v387, %v598
  %v663 = vsel %vm535, %v389, %v599
  %v664 = vsel %vm536, %v392, %v600
  %v665 = vsel %vm537, %v394, %v601
  %v666 = vsel %vm538, %v397, %v602
  %v667 = vsel %vm539, %v399, %v603
  %v668 = vsel %vm540, %v402, %v604
  %v669 = vsel %vm541, %v404, %v605
  %v670 = vsel %vm542, %v407, %v606
  %v671 = vsel %vm543, %v409, %v607
  %v672 = vsel %vm544, %v412, %v608
  %v673 = vsel %vm545, %v414, %v609
  %v674 = vsel %vm546, %v417, %v610
  %v675 = vsel %vm547, %v419, %v611
  %v676 = vsel %vm548, %v422, %v612
  %v677 = vsel %vm549, %v424, %v613
  %v678 = vsel %vm550, %v427, %v614
  %v679 = vsel %vm551, %v429, %v615
  %v680 = vsel %vm552, %v432, %v616
  %v681 = vsel %vm553, %v434, %v617
  %v682 = vsel %vm554, %v437, %v618
  %v683 = vsel %vm555, %v439, %v619
  %v684 = vsel %vm556, %v442, %v620
  %v685 = vsel %vm557, %v444, %v621
  %v686 = vsel %vm558, %v447, %v622
  %v687 = vsel %vm559, %v449, %v623
  %v688 = vsel %vm560, %v452, %v624
  %v689 = vsel %vm561, %v454, %v625
  %v690 = vsel %vm562, %v457, %v626
  %v691 = vsel %vm563, %v459, %v627
  %v692 = vsel %vm564, %v462, %v628
  %v693 = vsel %vm565, %v464, %v629
  %v694 = vsel %vm566, %v467, %v630
  %v695 = vsel %vm567, %v469, %v631
  %v696 = vsel %vm568, %v472, %v632
  %v697 = vsel %vm569, %v474, %v633
  %v698 = vsel %vm570, %v477, %v634
  %v699 = vsel %vm571, %v479, %v635
  %v700 = vsel %vm572, %v482, %v636
  %v701 = vsel %vm573, %v484, %v637
  %v702 = vsel %vm574, %v487, %v638
  %v703 = vsel %vm575, %v489, %v639
  %v704 = vsel %vm576, %v492, %v640
  %v705 = vsel %vm577, %v494, %v641
  %v706 = vsel %vm578, %v497, %v642
  %v707 = vsel %vm579, %v499, %v643
  %v708 = vsel %vm580, %v502, %v644
  %v709 = vsel %vm581, %v504, %v645
  %v710 = vsel %vm582, %v507, %v646
  %v711 = vsel %vm583, %v509, %v647
  %v712 = vsel %vm584, %v512, %v648
  %v713 = vsel %vm585, %v514, %v649
  %v714 = vsel %vm586, %v517, %v650
  %v715 = vsel %vm587, %v519, %v651
  %v716 = vsel %vm588, %v522, %v652
  %v717 = vsel %vm589, %v524, %v653
  %v718 = vpack.c.bf16 %v654, %v654
  %v719 = vpack.c.bf16 %v655, %v655
  %v720 = vpack.c.bf16 %v656, %v656
  %v721 = vpack.c.bf16 %v657, %v657
  %v722 = vpack.c.bf16 %v658, %v658
  %v723 = vpack.c.bf16 %v659, %v659
  %v724 = vpack.c.bf16 %v660, %v660
  %v725 = vpack.c.bf16 %v661, %v661
  %v726 = vpack.c.bf16 %v662, %v662
  %v727 = vpack.c.bf16 %v663, %v663
  %v728 = vpack.c.bf16 %v664, %v664
  %v729 = vpack.c.bf16 %v665, %v665
  %v730 = vpack.c.bf16 %v666, %v666
  %v731 = vpack.c.bf16 %v667, %v667
  %v732 = vpack.c.bf16 %v668, %v668
  %v733 = vpack.c.bf16 %v669, %v669
  %v734 = vpack.c.bf16 %v670, %v670
  %v735 = vpack.c.bf16 %v671, %v671
  %v736 = vpack.c.bf16 %v672, %v672
  %v737 = vpack.c.bf16 %v673, %v673
  %v738 = vpack.c.bf16 %v674, %v674
  %v739 = vpack.c.bf16 %v675, %v675
  %v740 = vpack.c.bf16 %v676, %v676
  %v741 = vpack.c.bf16 %v677, %v677
  %v742 = vpack.c.bf16 %v678, %v678
  %v743 = vpack.c.bf16 %v679, %v679
  %v744 = vpack.c.bf16 %v680, %v680
  %v745 = vpack.c.bf16 %v681, %v681
  %v746 = vpack.c.bf16 %v682, %v682
  %v747 = vpack.c.bf16 %v683, %v683
  %v748 = vpack.c.bf16 %v684, %v684
  %v749 = vpack.c.bf16 %v685, %v685
  %v750 = vpack.c.bf16 %v686, %v686
  %v751 = vpack.c.bf16 %v687, %v687
  %v752 = vpack.c.bf16 %v688, %v688
  %v753 = vpack.c.bf16 %v689, %v689
  %v754 = vpack.c.bf16 %v690, %v690
  %v755 = vpack.c.bf16 %v691, %v691
  %v756 = vpack.c.bf16 %v692, %v692
  %v757 = vpack.c.bf16 %v693, %v693
  %v758 = vpack.c.bf16 %v694, %v694
  %v759 = vpack.c.bf16 %v695, %v695
  %v760 = vpack.c.bf16 %v696, %v696
  %v761 = vpack.c.bf16 %v697, %v697
  %v762 = vpack.c.bf16 %v698, %v698
  %v763 = vpack.c.bf16 %v699, %v699
  %v764 = vpack.c.bf16 %v700, %v700
  %v765 = vpack.c.bf16 %v701, %v701
  %v766 = vpack.c.bf16 %v702, %v702
  %v767 = vpack.c.bf16 %v703, %v703
  %v768 = vpack.c.bf16 %v704, %v704
  %v769 = vpack.c.bf16 %v705, %v705
  %v770 = vpack.c.bf16 %v706, %v706
  %v771 = vpack.c.bf16 %v707, %v707
  %v772 = vpack.c.bf16 %v708, %v708
  %v773 = vpack.c.bf16 %v709, %v709
  %v774 = vpack.c.bf16 %v710, %v710
  %v775 = vpack.c.bf16 %v711, %v711
  %v776 = vpack.c.bf16 %v712, %v712
  %v777 = vpack.c.bf16 %v713, %v713
  %v778 = vpack.c.bf16 %v714, %v714
  %v779 = vpack.c.bf16 %v715, %v715
  %v780 = vpack.c.bf16 %v716, %v716
  %v781 = vpack.c.bf16 %v717, %v717
  %782 = vst [vmem:[%s2] sm:$0xf] %v718
  %783 = vst [vmem:[%s2 + $0x4] sm:$0xf] %v719
  %784 = vst [vmem:[%s2 + $0x8] sm:$0xf] %v720
  %785 = vst [vmem:[%s2 + $0xc] sm:$0xf] %v721
  %786 = vst [vmem:[%s2 + $0x10] sm:$0xf] %v722
  %787 = vst [vmem:[%s2 + $0x14] sm:$0xf] %v723
  %788 = vst [vmem:[%s2 + $0x18] sm:$0xf] %v724
  %789 = vst [vmem:[%s2 + $0x1c] sm:$0xf] %v725
  %790 = vst [vmem:[%s2 + $0x20] sm:$0xf] %v726
  %791 = vst [vmem:[%s2 + $0x24] sm:$0xf] %v727
  %792 = vst [vmem:[%s2 + $0x28] sm:$0xf] %v728
  %793 = vst [vmem:[%s2 + $0x2c] sm:$0xf] %v729
  %794 = vst [vmem:[%s2 + $0x30] sm:$0xf] %v730
  %795 = vst [vmem:[%s2 + $0x34] sm:$0xf] %v731
  %796 = vst [vmem:[%s2 + $0x38] sm:$0xf] %v732
  %797 = vst [vmem:[%s2 + $0x3c] sm:$0xf] %v733
  %798 = vst [vmem:[%s2 + $0x40] sm:$0xf] %v734
  %799 = vst [vmem:[%s2 + $0x44] sm:$0xf] %v735
  %800 = vst [vmem:[%s2 + $0x48] sm:$0xf] %v736
  %801 = vst [vmem:[%s2 + $0x4c] sm:$0xf] %v737
  %802 = vst [vmem:[%s2 + $0x50] sm:$0xf] %v738
  %803 = vst [vmem:[%s2 + $0x54] sm:$0xf] %v739
  %804 = vst [vmem:[%s2 + $0x58] sm:$0xf] %v740
  %805 = vst [vmem:[%s2 + $0x5c] sm:$0xf] %v741
  %806 = vst [vmem:[%s2 + $0x60] sm:$0xf] %v742
  %807 = vst [vmem:[%s2 + $0x64] sm:$0xf] %v743
  %808 = vst [vmem:[%s2 + $0x68] sm:$0xf] %v744
  %809 = vst [vmem:[%s2 + $0x6c] sm:$0xf] %v745
  %810 = vst [vmem:[%s2 + $0x70] sm:$0xf] %v746
  %811 = vst [vmem:[%s2 + $0x74] sm:$0xf] %v747
  %812 = vst [vmem:[%s2 + $0x78] sm:$0xf] %v748
  %813 = vst [vmem:[%s2 + $0x7c] sm:$0xf] %v749
  %814 = vst [vmem:[%s2 + $0x80] sm:$0xf] %v750
  %815 = vst [vmem:[%s2 + $0x84] sm:$0xf] %v751
  %816 = vst [vmem:[%s2 + $0x88] sm:$0xf] %v752
  %817 = vst [vmem:[%s2 + $0x8c] sm:$0xf] %v753
  %818 = vst [vmem:[%s2 + $0x90] sm:$0xf] %v754
  %819 = vst [vmem:[%s2 + $0x94] sm:$0xf] %v755
  %820 = vst [vmem:[%s2 + $0x98] sm:$0xf] %v756
  %821 = vst [vmem:[%s2 + $0x9c] sm:$0xf] %v757
  %822 = vst [vmem:[%s2 + $0xa0] sm:$0xf] %v758
  %823 = vst [vmem:[%s2 + $0xa4] sm:$0xf] %v759
  %824 = vst [vmem:[%s2 + $0xa8] sm:$0xf] %v760
  %825 = vst [vmem:[%s2 + $0xac] sm:$0xf] %v761
  %826 = vst [vmem:[%s2 + $0xb0] sm:$0xf] %v762
  %827 = vst [vmem:[%s2 + $0xb4] sm:$0xf] %v763
  %828 = vst [vmem:[%s2 + $0xb8] sm:$0xf] %v764
  %829 = vst [vmem:[%s2 + $0xbc] sm:$0xf] %v765
  %830 = vst [vmem:[%s2 + $0xc0] sm:$0xf] %v766
  %831 = vst [vmem:[%s2 + $0xc4] sm:$0xf] %v767
  %832 = vst [vmem:[%s2 + $0xc8] sm:$0xf] %v768
  %833 = vst [vmem:[%s2 + $0xcc] sm:$0xf] %v769
  %834 = vst [vmem:[%s2 + $0xd0] sm:$0xf] %v770
  %835 = vst [vmem:[%s2 + $0xd4] sm:$0xf] %v771
  %836 = vst [vmem:[%s2 + $0xd8] sm:$0xf] %v772
  %837 = vst [vmem:[%s2 + $0xdc] sm:$0xf] %v773
  %838 = vst [vmem:[%s2 + $0xe0] sm:$0xf] %v774
  %839 = vst [vmem:[%s2 + $0xe4] sm:$0xf] %v775
  %840 = vst [vmem:[%s2 + $0xe8] sm:$0xf] %v776
  %841 = vst [vmem:[%s2 + $0xec] sm:$0xf] %v777
  %842 = vst [vmem:[%s2 + $0xf0] sm:$0xf] %v778
  %843 = vst [vmem:[%s2 + $0xf4] sm:$0xf] %v779
  %844 = vst [vmem:[%s2 + $0xf8] sm:$0xf] %v780
  %845 = vst [vmem:[%s2 + $0xfc] sm:$0xf] %v781
  // Predicated region
  $region10: #{discriminator_forward.8} parent=0 // pred_check
    _
  $region11: #{discriminator_forward.8} parent=0 // pred_check_branch
    %847 = sbr.rel (0) target = $region13
  $region12: #{discriminator_forward.8} parent=0 // pred_region
    _
  $region13: #{discriminator_forward.8} parent=0 // pred_fallthru
    _
  // Predicated region
  $region14: #{discriminator_forward.8} parent=0 // pred_check
    _
  $region15: #{discriminator_forward.8} parent=0 // pred_check_branch
    %849 = sbr.rel (0) target = $region17
  $region16: #{discriminator_forward.8} parent=0 // pred_region
    _
  $region17: #{discriminator_forward.8} parent=0 // pred_fallthru
    _

// kernel: discriminator_forward.9
$region0: #{discriminator_forward.9}
  #allocation0 [shape = 'u32[]', space=smem, size = 0x4, offset = 0x4, fixed_abs, tag = 'smem constant byte address 0x4 - core index']
  #allocation1 [shape = 'u32[72,128]{1,0:T(1,128)}', space=vmem, size = 0x9000, scoped, tag = 'internal scratch']
  %s0 = inlined_call_operand.vmem [shape: bf16[128,256], index: 0, kind: input, shape index: {}]
  %s1 = inlined_call_operand.vmem [shape: bf16[256,128], index: 1, kind: input, shape index: {}]
  %s2 = inlined_call_operand.vmem [shape: f32[128,128], index: 2, kind: output, shape index: {0}]
  %s3 = inlined_call_operand.vmem [shape: f32[1,8,128], index: 3, kind: output, shape index: {1}]
  %s4 = inlined_call_operand.vmem [shape: f32[1,8,128], index: 4, kind: output, shape index: {2}]
  %5 = xla_tuple %s2, %s3, %s4
  %s6 = sld [smem:[#allocation0]]
  $region34: #{discriminator_forward.9} parent=0
    _
  %s8 = ssub.s32 1, %s6
  %s9 = scalar_select 0, %s8, %s6
  // Predicated region
  $region2: #{discriminator_forward.9} parent=0 // pred_check
    _
  $region3: #{discriminator_forward.9} parent=0 // pred_check_branch
    %11 = sbr.rel (0) target = $region5
  $region4: #{discriminator_forward.9} parent=0 // pred_region
    _
  $region5: #{discriminator_forward.9} parent=0 // pred_fallthru
    _
  // Predicated region
  $region6: #{discriminator_forward.9} parent=0 // pred_check
    _
  $region7: #{discriminator_forward.9} parent=0 // pred_check_branch
    %13 = sbr.rel (0) target = $region9
  $region8: #{discriminator_forward.9} parent=0 // pred_region
    _
  $region9: #{discriminator_forward.9} parent=0 // pred_fallthru
    _
  %v14 = vld [vmem:[%s0] sm:$0xff]
  %v15 = vld [vmem:[%s0 + $0x8] sm:$0xff]
  %v16 = vld [vmem:[%s0 + $0x10] sm:$0xff]
  %v17 = vld [vmem:[%s0 + $0x18] sm:$0xff]
  %v18 = vld [vmem:[%s0 + $0x20] sm:$0xff]
  %v19 = vld [vmem:[%s0 + $0x28] sm:$0xff]
  %v20 = vld [vmem:[%s0 + $0x30] sm:$0xff]
  %v21 = vld [vmem:[%s0 + $0x38] sm:$0xff]
  %v22 = vld [vmem:[%s0 + $0x40] sm:$0xff]
  %v23 = vld [vmem:[%s0 + $0x48] sm:$0xff]
  %v24 = vld [vmem:[%s0 + $0x50] sm:$0xff]
  %v25 = vld [vmem:[%s0 + $0x58] sm:$0xff]
  %v26 = vld [vmem:[%s0 + $0x60] sm:$0xff]
  %v27 = vld [vmem:[%s0 + $0x68] sm:$0xff]
  %v28 = vld [vmem:[%s0 + $0x70] sm:$0xff]
  %v29 = vld [vmem:[%s0 + $0x78] sm:$0xff]
  %v30 = vld [vmem:[%s1] sm:$0xf]
  %v31 = vld [vmem:[%s1 + $0x4] sm:$0xf]
  %v32 = vld [vmem:[%s1 + $0x8] sm:$0xf]
  %v33 = vld [vmem:[%s1 + $0xc] sm:$0xf]
  %v34 = vld [vmem:[%s1 + $0x10] sm:$0xf]
  %v35 = vld [vmem:[%s1 + $0x14] sm:$0xf]
  %v36 = vld [vmem:[%s1 + $0x18] sm:$0xf]
  %v37 = vld [vmem:[%s1 + $0x1c] sm:$0xf]
  %v38 = vld [vmem:[%s1 + $0x20] sm:$0xf]
  %v39 = vld [vmem:[%s1 + $0x24] sm:$0xf]
  %v40 = vld [vmem:[%s1 + $0x28] sm:$0xf]
  %v41 = vld [vmem:[%s1 + $0x2c] sm:$0xf]
  %v42 = vld [vmem:[%s1 + $0x30] sm:$0xf]
  %v43 = vld [vmem:[%s1 + $0x34] sm:$0xf]
  %v44 = vld [vmem:[%s1 + $0x38] sm:$0xf]
  %v45 = vld [vmem:[%s1 + $0x3c] sm:$0xf]
  %v46 = vld [vmem:[%s1 + $0x40] sm:$0xf]
  %v47 = vld [vmem:[%s1 + $0x44] sm:$0xf]
  %v48 = vld [vmem:[%s1 + $0x48] sm:$0xf]
  %v49 = vld [vmem:[%s1 + $0x4c] sm:$0xf]
  %v50 = vld [vmem:[%s1 + $0x50] sm:$0xf]
  %v51 = vld [vmem:[%s1 + $0x54] sm:$0xf]
  %v52 = vld [vmem:[%s1 + $0x58] sm:$0xf]
  %v53 = vld [vmem:[%s1 + $0x5c] sm:$0xf]
  %v54 = vld [vmem:[%s1 + $0x60] sm:$0xf]
  %v55 = vld [vmem:[%s1 + $0x64] sm:$0xf]
  %v56 = vld [vmem:[%s1 + $0x68] sm:$0xf]
  %v57 = vld [vmem:[%s1 + $0x6c] sm:$0xf]
  %v58 = vld [vmem:[%s1 + $0x70] sm:$0xf]
  %v59 = vld [vmem:[%s1 + $0x74] sm:$0xf]
  %v60 = vld [vmem:[%s1 + $0x78] sm:$0xf]
  %v61 = vld [vmem:[%s1 + $0x7c] sm:$0xf]
  %v78 = vunpack.c.l.b16 %v14
  %v79 = vunpack.c.h.b16 %v14
  %v80 = vunpack.c.l.b16 %v15
  %v81 = vunpack.c.h.b16 %v15
  %v82 = vunpack.c.l.b16 %v16
  %v83 = vunpack.c.h.b16 %v16
  %v84 = vunpack.c.l.b16 %v17
  %v85 = vunpack.c.h.b16 %v17
  %v86 = vunpack.c.l.b16 %v18
  %v87 = vunpack.c.h.b16 %v18
  %v88 = vunpack.c.l.b16 %v19
  %v89 = vunpack.c.h.b16 %v19
  %v90 = vunpack.c.l.b16 %v20
  %v91 = vunpack.c.h.b16 %v20
  %v92 = vunpack.c.l.b16 %v21
  %v93 = vunpack.c.h.b16 %v21
  %v94 = vunpack.c.l.b16 %v22
  %v95 = vunpack.c.h.b16 %v22
  %v96 = vunpack.c.l.b16 %v23
  %v97 = vunpack.c.h.b16 %v23
  %v98 = vunpack.c.l.b16 %v24
  %v99 = vunpack.c.h.b16 %v24
  %v100 = vunpack.c.l.b16 %v25
  %v101 = vunpack.c.h.b16 %v25
  %v102 = vunpack.c.l.b16 %v26
  %v103 = vunpack.c.h.b16 %v26
  %v104 = vunpack.c.l.b16 %v27
  %v105 = vunpack.c.h.b16 %v27
  %v106 = vunpack.c.l.b16 %v28
  %v107 = vunpack.c.h.b16 %v28
  %v108 = vunpack.c.l.b16 %v29
  %v109 = vunpack.c.h.b16 %v29
  %v110 = vpack.c.b16 %v80, %v78
  %v111 = vpack.c.b16 %v81, %v79
  %v112 = vpack.c.b16 %v84, %v82
  %v113 = vpack.c.b16 %v85, %v83
  %v114 = vpack.c.b16 %v88, %v86
  %v115 = vpack.c.b16 %v89, %v87
  %v116 = vpack.c.b16 %v92, %v90
  %v117 = vpack.c.b16 %v93, %v91
  %v118 = vpack.c.b16 %v96, %v94
  %v119 = vpack.c.b16 %v97, %v95
  %v120 = vpack.c.b16 %v100, %v98
  %v121 = vpack.c.b16 %v101, %v99
  %v122 = vpack.c.b16 %v104, %v102
  %v123 = vpack.c.b16 %v105, %v103
  %v124 = vpack.c.b16 %v108, %v106
  %v125 = vpack.c.b16 %v109, %v107
  %v174 = vunpack.c.l.b16 %v30
  %v175 = vunpack.c.l.b16 %v31
  %v176 = vunpack.c.l.b16 %v32
  %v177 = vunpack.c.l.b16 %v33
  %v178 = vunpack.c.l.b16 %v34
  %v179 = vunpack.c.l.b16 %v35
  %v180 = vunpack.c.l.b16 %v36
  %v181 = vunpack.c.l.b16 %v37
  %v182 = vunpack.c.l.b16 %v38
  %v183 = vunpack.c.l.b16 %v39
  %v184 = vunpack.c.l.b16 %v40
  %v185 = vunpack.c.l.b16 %v41
  %v186 = vunpack.c.l.b16 %v42
  %v187 = vunpack.c.l.b16 %v43
  %v188 = vunpack.c.l.b16 %v44
  %v189 = vunpack.c.l.b16 %v45
  %v190 = vunpack.c.l.b16 %v46
  %v191 = vunpack.c.l.b16 %v47
  %v192 = vunpack.c.l.b16 %v48
  %v193 = vunpack.c.l.b16 %v49
  %v194 = vunpack.c.l.b16 %v50
  %v195 = vunpack.c.l.b16 %v51
  %v196 = vunpack.c.l.b16 %v52
  %v197 = vunpack.c.l.b16 %v53
  %v198 = vunpack.c.l.b16 %v54
  %v199 = vunpack.c.l.b16 %v55
  %v200 = vunpack.c.l.b16 %v56
  %v201 = vunpack.c.l.b16 %v57
  %v202 = vunpack.c.l.b16 %v58
  %v203 = vunpack.c.l.b16 %v59
  %v204 = vunpack.c.l.b16 %v60
  %v205 = vunpack.c.l.b16 %v61
  %v206 = vpack.c.b16 %v175, %v174
  %v207 = vpack.c.b16 %v177, %v176
  %v208 = vpack.c.b16 %v179, %v178
  %v209 = vpack.c.b16 %v181, %v180
  %v210 = vpack.c.b16 %v183, %v182
  %v211 = vpack.c.b16 %v185, %v184
  %v212 = vpack.c.b16 %v187, %v186
  %v213 = vpack.c.b16 %v189, %v188
  %v214 = vpack.c.b16 %v191, %v190
  %v215 = vpack.c.b16 %v193, %v192
  %v216 = vpack.c.b16 %v195, %v194
  %v217 = vpack.c.b16 %v197, %v196
  %v218 = vpack.c.b16 %v199, %v198
  %v219 = vpack.c.b16 %v201, %v200
  %v220 = vpack.c.b16 %v203, %v202
  %v221 = vpack.c.b16 %v205, %v204
  %238 = vmatpush.bf16.msra.mxu0 %v213
  %239 = vmatpush.bf16.msra.mxu0 %v212
  %240 = vmatpush.bf16.msra.mxu0 %v211
  %241 = vmatpush.bf16.msra.mxu0 %v210
  %242 = vmatpush.bf16.msra.mxu0 %v209
  %243 = vmatpush.bf16.msra.mxu0 %v208
  %244 = vmatpush.bf16.msra.mxu0 %v207
  %245 = vmatpush.bf16.msra.mxu0 %v206
  %246 = vmatmul.bf16.gmra.mxu0 %v110
  %v247 = vpop.f32.mrf.mxu0
  %v248 = vadd.f32 0.0, %v247
  %v249 = vpop.f32.mrf.mxu0
  %v250 = vadd.f32 0.0, %v249
  %251 = vmatmul.bf16.gmra.mxu0 %v112
  %v252 = vpop.f32.mrf.mxu0
  %v253 = vadd.f32 0.0, %v252
  %v254 = vpop.f32.mrf.mxu0
  %v255 = vadd.f32 0.0, %v254
  %256 = vmatmul.bf16.gmra.mxu0 %v114
  %v257 = vpop.f32.mrf.mxu0
  %v258 = vadd.f32 0.0, %v257
  %v259 = vpop.f32.mrf.mxu0
  %v260 = vadd.f32 0.0, %v259
  %261 = vmatmul.bf16.gmra.mxu0 %v116
  %v262 = vpop.f32.mrf.mxu0
  %v263 = vadd.f32 0.0, %v262
  %v264 = vpop.f32.mrf.mxu0
  %v265 = vadd.f32 0.0, %v264
  %266 = vmatmul.bf16.gmra.mxu0 %v118
  %v267 = vpop.f32.mrf.mxu0
  %v268 = vadd.f32 0.0, %v267
  %v269 = vpop.f32.mrf.mxu0
  %v270 = vadd.f32 0.0, %v269
  %271 = vmatmul.bf16.gmra.mxu0 %v120
  %v272 = vpop.f32.mrf.mxu0
  %v273 = vadd.f32 0.0, %v272
  %v274 = vpop.f32.mrf.mxu0
  %v275 = vadd.f32 0.0, %v274
  %276 = vmatmul.bf16.gmra.mxu0 %v122
  %v277 = vpop.f32.mrf.mxu0
  %v278 = vadd.f32 0.0, %v277
  %v279 = vpop.f32.mrf.mxu0
  %v280 = vadd.f32 0.0, %v279
  %281 = vmatmul.bf16.gmra.mxu0 %v124
  %v282 = vpop.f32.mrf.mxu0
  %v283 = vadd.f32 0.0, %v282
  %v284 = vpop.f32.mrf.mxu0
  %v285 = vadd.f32 0.0, %v284
  %286 = vdwg.mxu0
  %287 = vmatpush.bf16.msra.mxu0 %v221
  %288 = vmatpush.bf16.msra.mxu0 %v220
  %289 = vmatpush.bf16.msra.mxu0 %v219
  %290 = vmatpush.bf16.msra.mxu0 %v218
  %291 = vmatpush.bf16.msra.mxu0 %v217
  %292 = vmatpush.bf16.msra.mxu0 %v216
  %293 = vmatpush.bf16.msra.mxu0 %v215
  %294 = vmatpush.bf16.msra.mxu0 %v214
  %295 = vmatmul.bf16.gmra.mxu0 %v111
  %v296 = vpop.f32.mrf.mxu0
  %v297 = vadd.f32 %v248, %v296
  %v298 = vpop.f32.mrf.mxu0
  %v299 = vadd.f32 %v250, %v298
  %300 = vmatmul.bf16.gmra.mxu0 %v113
  %v301 = vpop.f32.mrf.mxu0
  %v302 = vadd.f32 %v253, %v301
  %v303 = vpop.f32.mrf.mxu0
  %v304 = vadd.f32 %v255, %v303
  %305 = vmatmul.bf16.gmra.mxu0 %v115
  %v306 = vpop.f32.mrf.mxu0
  %v307 = vadd.f32 %v258, %v306
  %v308 = vpop.f32.mrf.mxu0
  %v309 = vadd.f32 %v260, %v308
  %310 = vmatmul.bf16.gmra.mxu0 %v117
  %v311 = vpop.f32.mrf.mxu0
  %v312 = vadd.f32 %v263, %v311
  %v313 = vpop.f32.mrf.mxu0
  %v314 = vadd.f32 %v265, %v313
  %315 = vmatmul.bf16.gmra.mxu0 %v119
  %v316 = vpop.f32.mrf.mxu0
  %v317 = vadd.f32 %v268, %v316
  %v318 = vpop.f32.mrf.mxu0
  %v319 = vadd.f32 %v270, %v318
  %320 = vmatmul.bf16.gmra.mxu0 %v121
  %v321 = vpop.f32.mrf.mxu0
  %v322 = vadd.f32 %v273, %v321
  %v323 = vpop.f32.mrf.mxu0
  %v324 = vadd.f32 %v275, %v323
  %325 = vmatmul.bf16.gmra.mxu0 %v123
  %v326 = vpop.f32.mrf.mxu0
  %v327 = vadd.f32 %v278, %v326
  %v328 = vpop.f32.mrf.mxu0
  %v329 = vadd.f32 %v280, %v328
  %330 = vmatmul.bf16.gmra.mxu0 %v125
  %v331 = vpop.f32.mrf.mxu0
  %v332 = vadd.f32 %v283, %v331
  %v333 = vpop.f32.mrf.mxu0
  %v334 = vadd.f32 %v285, %v333
  %335 = vdwg.mxu0
  %336 = vst [vmem:[%s2] sm:$0xff] %v297
  %337 = vst [vmem:[%s2 + $0x8] sm:$0xff] %v299
  %338 = vst [vmem:[%s2 + $0x10] sm:$0xff] %v302
  %339 = vst [vmem:[%s2 + $0x18] sm:$0xff] %v304
  %340 = vst [vmem:[%s2 + $0x20] sm:$0xff] %v307
  %341 = vst [vmem:[%s2 + $0x28] sm:$0xff] %v309
  %342 = vst [vmem:[%s2 + $0x30] sm:$0xff] %v312
  %343 = vst [vmem:[%s2 + $0x38] sm:$0xff] %v314
  %344 = vst [vmem:[%s2 + $0x40] sm:$0xff] %v317
  %345 = vst [vmem:[%s2 + $0x48] sm:$0xff] %v319
  %346 = vst [vmem:[%s2 + $0x50] sm:$0xff] %v322
  %347 = vst [vmem:[%s2 + $0x58] sm:$0xff] %v324
  %348 = vst [vmem:[%s2 + $0x60] sm:$0xff] %v327
  %349 = vst [vmem:[%s2 + $0x68] sm:$0xff] %v329
  %350 = vst [vmem:[%s2 + $0x70] sm:$0xff] %v332
  %351 = vst [vmem:[%s2 + $0x78] sm:$0xff] %v334
  %v352 = vadd.f32 %v297, %v299
  %v353 = vadd.f32 %v352, %v302
  %v354 = vadd.f32 %v353, %v304
  %v355 = vadd.f32 %v354, %v307
  %v356 = vadd.f32 %v355, %v309
  %v357 = vadd.f32 %v356, %v312
  %v358 = vadd.f32 %v357, %v314
  %v359 = vadd.f32 %v358, %v317
  %v360 = vadd.f32 %v359, %v319
  %v361 = vadd.f32 %v360, %v322
  %v362 = vadd.f32 %v361, %v324
  %v363 = vadd.f32 %v362, %v327
  %v364 = vadd.f32 %v363, %v329
  %v365 = vadd.f32 %v364, %v332
  %v366 = vadd.f32 %v365, %v334
  %v367 = vrot.slane %v366, 4
  %v368 = vadd.f32 %v366, %v367
  %v369 = vrot.slane %v368, 2
  %v370 = vadd.f32 %v368, %v369
  %v371 = vrot.slane %v370, 1
  %v372 = vadd.f32 %v370, %v371
  %v373 = vmul.f32 %v297, %v297
  %v374 = vmul.f32 %v299, %v299
  %v375 = vmul.f32 %v302, %v302
  %v376 = vmul.f32 %v304, %v304
  %v377 = vmul.f32 %v307, %v307
  %v378 = vmul.f32 %v309, %v309
  %v379 = vmul.f32 %v312, %v312
  %v380 = vmul.f32 %v314, %v314
  %v381 = vmul.f32 %v317, %v317
  %v382 = vmul.f32 %v319, %v319
  %v383 = vmul.f32 %v322, %v322
  %v384 = vmul.f32 %v324, %v324
  %v385 = vmul.f32 %v327, %v327
  %v386 = vmul.f32 %v329, %v329
  %v387 = vmul.f32 %v332, %v332
  %v388 = vmul.f32 %v334, %v334
  %v389 = vadd.f32 %v373, %v374
  %v390 = vadd.f32 %v389, %v375
  %v391 = vadd.f32 %v390, %v376
  %v392 = vadd.f32 %v391, %v377
  %v393 = vadd.f32 %v392, %v378
  %v394 = vadd.f32 %v393, %v379
  %v395 = vadd.f32 %v394, %v380
  %v396 = vadd.f32 %v395, %v381
  %v397 = vadd.f32 %v396, %v382
  %v398 = vadd.f32 %v397, %v383
  %v399 = vadd.f32 %v398, %v384
  %v400 = vadd.f32 %v399, %v385
  %v401 = vadd.f32 %v400, %v386
  %v402 = vadd.f32 %v401, %v387
  %v403 = vadd.f32 %v402, %v388
  %v404 = vrot.slane %v403, 4
  %v405 = vadd.f32 %v403, %v404
  %v406 = vrot.slane %v405, 2
  %v407 = vadd.f32 %v405, %v406
  %v408 = vrot.slane %v407, 1
  %v409 = vadd.f32 %v407, %v408
  %410 = vst [vmem:[%s3] sm:$0xff] %v372
  %411 = vst [vmem:[%s4] sm:$0xff] %v409
  // Predicated region
  $region10: #{discriminator_forward.9} parent=0 // pred_check
    _
  $region11: #{discriminator_forward.9} parent=0 // pred_check_branch
    %413 = sbr.rel (0) target = $region13
  $region12: #{discriminator_forward.9} parent=0 // pred_region
    _
  $region13: #{discriminator_forward.9} parent=0 // pred_fallthru
    _
  // Predicated region
  $region14: #{discriminator_forward.9} parent=0 // pred_check
    _
  $region15: #{discriminator_forward.9} parent=0 // pred_check_branch
    %415 = sbr.rel (0) target = $region17
  $region16: #{discriminator_forward.9} parent=0 // pred_region
    _
  $region17: #{discriminator_forward.9} parent=0 // pred_fallthru
    _
  // Predicated region
  $region18: #{discriminator_forward.9} parent=0 // pred_check
    _
  $region19: #{discriminator_forward.9} parent=0 // pred_check_branch
    %417 = sbr.rel (0) target = $region21
  $region20: #{discriminator_forward.9} parent=0 // pred_region
    _
  $region21: #{discriminator_forward.9} parent=0 // pred_fallthru
    _
  // Predicated region
  $region22: #{discriminator_forward.9} parent=0 // pred_check
    _
  $region23: #{discriminator_forward.9} parent=0 // pred_check_branch
    %419 = sbr.rel (0) target = $region25
  $region24: #{discriminator_forward.9} parent=0 // pred_region
    _
  $region25: #{discriminator_forward.9} parent=0 // pred_fallthru
    _
  // Predicated region
  $region26: #{discriminator_forward.9} parent=0 // pred_check
    _
  $region27: #{discriminator_forward.9} parent=0 // pred_check_branch
    %421 = sbr.rel (0) target = $region29
  $region28: #{discriminator_forward.9} parent=0 // pred_region
    _
  $region29: #{discriminator_forward.9} parent=0 // pred_fallthru
    _
  // Predicated region
  $region30: #{discriminator_forward.9} parent=0 // pred_check
    _
  $region31: #{discriminator_forward.9} parent=0 // pred_check_branch
    %423 = sbr.rel (0) target = $region33
  $region32: #{discriminator_forward.9} parent=0 // pred_region
    _
  $region33: #{discriminator_forward.9} parent=0 // pred_fallthru
    _

// kernel: discriminator_forward.10
$region0: #{discriminator_forward.10}
  #allocation0 [shape = 'u32[]', space=smem, size = 0x4, offset = 0x4, fixed_abs, tag = 'smem constant byte address 0x4 - core index']
  #allocation1 [shape = 'u32[72,128]{1,0:T(1,128)}', space=vmem, size = 0x9000, scoped, tag = 'internal scratch']
  %s0 = inlined_call_operand.vmem [shape: f32[128,128], index: 0, kind: input, shape index: {}]
  %s1 = inlined_call_operand.vmem [shape: f32[1,128], index: 1, kind: input, shape index: {}]
  %s2 = inlined_call_operand.vmem [shape: f32[1,128], index: 2, kind: input, shape index: {}]
  %s3 = inlined_call_operand.vmem [shape: bf16[128,128], index: 3, kind: output, shape index: {}]
  %s4 = sld [smem:[#allocation0]]
  $region22: #{discriminator_forward.10} parent=0
    _
  %s6 = ssub.s32 1, %s4
  %s7 = scalar_select 0, %s6, %s4
  // Predicated region
  $region2: #{discriminator_forward.10} parent=0 // pred_check
    _
  $region3: #{discriminator_forward.10} parent=0 // pred_check_branch
    %9 = sbr.rel (0) target = $region5
  $region4: #{discriminator_forward.10} parent=0 // pred_region
    _
  $region5: #{discriminator_forward.10} parent=0 // pred_fallthru
    _
  // Predicated region
  $region6: #{discriminator_forward.10} parent=0 // pred_check
    _
  $region7: #{discriminator_forward.10} parent=0 // pred_check_branch
    %11 = sbr.rel (0) target = $region9
  $region8: #{discriminator_forward.10} parent=0 // pred_region
    _
  $region9: #{discriminator_forward.10} parent=0 // pred_fallthru
    _
  // Predicated region
  $region10: #{discriminator_forward.10} parent=0 // pred_check
    _
  $region11: #{discriminator_forward.10} parent=0 // pred_check_branch
    %13 = sbr.rel (0) target = $region13
  $region12: #{discriminator_forward.10} parent=0 // pred_region
    _
  $region13: #{discriminator_forward.10} parent=0 // pred_fallthru
    _
  %v14 = vld [vmem:[%s0] sm:$0xff]
  %v15 = vld [vmem:[%s0 + $0x8] sm:$0xff]
  %v16 = vld [vmem:[%s0 + $0x10] sm:$0xff]
  %v17 = vld [vmem:[%s0 + $0x18] sm:$0xff]
  %v18 = vld [vmem:[%s0 + $0x20] sm:$0xff]
  %v19 = vld [vmem:[%s0 + $0x28] sm:$0xff]
  %v20 = vld [vmem:[%s0 + $0x30] sm:$0xff]
  %v21 = vld [vmem:[%s0 + $0x38] sm:$0xff]
  %v22 = vld [vmem:[%s0 + $0x40] sm:$0xff]
  %v23 = vld [vmem:[%s0 + $0x48] sm:$0xff]
  %v24 = vld [vmem:[%s0 + $0x50] sm:$0xff]
  %v25 = vld [vmem:[%s0 + $0x58] sm:$0xff]
  %v26 = vld [vmem:[%s0 + $0x60] sm:$0xff]
  %v27 = vld [vmem:[%s0 + $0x68] sm:$0xff]
  %v28 = vld [vmem:[%s0 + $0x70] sm:$0xff]
  %v29 = vld [vmem:[%s0 + $0x78] sm:$0xff]
  %v30 = vld [vmem:[%s1] sm:$0x1]
  %v32 = vperm.slane %v30, 0
  %v34 = vmul.f32 %v14, %v32
  %v35 = vmul.f32 %v15, %v32
  %v36 = vmul.f32 %v16, %v32
  %v37 = vmul.f32 %v17, %v32
  %v38 = vmul.f32 %v18, %v32
  %v39 = vmul.f32 %v19, %v32
  %v40 = vmul.f32 %v20, %v32
  %v41 = vmul.f32 %v21, %v32
  %v42 = vmul.f32 %v22, %v32
  %v43 = vmul.f32 %v23, %v32
  %v44 = vmul.f32 %v24, %v32
  %v45 = vmul.f32 %v25, %v32
  %v46 = vmul.f32 %v26, %v32
  %v47 = vmul.f32 %v27, %v32
  %v48 = vmul.f32 %v28, %v32
  %v49 = vmul.f32 %v29, %v32
  %v50 = vld [vmem:[%s2] sm:$0x1]
  %v52 = vperm.slane %v50, 0
  %v54 = vadd.f32 %v34, %v52
  %v55 = vadd.f32 %v35, %v52
  %v56 = vadd.f32 %v36, %v52
  %v57 = vadd.f32 %v37, %v52
  %v58 = vadd.f32 %v38, %v52
  %v59 = vadd.f32 %v39, %v52
  %v60 = vadd.f32 %v40, %v52
  %v61 = vadd.f32 %v41, %v52
  %v62 = vadd.f32 %v42, %v52
  %v63 = vadd.f32 %v43, %v52
  %v64 = vadd.f32 %v44, %v52
  %v65 = vadd.f32 %v45, %v52
  %v66 = vadd.f32 %v46, %v52
  %v67 = vadd.f32 %v47, %v52
  %v68 = vadd.f32 %v48, %v52
  %v69 = vadd.f32 %v49, %v52
  %vm70 = vcmp.gt.f32.partialorder %v54, 0.0
  %vm71 = vcmp.gt.f32.partialorder %v55, 0.0
  %vm72 = vcmp.gt.f32.partialorder %v56, 0.0
  %vm73 = vcmp.gt.f32.partialorder %v57, 0.0
  %vm74 = vcmp.gt.f32.partialorder %v58, 0.0
  %vm75 = vcmp.gt.f32.partialorder %v59, 0.0
  %vm76 = vcmp.gt.f32.partialorder %v60, 0.0
  %vm77 = vcmp.gt.f32.partialorder %v61, 0.0
  %vm78 = vcmp.gt.f32.partialorder %v62, 0.0
  %vm79 = vcmp.gt.f32.partialorder %v63, 0.0
  %vm80 = vcmp.gt.f32.partialorder %v64, 0.0
  %vm81 = vcmp.gt.f32.partialorder %v65, 0.0
  %vm82 = vcmp.gt.f32.partialorder %v66, 0.0
  %vm83 = vcmp.gt.f32.partialorder %v67, 0.0
  %vm84 = vcmp.gt.f32.partialorder %v68, 0.0
  %vm85 = vcmp.gt.f32.partialorder %v69, 0.0
  %v86 = vmul.f32 %v54, 0.2
  %v87 = vmul.f32 %v55, 0.2
  %v88 = vmul.f32 %v56, 0.2
  %v89 = vmul.f32 %v57, 0.2
  %v90 = vmul.f32 %v58, 0.2
  %v91 = vmul.f32 %v59, 0.2
  %v92 = vmul.f32 %v60, 0.2
  %v93 = vmul.f32 %v61, 0.2
  %v94 = vmul.f32 %v62, 0.2
  %v95 = vmul.f32 %v63, 0.2
  %v96 = vmul.f32 %v64, 0.2
  %v97 = vmul.f32 %v65, 0.2
  %v98 = vmul.f32 %v66, 0.2
  %v99 = vmul.f32 %v67, 0.2
  %v100 = vmul.f32 %v68, 0.2
  %v101 = vmul.f32 %v69, 0.2
  %v102 = vsel %vm70, %v54, %v86
  %v103 = vsel %vm71, %v55, %v87
  %v104 = vsel %vm72, %v56, %v88
  %v105 = vsel %vm73, %v57, %v89
  %v106 = vsel %vm74, %v58, %v90
  %v107 = vsel %vm75, %v59, %v91
  %v108 = vsel %vm76, %v60, %v92
  %v109 = vsel %vm77, %v61, %v93
  %v110 = vsel %vm78, %v62, %v94
  %v111 = vsel %vm79, %v63, %v95
  %v112 = vsel %vm80, %v64, %v96
  %v113 = vsel %vm81, %v65, %v97
  %v114 = vsel %vm82, %v66, %v98
  %v115 = vsel %vm83, %v67, %v99
  %v116 = vsel %vm84, %v68, %v100
  %v117 = vsel %vm85, %v69, %v101
  %v118 = vpack.c.bf16 %v102, %v102
  %v119 = vpack.c.bf16 %v103, %v103
  %v120 = vpack.c.bf16 %v104, %v104
  %v121 = vpack.c.bf16 %v105, %v105
  %v122 = vpack.c.bf16 %v106, %v106
  %v123 = vpack.c.bf16 %v107, %v107
  %v124 = vpack.c.bf16 %v108, %v108
  %v125 = vpack.c.bf16 %v109, %v109
  %v126 = vpack.c.bf16 %v110, %v110
  %v127 = vpack.c.bf16 %v111, %v111
  %v128 = vpack.c.bf16 %v112, %v112
  %v129 = vpack.c.bf16 %v113, %v113
  %v130 = vpack.c.bf16 %v114, %v114
  %v131 = vpack.c.bf16 %v115, %v115
  %v132 = vpack.c.bf16 %v116, %v116
  %v133 = vpack.c.bf16 %v117, %v117
  %134 = vst [vmem:[%s3] sm:$0xf] %v118
  %135 = vst [vmem:[%s3 + $0x4] sm:$0xf] %v119
  %136 = vst [vmem:[%s3 + $0x8] sm:$0xf] %v120
  %137 = vst [vmem:[%s3 + $0xc] sm:$0xf] %v121
  %138 = vst [vmem:[%s3 + $0x10] sm:$0xf] %v122
  %139 = vst [vmem:[%s3 + $0x14] sm:$0xf] %v123
  %140 = vst [vmem:[%s3 + $0x18] sm:$0xf] %v124
  %141 = vst [vmem:[%s3 + $0x1c] sm:$0xf] %v125
  %142 = vst [vmem:[%s3 + $0x20] sm:$0xf] %v126
  %143 = vst [vmem:[%s3 + $0x24] sm:$0xf] %v127
  %144 = vst [vmem:[%s3 + $0x28] sm:$0xf] %v128
  %145 = vst [vmem:[%s3 + $0x2c] sm:$0xf] %v129
  %146 = vst [vmem:[%s3 + $0x30] sm:$0xf] %v130
  %147 = vst [vmem:[%s3 + $0x34] sm:$0xf] %v131
  %148 = vst [vmem:[%s3 + $0x38] sm:$0xf] %v132
  %149 = vst [vmem:[%s3 + $0x3c] sm:$0xf] %v133
  // Predicated region
  $region14: #{discriminator_forward.10} parent=0 // pred_check
    _
  $region15: #{discriminator_forward.10} parent=0 // pred_check_branch
    %151 = sbr.rel (0) target = $region17
  $region16: #{discriminator_forward.10} parent=0 // pred_region
    _
  $region17: #{discriminator_forward.10} parent=0 // pred_fallthru
    _
  // Predicated region
  $region18: #{discriminator_forward.10} parent=0 // pred_check
    _
  $region19: #{discriminator_forward.10} parent=0 // pred_check_branch
    %153 = sbr.rel (0) target = $region21
  $region20: #{discriminator_forward.10} parent=0 // pred_region
    _
  $region21: #{discriminator_forward.10} parent=0 // pred_fallthru
    _

// kernel: discriminator_forward.12
$region0: #{discriminator_forward.12}
  #allocation0 [shape = 'u32[]', space=smem, size = 0x4, offset = 0x4, fixed_abs, tag = 'smem constant byte address 0x4 - core index']
  #allocation1 [shape = 'u32[72,128]{1,0:T(1,128)}', space=vmem, size = 0x9000, scoped, tag = 'internal scratch']
  %s0 = inlined_call_operand.vmem [shape: f32[32,128], index: 0, kind: input, shape index: {}]
  %s1 = inlined_call_operand.vmem [shape: f32[1,128], index: 1, kind: input, shape index: {}]
  %s2 = inlined_call_operand.vmem [shape: f32[1,128], index: 2, kind: input, shape index: {}]
  %s3 = inlined_call_operand.vmem [shape: bf16[32,128], index: 3, kind: output, shape index: {}]
  %s4 = sld [smem:[#allocation0]]
  $region22: #{discriminator_forward.12} parent=0
    _
  %s6 = ssub.s32 1, %s4
  %s7 = scalar_select 0, %s6, %s4
  // Predicated region
  $region2: #{discriminator_forward.12} parent=0 // pred_check
    _
  $region3: #{discriminator_forward.12} parent=0 // pred_check_branch
    %9 = sbr.rel (0) target = $region5
  $region4: #{discriminator_forward.12} parent=0 // pred_region
    _
  $region5: #{discriminator_forward.12} parent=0 // pred_fallthru
    _
  // Predicated region
  $region6: #{discriminator_forward.12} parent=0 // pred_check
    _
  $region7: #{discriminator_forward.12} parent=0 // pred_check_branch
    %11 = sbr.rel (0) target = $region9
  $region8: #{discriminator_forward.12} parent=0 // pred_region
    _
  $region9: #{discriminator_forward.12} parent=0 // pred_fallthru
    _
  // Predicated region
  $region10: #{discriminator_forward.12} parent=0 // pred_check
    _
  $region11: #{discriminator_forward.12} parent=0 // pred_check_branch
    %13 = sbr.rel (0) target = $region13
  $region12: #{discriminator_forward.12} parent=0 // pred_region
    _
  $region13: #{discriminator_forward.12} parent=0 // pred_fallthru
    _
  %v14 = vld [vmem:[%s0] sm:$0xff]
  %v15 = vld [vmem:[%s0 + $0x8] sm:$0xff]
  %v16 = vld [vmem:[%s0 + $0x10] sm:$0xff]
  %v17 = vld [vmem:[%s0 + $0x18] sm:$0xff]
  %v18 = vld [vmem:[%s1] sm:$0x1]
  %v20 = vperm.slane %v18, 0
  %v22 = vmul.f32 %v14, %v20
  %v23 = vmul.f32 %v15, %v20
  %v24 = vmul.f32 %v16, %v20
  %v25 = vmul.f32 %v17, %v20
  %v26 = vld [vmem:[%s2] sm:$0x1]
  %v28 = vperm.slane %v26, 0
  %v30 = vadd.f32 %v22, %v28
  %v31 = vadd.f32 %v23, %v28
  %v32 = vadd.f32 %v24, %v28
  %v33 = vadd.f32 %v25, %v28
  %vm34 = vcmp.gt.f32.partialorder %v30, 0.0
  %vm35 = vcmp.gt.f32.partialorder %v31, 0.0
  %vm36 = vcmp.gt.f32.partialorder %v32, 0.0
  %vm37 = vcmp.gt.f32.partialorder %v33, 0.0
  %v38 = vmul.f32 %v30, 0.2
  %v39 = vmul.f32 %v31, 0.2
  %v40 = vmul.f32 %v32, 0.2
  %v41 = vmul.f32 %v33, 0.2
  %v42 = vsel %vm34, %v30, %v38
  %v43 = vsel %vm35, %v31, %v39
  %v44 = vsel %vm36, %v32, %v40
  %v45 = vsel %vm37, %v33, %v41
  %v46 = vpack.c.bf16 %v42, %v42
  %v47 = vpack.c.bf16 %v43, %v43
  %v48 = vpack.c.bf16 %v44, %v44
  %v49 = vpack.c.bf16 %v45, %v45
  %50 = vst [vmem:[%s3] sm:$0xf] %v46
  %51 = vst [vmem:[%s3 + $0x4] sm:$0xf] %v47
  %52 = vst [vmem:[%s3 + $0x8] sm:$0xf] %v48
  %53 = vst [vmem:[%s3 + $0xc] sm:$0xf] %v49
  // Predicated region
  $region14: #{discriminator_forward.12} parent=0 // pred_check
    _
  $region15: #{discriminator_forward.12} parent=0 // pred_check_branch
    %55 = sbr.rel (0) target = $region17
  $region16: #{discriminator_forward.12} parent=0 // pred_region
    _
  $region17: #{discriminator_forward.12} parent=0 // pred_fallthru
    _
  // Predicated region
  $region18: #{discriminator_forward.12} parent=0 // pred_check
    _
  $region19: #{discriminator_forward.12} parent=0 // pred_check_branch
    %57 = sbr.rel (0) target = $region21
  $region20: #{discriminator_forward.12} parent=0 // pred_region
    _
  $region21: #{discriminator_forward.12} parent=0 // pred_fallthru
    _

// kernel: discriminator_forward.11
$region0: #{discriminator_forward.11}
  #allocation0 [shape = 'u32[]', space=smem, size = 0x4, offset = 0x4, fixed_abs, tag = 'smem constant byte address 0x4 - core index']
  #allocation1 [shape = 'u32[72,128]{1,0:T(1,128)}', space=vmem, size = 0x9000, scoped, tag = 'internal scratch']
  %s0 = inlined_call_operand.vmem [shape: bf16[32,512], index: 0, kind: input, shape index: {}]
  %s1 = inlined_call_operand.vmem [shape: bf16[512,128], index: 1, kind: input, shape index: {}]
  %s2 = inlined_call_operand.vmem [shape: f32[32,128], index: 2, kind: output, shape index: {0}]
  %s3 = inlined_call_operand.vmem [shape: f32[1,8,128], index: 3, kind: output, shape index: {1}]
  %s4 = inlined_call_operand.vmem [shape: f32[1,8,128], index: 4, kind: output, shape index: {2}]
  %5 = xla_tuple %s2, %s3, %s4
  %s6 = sld [smem:[#allocation0]]
  $region34: #{discriminator_forward.11} parent=0
    _
  %s8 = ssub.s32 1, %s6
  %s9 = scalar_select 0, %s8, %s6
  // Predicated region
  $region2: #{discriminator_forward.11} parent=0 // pred_check
    _
  $region3: #{discriminator_forward.11} parent=0 // pred_check_branch
    %11 = sbr.rel (0) target = $region5
  $region4: #{discriminator_forward.11} parent=0 // pred_region
    _
  $region5: #{discriminator_forward.11} parent=0 // pred_fallthru
    _
  // Predicated region
  $region6: #{discriminator_forward.11} parent=0 // pred_check
    _
  $region7: #{discriminator_forward.11} parent=0 // pred_check_branch
    %13 = sbr.rel (0) target = $region9
  $region8: #{discriminator_forward.11} parent=0 // pred_region
    _
  $region9: #{discriminator_forward.11} parent=0 // pred_fallthru
    _
  %v14 = vld [vmem:[%s0] sm:$0xff]
  %v15 = vld [vmem:[%s0 + $0x8] sm:$0xff]
  %v16 = vld [vmem:[%s0 + $0x10] sm:$0xff]
  %v17 = vld [vmem:[%s0 + $0x18] sm:$0xff]
  %v18 = vld [vmem:[%s0 + $0x20] sm:$0xff]
  %v19 = vld [vmem:[%s0 + $0x28] sm:$0xff]
  %v20 = vld [vmem:[%s0 + $0x30] sm:$0xff]
  %v21 = vld [vmem:[%s0 + $0x38] sm:$0xff]
  %v22 = vld [vmem:[%s1] sm:$0xf]
  %v23 = vld [vmem:[%s1 + $0x4] sm:$0xf]
  %v24 = vld [vmem:[%s1 + $0x8] sm:$0xf]
  %v25 = vld [vmem:[%s1 + $0xc] sm:$0xf]
  %v26 = vld [vmem:[%s1 + $0x10] sm:$0xf]
  %v27 = vld [vmem:[%s1 + $0x14] sm:$0xf]
  %v28 = vld [vmem:[%s1 + $0x18] sm:$0xf]
  %v29 = vld [vmem:[%s1 + $0x1c] sm:$0xf]
  %v30 = vld [vmem:[%s1 + $0x20] sm:$0xf]
  %v31 = vld [vmem:[%s1 + $0x24] sm:$0xf]
  %v32 = vld [vmem:[%s1 + $0x28] sm:$0xf]
  %v33 = vld [vmem:[%s1 + $0x2c] sm:$0xf]
  %v34 = vld [vmem:[%s1 + $0x30] sm:$0xf]
  %v35 = vld [vmem:[%s1 + $0x34] sm:$0xf]
  %v36 = vld [vmem:[%s1 + $0x38] sm:$0xf]
  %v37 = vld [vmem:[%s1 + $0x3c] sm:$0xf]
  %v38 = vld [vmem:[%s1 + $0x40] sm:$0xf]
  %v39 = vld [vmem:[%s1 + $0x44] sm:$0xf]
  %v40 = vld [vmem:[%s1 + $0x48] sm:$0xf]
  %v41 = vld [vmem:[%s1 + $0x4c] sm:$0xf]
  %v42 = vld [vmem:[%s1 + $0x50] sm:$0xf]
  %v43 = vld [vmem:[%s1 + $0x54] sm:$0xf]
  %v44 = vld [vmem:[%s1 + $0x58] sm:$0xf]
  %v45 = vld [vmem:[%s1 + $0x5c] sm:$0xf]
  %v46 = vld [vmem:[%s1 + $0x60] sm:$0xf]
  %v47 = vld [vmem:[%s1 + $0x64] sm:$0xf]
  %v48 = vld [vmem:[%s1 + $0x68] sm:$0xf]
  %v49 = vld [vmem:[%s1 + $0x6c] sm:$0xf]
  %v50 = vld [vmem:[%s1 + $0x70] sm:$0xf]
  %v51 = vld [vmem:[%s1 + $0x74] sm:$0xf]
  %v52 = vld [vmem:[%s1 + $0x78] sm:$0xf]
  %v53 = vld [vmem:[%s1 + $0x7c] sm:$0xf]
  %v54 = vld [vmem:[%s1 + $0x80] sm:$0xf]
  %v55 = vld [vmem:[%s1 + $0x84] sm:$0xf]
  %v56 = vld [vmem:[%s1 + $0x88] sm:$0xf]
  %v57 = vld [vmem:[%s1 + $0x8c] sm:$0xf]
  %v58 = vld [vmem:[%s1 + $0x90] sm:$0xf]
  %v59 = vld [vmem:[%s1 + $0x94] sm:$0xf]
  %v60 = vld [vmem:[%s1 + $0x98] sm:$0xf]
  %v61 = vld [vmem:[%s1 + $0x9c] sm:$0xf]
  %v62 = vld [vmem:[%s1 + $0xa0] sm:$0xf]
  %v63 = vld [vmem:[%s1 + $0xa4] sm:$0xf]
  %v64 = vld [vmem:[%s1 + $0xa8] sm:$0xf]
  %v65 = vld [vmem:[%s1 + $0xac] sm:$0xf]
  %v66 = vld [vmem:[%s1 + $0xb0] sm:$0xf]
  %v67 = vld [vmem:[%s1 + $0xb4] sm:$0xf]
  %v68 = vld [vmem:[%s1 + $0xb8] sm:$0xf]
  %v69 = vld [vmem:[%s1 + $0xbc] sm:$0xf]
  %v70 = vld [vmem:[%s1 + $0xc0] sm:$0xf]
  %v71 = vld [vmem:[%s1 + $0xc4] sm:$0xf]
  %v72 = vld [vmem:[%s1 + $0xc8] sm:$0xf]
  %v73 = vld [vmem:[%s1 + $0xcc] sm:$0xf]
  %v74 = vld [vmem:[%s1 + $0xd0] sm:$0xf]
  %v75 = vld [vmem:[%s1 + $0xd4] sm:$0xf]
  %v76 = vld [vmem:[%s1 + $0xd8] sm:$0xf]
  %v77 = vld [vmem:[%s1 + $0xdc] sm:$0xf]
  %v78 = vld [vmem:[%s1 + $0xe0] sm:$0xf]
  %v79 = vld [vmem:[%s1 + $0xe4] sm:$0xf]
  %v80 = vld [vmem:[%s1 + $0xe8] sm:$0xf]
  %v81 = vld [vmem:[%s1 + $0xec] sm:$0xf]
  %v82 = vld [vmem:[%s1 + $0xf0] sm:$0xf]
  %v83 = vld [vmem:[%s1 + $0xf4] sm:$0xf]
  %v84 = vld [vmem:[%s1 + $0xf8] sm:$0xf]
  %v85 = vld [vmem:[%s1 + $0xfc] sm:$0xf]
  %v94 = vunpack.c.l.b16 %v14
  %v95 = vunpack.c.h.b16 %v14
  %v96 = vunpack.c.l.b16 %v15
  %v97 = vunpack.c.h.b16 %v15
  %v98 = vunpack.c.l.b16 %v16
  %v99 = vunpack.c.h.b16 %v16
  %v100 = vunpack.c.l.b16 %v17
  %v101 = vunpack.c.h.b16 %v17
  %v102 = vunpack.c.l.b16 %v18
  %v103 = vunpack.c.h.b16 %v18
  %v104 = vunpack.c.l.b16 %v19
  %v105 = vunpack.c.h.b16 %v19
  %v106 = vunpack.c.l.b16 %v20
  %v107 = vunpack.c.h.b16 %v20
  %v108 = vunpack.c.l.b16 %v21
  %v109 = vunpack.c.h.b16 %v21
  %v110 = vpack.c.b16 %v98, %v94
  %v111 = vpack.c.b16 %v99, %v95
  %v112 = vpack.c.b16 %v100, %v96
  %v113 = vpack.c.b16 %v101, %v97
  %v114 = vpack.c.b16 %v106, %v102
  %v115 = vpack.c.b16 %v107, %v103
  %v116 = vpack.c.b16 %v108, %v104
  %v117 = vpack.c.b16 %v109, %v105
  %v190 = vunpack.c.l.b16 %v22
  %v191 = vunpack.c.l.b16 %v23
  %v192 = vunpack.c.l.b16 %v24
  %v193 = vunpack.c.l.b16 %v25
  %v194 = vunpack.c.l.b16 %v26
  %v195 = vunpack.c.l.b16 %v27
  %v196 = vunpack.c.l.b16 %v28
  %v197 = vunpack.c.l.b16 %v29
  %v198 = vunpack.c.l.b16 %v30
  %v199 = vunpack.c.l.b16 %v31
  %v200 = vunpack.c.l.b16 %v32
  %v201 = vunpack.c.l.b16 %v33
  %v202 = vunpack.c.l.b16 %v34
  %v203 = vunpack.c.l.b16 %v35
  %v204 = vunpack.c.l.b16 %v36
  %v205 = vunpack.c.l.b16 %v37
  %v206 = vunpack.c.l.b16 %v38
  %v207 = vunpack.c.l.b16 %v39
  %v208 = vunpack.c.l.b16 %v40
  %v209 = vunpack.c.l.b16 %v41
  %v210 = vunpack.c.l.b16 %v42
  %v211 = vunpack.c.l.b16 %v43
  %v212 = vunpack.c.l.b16 %v44
  %v213 = vunpack.c.l.b16 %v45
  %v214 = vunpack.c.l.b16 %v46
  %v215 = vunpack.c.l.b16 %v47
  %v216 = vunpack.c.l.b16 %v48
  %v217 = vunpack.c.l.b16 %v49
  %v218 = vunpack.c.l.b16 %v50
  %v219 = vunpack.c.l.b16 %v51
  %v220 = vunpack.c.l.b16 %v52
  %v221 = vunpack.c.l.b16 %v53
  %v222 = vunpack.c.l.b16 %v54
  %v223 = vunpack.c.l.b16 %v55
  %v224 = vunpack.c.l.b16 %v56
  %v225 = vunpack.c.l.b16 %v57
  %v226 = vunpack.c.l.b16 %v58
  %v227 = vunpack.c.l.b16 %v59
  %v228 = vunpack.c.l.b16 %v60
  %v229 = vunpack.c.l.b16 %v61
  %v230 = vunpack.c.l.b16 %v62
  %v231 = vunpack.c.l.b16 %v63
  %v232 = vunpack.c.l.b16 %v64
  %v233 = vunpack.c.l.b16 %v65
  %v234 = vunpack.c.l.b16 %v66
  %v235 = vunpack.c.l.b16 %v67
  %v236 = vunpack.c.l.b16 %v68
  %v237 = vunpack.c.l.b16 %v69
  %v238 = vunpack.c.l.b16 %v70
  %v239 = vunpack.c.l.b16 %v71
  %v240 = vunpack.c.l.b16 %v72
  %v241 = vunpack.c.l.b16 %v73
  %v242 = vunpack.c.l.b16 %v74
  %v243 = vunpack.c.l.b16 %v75
  %v244 = vunpack.c.l.b16 %v76
  %v245 = vunpack.c.l.b16 %v77
  %v246 = vunpack.c.l.b16 %v78
  %v247 = vunpack.c.l.b16 %v79
  %v248 = vunpack.c.l.b16 %v80
  %v249 = vunpack.c.l.b16 %v81
  %v250 = vunpack.c.l.b16 %v82
  %v251 = vunpack.c.l.b16 %v83
  %v252 = vunpack.c.l.b16 %v84
  %v253 = vunpack.c.l.b16 %v85
  %v254 = vpack.c.b16 %v191, %v190
  %v255 = vpack.c.b16 %v193, %v192
  %v256 = vpack.c.b16 %v195, %v194
  %v257 = vpack.c.b16 %v197, %v196
  %v258 = vpack.c.b16 %v199, %v198
  %v259 = vpack.c.b16 %v201, %v200
  %v260 = vpack.c.b16 %v203, %v202
  %v261 = vpack.c.b16 %v205, %v204
  %v262 = vpack.c.b16 %v207, %v206
  %v263 = vpack.c.b16 %v209, %v208
  %v264 = vpack.c.b16 %v211, %v210
  %v265 = vpack.c.b16 %v213, %v212
  %v266 = vpack.c.b16 %v215, %v214
  %v267 = vpack.c.b16 %v217, %v216
  %v268 = vpack.c.b16 %v219, %v218
  %v269 = vpack.c.b16 %v221, %v220
  %v270 = vpack.c.b16 %v223, %v222
  %v271 = vpack.c.b16 %v225, %v224
  %v272 = vpack.c.b16 %v227, %v226
  %v273 = vpack.c.b16 %v229, %v228
  %v274 = vpack.c.b16 %v231, %v230
  %v275 = vpack.c.b16 %v233, %v232
  %v276 = vpack.c.b16 %v235, %v234
  %v277 = vpack.c.b16 %v237, %v236
  %v278 = vpack.c.b16 %v239, %v238
  %v279 = vpack.c.b16 %v241, %v240
  %v280 = vpack.c.b16 %v243, %v242
  %v281 = vpack.c.b16 %v245, %v244
  %v282 = vpack.c.b16 %v247, %v246
  %v283 = vpack.c.b16 %v249, %v248
  %v284 = vpack.c.b16 %v251, %v250
  %v285 = vpack.c.b16 %v253, %v252
  %318 = vmatpush.bf16.msra.mxu0 %v261
  %319 = vmatpush.bf16.msra.mxu0 %v260
  %320 = vmatpush.bf16.msra.mxu0 %v259
  %321 = vmatpush.bf16.msra.mxu0 %v258
  %322 = vmatpush.bf16.msra.mxu0 %v257
  %323 = vmatpush.bf16.msra.mxu0 %v256
  %324 = vmatpush.bf16.msra.mxu0 %v255
  %325 = vmatpush.bf16.msra.mxu0 %v254
  %326 = vmatmul.bf16.gmra.mxu0 %v110
  %v327 = vpop.f32.mrf.mxu0
  %v328 = vadd.f32 0.0, %v327
  %v329 = vpop.f32.mrf.mxu0
  %v330 = vadd.f32 0.0, %v329
  %331 = vmatmul.bf16.gmra.mxu0 %v114
  %v332 = vpop.f32.mrf.mxu0
  %v333 = vadd.f32 0.0, %v332
  %v334 = vpop.f32.mrf.mxu0
  %v335 = vadd.f32 0.0, %v334
  %336 = vdwg.mxu0
  %337 = vmatpush.bf16.msra.mxu0 %v269
  %338 = vmatpush.bf16.msra.mxu0 %v268
  %339 = vmatpush.bf16.msra.mxu0 %v267
  %340 = vmatpush.bf16.msra.mxu0 %v266
  %341 = vmatpush.bf16.msra.mxu0 %v265
  %342 = vmatpush.bf16.msra.mxu0 %v264
  %343 = vmatpush.bf16.msra.mxu0 %v263
  %344 = vmatpush.bf16.msra.mxu0 %v262
  %345 = vmatmul.bf16.gmra.mxu0 %v111
  %v346 = vpop.f32.mrf.mxu0
  %v347 = vadd.f32 %v328, %v346
  %v348 = vpop.f32.mrf.mxu0
  %v349 = vadd.f32 %v330, %v348
  %350 = vmatmul.bf16.gmra.mxu0 %v115
  %v351 = vpop.f32.mrf.mxu0
  %v352 = vadd.f32 %v333, %v351
  %v353 = vpop.f32.mrf.mxu0
  %v354 = vadd.f32 %v335, %v353
  %355 = vdwg.mxu0
  %356 = vmatpush.bf16.msra.mxu0 %v277
  %357 = vmatpush.bf16.msra.mxu0 %v276
  %358 = vmatpush.bf16.msra.mxu0 %v275
  %359 = vmatpush.bf16.msra.mxu0 %v274
  %360 = vmatpush.bf16.msra.mxu0 %v273
  %361 = vmatpush.bf16.msra.mxu0 %v272
  %362 = vmatpush.bf16.msra.mxu0 %v271
  %363 = vmatpush.bf16.msra.mxu0 %v270
  %364 = vmatmul.bf16.gmra.mxu0 %v112
  %v365 = vpop.f32.mrf.mxu0
  %v366 = vadd.f32 %v347, %v365
  %v367 = vpop.f32.mrf.mxu0
  %v368 = vadd.f32 %v349, %v367
  %369 = vmatmul.bf16.gmra.mxu0 %v116
  %v370 = vpop.f32.mrf.mxu0
  %v371 = vadd.f32 %v352, %v370
  %v372 = vpop.f32.mrf.mxu0
  %v373 = vadd.f32 %v354, %v372
  %374 = vdwg.mxu0
  %375 = vmatpush.bf16.msra.mxu0 %v285
  %376 = vmatpush.bf16.msra.mxu0 %v284
  %377 = vmatpush.bf16.msra.mxu0 %v283
  %378 = vmatpush.bf16.msra.mxu0 %v282
  %379 = vmatpush.bf16.msra.mxu0 %v281
  %380 = vmatpush.bf16.msra.mxu0 %v280
  %381 = vmatpush.bf16.msra.mxu0 %v279
  %382 = vmatpush.bf16.msra.mxu0 %v278
  %383 = vmatmul.bf16.gmra.mxu0 %v113
  %v384 = vpop.f32.mrf.mxu0
  %v385 = vadd.f32 %v366, %v384
  %v386 = vpop.f32.mrf.mxu0
  %v387 = vadd.f32 %v368, %v386
  %388 = vmatmul.bf16.gmra.mxu0 %v117
  %v389 = vpop.f32.mrf.mxu0
  %v390 = vadd.f32 %v371, %v389
  %v391 = vpop.f32.mrf.mxu0
  %v392 = vadd.f32 %v373, %v391
  %393 = vdwg.mxu0
  %394 = vst [vmem:[%s2] sm:$0xff] %v385
  %395 = vst [vmem:[%s2 + $0x8] sm:$0xff] %v387
  %396 = vst [vmem:[%s2 + $0x10] sm:$0xff] %v390
  %397 = vst [vmem:[%s2 + $0x18] sm:$0xff] %v392
  %v398 = vadd.f32 %v385, %v387
  %v399 = vadd.f32 %v398, %v390
  %v400 = vadd.f32 %v399, %v392
  %v401 = vrot.slane %v400, 4
  %v402 = vadd.f32 %v400, %v401
  %v403 = vrot.slane %v402, 2
  %v404 = vadd.f32 %v402, %v403
  %v405 = vrot.slane %v404, 1
  %v406 = vadd.f32 %v404, %v405
  %v407 = vmul.f32 %v385, %v385
  %v408 = vmul.f32 %v387, %v387
  %v409 = vmul.f32 %v390, %v390
  %v410 = vmul.f32 %v392, %v392
  %v411 = vadd.f32 %v407, %v408
  %v412 = vadd.f32 %v411, %v409
  %v413 = vadd.f32 %v412, %v410
  %v414 = vrot.slane %v413, 4
  %v415 = vadd.f32 %v413, %v414
  %v416 = vrot.slane %v415, 2
  %v417 = vadd.f32 %v415, %v416
  %v418 = vrot.slane %v417, 1
  %v419 = vadd.f32 %v417, %v418
  %420 = vst [vmem:[%s3] sm:$0xff] %v406
  %421 = vst [vmem:[%s4] sm:$0xff] %v419
  // Predicated region
  $region10: #{discriminator_forward.11} parent=0 // pred_check
    _
  $region11: #{discriminator_forward.11} parent=0 // pred_check_branch
    %423 = sbr.rel (0) target = $region13
  $region12: #{discriminator_forward.11} parent=0 // pred_region
    _
  $region13: #{discriminator_forward.11} parent=0 // pred_fallthru
    _
  // Predicated region
  $region14: #{discriminator_forward.11} parent=0 // pred_check
    _
  $region15: #{discriminator_forward.11} parent=0 // pred_check_branch
    %425 = sbr.rel (0) target = $region17
  $region16: #{discriminator_forward.11} parent=0 // pred_region
    _
  $region17: #{discriminator_forward.11} parent=0 // pred_fallthru
    _
  // Predicated region
  $region18: #{discriminator_forward.11} parent=0 // pred_check
    _
  $region19: #{discriminator_forward.11} parent=0 // pred_check_branch
    %427 = sbr.rel (0) target = $region21
  $region20: #{discriminator_forward.11} parent=0 // pred_region
    _
  $region21: #{discriminator_forward.11} parent=0 // pred_fallthru
    _
  // Predicated region
  $region22: #{discriminator_forward.11} parent=0 // pred_check
    _
  $region23: #{discriminator_forward.11} parent=0 // pred_check_branch
    %429 = sbr.rel (0) target = $region25
  $region24: #{discriminator_forward.11} parent=0 // pred_region
    _
  $region25: #{discriminator_forward.11} parent=0 // pred_fallthru
    _
  // Predicated region
  $region26: #{discriminator_forward.11} parent=0 // pred_check
    _
  $region27: #{discriminator_forward.11} parent=0 // pred_check_branch
    %431 = sbr.rel (0) target = $region29
  $region28: #{discriminator_forward.11} parent=0 // pred_region
    _
  $region29: #{discriminator_forward.11} parent=0 // pred_fallthru
    _
  // Predicated region
  $region30: #{discriminator_forward.11} parent=0 // pred_check
    _
  $region31: #{discriminator_forward.11} parent=0 // pred_check_branch
    %433 = sbr.rel (0) target = $region33
  $region32: #{discriminator_forward.11} parent=0 // pred_region
    _
  $region33: #{discriminator_forward.11} parent=0 // pred_fallthru
    _

// kernel: discriminator_forward.14
$region0: #{discriminator_forward.14}
  #allocation0 [shape = 'u32[]', space=smem, size = 0x4, offset = 0x4, fixed_abs, tag = 'smem constant byte address 0x4 - core index']
  #allocation1 [shape = 'u32[72,128]{1,0:T(1,128)}', space=vmem, size = 0x9000, scoped, tag = 'internal scratch']
  %s0 = inlined_call_operand.vmem [shape: f32[16,128], index: 0, kind: input, shape index: {}]
  %s1 = inlined_call_operand.vmem [shape: f32[1,128], index: 1, kind: input, shape index: {}]
  %s2 = inlined_call_operand.vmem [shape: f32[1,128], index: 2, kind: input, shape index: {}]
  %s3 = inlined_call_operand.vmem [shape: bf16[16,128], index: 3, kind: output, shape index: {}]
  %s4 = sld [smem:[#allocation0]]
  $region22: #{discriminator_forward.14} parent=0
    _
  %s6 = ssub.s32 1, %s4
  %s7 = scalar_select 0, %s6, %s4
  // Predicated region
  $region2: #{discriminator_forward.14} parent=0 // pred_check
    _
  $region3: #{discriminator_forward.14} parent=0 // pred_check_branch
    %9 = sbr.rel (0) target = $region5
  $region4: #{discriminator_forward.14} parent=0 // pred_region
    _
  $region5: #{discriminator_forward.14} parent=0 // pred_fallthru
    _
  // Predicated region
  $region6: #{discriminator_forward.14} parent=0 // pred_check
    _
  $region7: #{discriminator_forward.14} parent=0 // pred_check_branch
    %11 = sbr.rel (0) target = $region9
  $region8: #{discriminator_forward.14} parent=0 // pred_region
    _
  $region9: #{discriminator_forward.14} parent=0 // pred_fallthru
    _
  // Predicated region
  $region10: #{discriminator_forward.14} parent=0 // pred_check
    _
  $region11: #{discriminator_forward.14} parent=0 // pred_check_branch
    %13 = sbr.rel (0) target = $region13
  $region12: #{discriminator_forward.14} parent=0 // pred_region
    _
  $region13: #{discriminator_forward.14} parent=0 // pred_fallthru
    _
  %v14 = vld [vmem:[%s0] sm:$0xff]
  %v15 = vld [vmem:[%s0 + $0x8] sm:$0xff]
  %v16 = vld [vmem:[%s1] sm:$0x1]
  %v18 = vperm.slane %v16, 0
  %v20 = vmul.f32 %v14, %v18
  %v21 = vmul.f32 %v15, %v18
  %v22 = vld [vmem:[%s2] sm:$0x1]
  %v24 = vperm.slane %v22, 0
  %v26 = vadd.f32 %v20, %v24
  %v27 = vadd.f32 %v21, %v24
  %vm28 = vcmp.gt.f32.partialorder %v26, 0.0
  %vm29 = vcmp.gt.f32.partialorder %v27, 0.0
  %v30 = vmul.f32 %v26, 0.2
  %v31 = vmul.f32 %v27, 0.2
  %v32 = vsel %vm28, %v26, %v30
  %v33 = vsel %vm29, %v27, %v31
  %v34 = vpack.c.bf16 %v32, %v32
  %v35 = vpack.c.bf16 %v33, %v33
  %36 = vst [vmem:[%s3] sm:$0xf] %v34
  %37 = vst [vmem:[%s3 + $0x4] sm:$0xf] %v35
  // Predicated region
  $region14: #{discriminator_forward.14} parent=0 // pred_check
    _
  $region15: #{discriminator_forward.14} parent=0 // pred_check_branch
    %39 = sbr.rel (0) target = $region17
  $region16: #{discriminator_forward.14} parent=0 // pred_region
    _
  $region17: #{discriminator_forward.14} parent=0 // pred_fallthru
    _
  // Predicated region
  $region18: #{discriminator_forward.14} parent=0 // pred_check
    _
  $region19: #{discriminator_forward.14} parent=0 // pred_check_branch
    %41 = sbr.rel (0) target = $region21
  $region20: #{discriminator_forward.14} parent=0 // pred_region
    _
  $region21: #{discriminator_forward.14} parent=0 // pred_fallthru
    _

// kernel: discriminator_forward.13
$region0: #{discriminator_forward.13}
  #allocation0 [shape = 'u32[]', space=smem, size = 0x4, offset = 0x4, fixed_abs, tag = 'smem constant byte address 0x4 - core index']
  #allocation1 [shape = 'u32[72,128]{1,0:T(1,128)}', space=vmem, size = 0x9000, scoped, tag = 'internal scratch']
  %s0 = inlined_call_operand.vmem [shape: bf16[16,1024], index: 0, kind: input, shape index: {}]
  %s1 = inlined_call_operand.vmem [shape: bf16[1024,128], index: 1, kind: input, shape index: {}]
  %s2 = inlined_call_operand.vmem [shape: f32[16,128], index: 2, kind: output, shape index: {0}]
  %s3 = inlined_call_operand.vmem [shape: f32[1,8,128], index: 3, kind: output, shape index: {1}]
  %s4 = inlined_call_operand.vmem [shape: f32[1,8,128], index: 4, kind: output, shape index: {2}]
  %5 = xla_tuple %s2, %s3, %s4
  %s6 = sld [smem:[#allocation0]]
  $region34: #{discriminator_forward.13} parent=0
    _
  %s8 = ssub.s32 1, %s6
  %s9 = scalar_select 0, %s8, %s6
  // Predicated region
  $region2: #{discriminator_forward.13} parent=0 // pred_check
    _
  $region3: #{discriminator_forward.13} parent=0 // pred_check_branch
    %11 = sbr.rel (0) target = $region5
  $region4: #{discriminator_forward.13} parent=0 // pred_region
    _
  $region5: #{discriminator_forward.13} parent=0 // pred_fallthru
    _
  // Predicated region
  $region6: #{discriminator_forward.13} parent=0 // pred_check
    _
  $region7: #{discriminator_forward.13} parent=0 // pred_check_branch
    %13 = sbr.rel (0) target = $region9
  $region8: #{discriminator_forward.13} parent=0 // pred_region
    _
  $region9: #{discriminator_forward.13} parent=0 // pred_fallthru
    _
  %v14 = vld [vmem:[%s0] sm:$0xff]
  %v15 = vld [vmem:[%s0 + $0x8] sm:$0xff]
  %v16 = vld [vmem:[%s0 + $0x10] sm:$0xff]
  %v17 = vld [vmem:[%s0 + $0x18] sm:$0xff]
  %v18 = vld [vmem:[%s0 + $0x20] sm:$0xff]
  %v19 = vld [vmem:[%s0 + $0x28] sm:$0xff]
  %v20 = vld [vmem:[%s0 + $0x30] sm:$0xff]
  %v21 = vld [vmem:[%s0 + $0x38] sm:$0xff]
  %v22 = vld [vmem:[%s1] sm:$0xf]
  %v23 = vld [vmem:[%s1 + $0x4] sm:$0xf]
  %v24 = vld [vmem:[%s1 + $0x8] sm:$0xf]
  %v25 = vld [vmem:[%s1 + $0xc] sm:$0xf]
  %v26 = vld [vmem:[%s1 + $0x10] sm:$0xf]
  %v27 = vld [vmem:[%s1 + $0x14] sm:$0xf]
  %v28 = vld [vmem:[%s1 + $0x18] sm:$0xf]
  %v29 = vld [vmem:[%s1 + $0x1c] sm:$0xf]
  %v30 = vld [vmem:[%s1 + $0x20] sm:$0xf]
  %v31 = vld [vmem:[%s1 + $0x24] sm:$0xf]
  %v32 = vld [vmem:[%s1 + $0x28] sm:$0xf]
  %v33 = vld [vmem:[%s1 + $0x2c] sm:$0xf]
  %v34 = vld [vmem:[%s1 + $0x30] sm:$0xf]
  %v35 = vld [vmem:[%s1 + $0x34] sm:$0xf]
  %v36 = vld [vmem:[%s1 + $0x38] sm:$0xf]
  %v37 = vld [vmem:[%s1 + $0x3c] sm:$0xf]
  %v38 = vld [vmem:[%s1 + $0x40] sm:$0xf]
  %v39 = vld [vmem:[%s1 + $0x44] sm:$0xf]
  %v40 = vld [vmem:[%s1 + $0x48] sm:$0xf]
  %v41 = vld [vmem:[%s1 + $0x4c] sm:$0xf]
  %v42 = vld [vmem:[%s1 + $0x50] sm:$0xf]
  %v43 = vld [vmem:[%s1 + $0x54] sm:$0xf]
  %v44 = vld [vmem:[%s1 + $0x58] sm:$0xf]
  %v45 = vld [vmem:[%s1 + $0x5c] sm:$0xf]
  %v46 = vld [vmem:[%s1 + $0x60] sm:$0xf]
  %v47 = vld [vmem:[%s1 + $0x64] sm:$0xf]
  %v48 = vld [vmem:[%s1 + $0x68] sm:$0xf]
  %v49 = vld [vmem:[%s1 + $0x6c] sm:$0xf]
  %v50 = vld [vmem:[%s1 + $0x70] sm:$0xf]
  %v51 = vld [vmem:[%s1 + $0x74] sm:$0xf]
  %v52 = vld [vmem:[%s1 + $0x78] sm:$0xf]
  %v53 = vld [vmem:[%s1 + $0x7c] sm:$0xf]
  %v54 = vld [vmem:[%s1 + $0x80] sm:$0xf]
  %v55 = vld [vmem:[%s1 + $0x84] sm:$0xf]
  %v56 = vld [vmem:[%s1 + $0x88] sm:$0xf]
  %v57 = vld [vmem:[%s1 + $0x8c] sm:$0xf]
  %v58 = vld [vmem:[%s1 + $0x90] sm:$0xf]
  %v59 = vld [vmem:[%s1 + $0x94] sm:$0xf]
  %v60 = vld [vmem:[%s1 + $0x98] sm:$0xf]
  %v61 = vld [vmem:[%s1 + $0x9c] sm:$0xf]
  %v62 = vld [vmem:[%s1 + $0xa0] sm:$0xf]
  %v63 = vld [vmem:[%s1 + $0xa4] sm:$0xf]
  %v64 = vld [vmem:[%s1 + $0xa8] sm:$0xf]
  %v65 = vld [vmem:[%s1 + $0xac] sm:$0xf]
  %v66 = vld [vmem:[%s1 + $0xb0] sm:$0xf]
  %v67 = vld [vmem:[%s1 + $0xb4] sm:$0xf]
  %v68 = vld [vmem:[%s1 + $0xb8] sm:$0xf]
  %v69 = vld [vmem:[%s1 + $0xbc] sm:$0xf]
  %v70 = vld [vmem:[%s1 + $0xc0] sm:$0xf]
  %v71 = vld [vmem:[%s1 + $0xc4] sm:$0xf]
  %v72 = vld [vmem:[%s1 + $0xc8] sm:$0xf]
  %v73 = vld [vmem:[%s1 + $0xcc] sm:$0xf]
  %v74 = vld [vmem:[%s1 + $0xd0] sm:$0xf]
  %v75 = vld [vmem:[%s1 + $0xd4] sm:$0xf]
  %v76 = vld [vmem:[%s1 + $0xd8] sm:$0xf]
  %v77 = vld [vmem:[%s1 + $0xdc] sm:$0xf]
  %v78 = vld [vmem:[%s1 + $0xe0] sm:$0xf]
  %v79 = vld [vmem:[%s1 + $0xe4] sm:$0xf]
  %v80 = vld [vmem:[%s1 + $0xe8] sm:$0xf]
  %v81 = vld [vmem:[%s1 + $0xec] sm:$0xf]
  %v82 = vld [vmem:[%s1 + $0xf0] sm:$0xf]
  %v83 = vld [vmem:[%s1 + $0xf4] sm:$0xf]
  %v84 = vld [vmem:[%s1 + $0xf8] sm:$0xf]
  %v85 = vld [vmem:[%s1 + $0xfc] sm:$0xf]
  %v86 = vld [vmem:[%s1 + $0x100] sm:$0xf]
  %v87 = vld [vmem:[%s1 + $0x104] sm:$0xf]
  %v88 = vld [vmem:[%s1 + $0x108] sm:$0xf]
  %v89 = vld [vmem:[%s1 + $0x10c] sm:$0xf]
  %v90 = vld [vmem:[%s1 + $0x110] sm:$0xf]
  %v91 = vld [vmem:[%s1 + $0x114] sm:$0xf]
  %v92 = vld [vmem:[%s1 + $0x118] sm:$0xf]
  %v93 = vld [vmem:[%s1 + $0x11c] sm:$0xf]
  %v94 = vld [vmem:[%s1 + $0x120] sm:$0xf]
  %v95 = vld [vmem:[%s1 + $0x124] sm:$0xf]
  %v96 = vld [vmem:[%s1 + $0x128] sm:$0xf]
  %v97 = vld [vmem:[%s1 + $0x12c] sm:$0xf]
  %v98 = vld [vmem:[%s1 + $0x130] sm:$0xf]
  %v99 = vld [vmem:[%s1 + $0x134] sm:$0xf]
  %v100 = vld [vmem:[%s1 + $0x138] sm:$0xf]
  %v101 = vld [vmem:[%s1 + $0x13c] sm:$0xf]
  %v102 = vld [vmem:[%s1 + $0x140] sm:$0xf]
  %v103 = vld [vmem:[%s1 + $0x144] sm:$0xf]
  %v104 = vld [vmem:[%s1 + $0x148] sm:$0xf]
  %v105 = vld [vmem:[%s1 + $0x14c] sm:$0xf]
  %v106 = vld [vmem:[%s1 + $0x150] sm:$0xf]
  %v107 = vld [vmem:[%s1 + $0x154] sm:$0xf]
  %v108 = vld [vmem:[%s1 + $0x158] sm:$0xf]
  %v109 = vld [vmem:[%s1 + $0x15c] sm:$0xf]
  %v110 = vld [vmem:[%s1 + $0x160] sm:$0xf]
  %v111 = vld [vmem:[%s1 + $0x164] sm:$0xf]
  %v112 = vld [vmem:[%s1 + $0x168] sm:$0xf]
  %v113 = vld [vmem:[%s1 + $0x16c] sm:$0xf]
  %v114 = vld [vmem:[%s1 + $0x170] sm:$0xf]
  %v115 = vld [vmem:[%s1 + $0x174] sm:$0xf]
  %v116 = vld [vmem:[%s1 + $0x178] sm:$0xf]
  %v117 = vld [vmem:[%s1 + $0x17c] sm:$0xf]
  %v118 = vld [vmem:[%s1 + $0x180] sm:$0xf]
  %v119 = vld [vmem:[%s1 + $0x184] sm:$0xf]
  %v120 = vld [vmem:[%s1 + $0x188] sm:$0xf]
  %v121 = vld [vmem:[%s1 + $0x18c] sm:$0xf]
  %v122 = vld [vmem:[%s1 + $0x190] sm:$0xf]
  %v123 = vld [vmem:[%s1 + $0x194] sm:$0xf]
  %v124 = vld [vmem:[%s1 + $0x198] sm:$0xf]
  %v125 = vld [vmem:[%s1 + $0x19c] sm:$0xf]
  %v126 = vld [vmem:[%s1 + $0x1a0] sm:$0xf]
  %v127 = vld [vmem:[%s1 + $0x1a4] sm:$0xf]
  %v128 = vld [vmem:[%s1 + $0x1a8] sm:$0xf]
  %v129 = vld [vmem:[%s1 + $0x1ac] sm:$0xf]
  %v130 = vld [vmem:[%s1 + $0x1b0] sm:$0xf]
  %v131 = vld [vmem:[%s1 + $0x1b4] sm:$0xf]
  %v132 = vld [vmem:[%s1 + $0x1b8] sm:$0xf]
  %v133 = vld [vmem:[%s1 + $0x1bc] sm:$0xf]
  %v134 = vld [vmem:[%s1 + $0x1c0] sm:$0xf]
  %v135 = vld [vmem:[%s1 + $0x1c4] sm:$0xf]
  %v136 = vld [vmem:[%s1 + $0x1c8] sm:$0xf]
  %v137 = vld [vmem:[%s1 + $0x1cc] sm:$0xf]
  %v138 = vld [vmem:[%s1 + $0x1d0] sm:$0xf]
  %v139 = vld [vmem:[%s1 + $0x1d4] sm:$0xf]
  %v140 = vld [vmem:[%s1 + $0x1d8] sm:$0xf]
  %v141 = vld [vmem:[%s1 + $0x1dc] sm:$0xf]
  %v142 = vld [vmem:[%s1 + $0x1e0] sm:$0xf]
  %v143 = vld [vmem:[%s1 + $0x1e4] sm:$0xf]
  %v144 = vld [vmem:[%s1 + $0x1e8] sm:$0xf]
  %v145 = vld [vmem:[%s1 + $0x1ec] sm:$0xf]
  %v146 = vld [vmem:[%s1 + $0x1f0] sm:$0xf]
  %v147 = vld [vmem:[%s1 + $0x1f4] sm:$0xf]
  %v148 = vld [vmem:[%s1 + $0x1f8] sm:$0xf]
  %v149 = vld [vmem:[%s1 + $0x1fc] sm:$0xf]
  %v158 = vunpack.c.l.b16 %v14
  %v159 = vunpack.c.h.b16 %v14
  %v160 = vunpack.c.l.b16 %v15
  %v161 = vunpack.c.h.b16 %v15
  %v162 = vunpack.c.l.b16 %v16
  %v163 = vunpack.c.h.b16 %v16
  %v164 = vunpack.c.l.b16 %v17
  %v165 = vunpack.c.h.b16 %v17
  %v166 = vunpack.c.l.b16 %v18
  %v167 = vunpack.c.h.b16 %v18
  %v168 = vunpack.c.l.b16 %v19
  %v169 = vunpack.c.h.b16 %v19
  %v170 = vunpack.c.l.b16 %v20
  %v171 = vunpack.c.h.b16 %v20
  %v172 = vunpack.c.l.b16 %v21
  %v173 = vunpack.c.h.b16 %v21
  %v174 = vpack.c.b16 %v166, %v158
  %v175 = vpack.c.b16 %v167, %v159
  %v176 = vpack.c.b16 %v168, %v160
  %v177 = vpack.c.b16 %v169, %v161
  %v178 = vpack.c.b16 %v170, %v162
  %v179 = vpack.c.b16 %v171, %v163
  %v180 = vpack.c.b16 %v172, %v164
  %v181 = vpack.c.b16 %v173, %v165
  %v318 = vunpack.c.l.b16 %v22
  %v319 = vunpack.c.l.b16 %v23
  %v320 = vunpack.c.l.b16 %v24
  %v321 = vunpack.c.l.b16 %v25
  %v322 = vunpack.c.l.b16 %v26
  %v323 = vunpack.c.l.b16 %v27
  %v324 = vunpack.c.l.b16 %v28
  %v325 = vunpack.c.l.b16 %v29
  %v326 = vunpack.c.l.b16 %v30
  %v327 = vunpack.c.l.b16 %v31
  %v328 = vunpack.c.l.b16 %v32
  %v329 = vunpack.c.l.b16 %v33
  %v330 = vunpack.c.l.b16 %v34
  %v331 = vunpack.c.l.b16 %v35
  %v332 = vunpack.c.l.b16 %v36
  %v333 = vunpack.c.l.b16 %v37
  %v334 = vunpack.c.l.b16 %v38
  %v335 = vunpack.c.l.b16 %v39
  %v336 = vunpack.c.l.b16 %v40
  %v337 = vunpack.c.l.b16 %v41
  %v338 = vunpack.c.l.b16 %v42
  %v339 = vunpack.c.l.b16 %v43
  %v340 = vunpack.c.l.b16 %v44
  %v341 = vunpack.c.l.b16 %v45
  %v342 = vunpack.c.l.b16 %v46
  %v343 = vunpack.c.l.b16 %v47
  %v344 = vunpack.c.l.b16 %v48
  %v345 = vunpack.c.l.b16 %v49
  %v346 = vunpack.c.l.b16 %v50
  %v347 = vunpack.c.l.b16 %v51
  %v348 = vunpack.c.l.b16 %v52
  %v349 = vunpack.c.l.b16 %v53
  %v350 = vunpack.c.l.b16 %v54
  %v351 = vunpack.c.l.b16 %v55
  %v352 = vunpack.c.l.b16 %v56
  %v353 = vunpack.c.l.b16 %v57
  %v354 = vunpack.c.l.b16 %v58
  %v355 = vunpack.c.l.b16 %v59
  %v356 = vunpack.c.l.b16 %v60
  %v357 = vunpack.c.l.b16 %v61
  %v358 = vunpack.c.l.b16 %v62
  %v359 = vunpack.c.l.b16 %v63
  %v360 = vunpack.c.l.b16 %v64
  %v361 = vunpack.c.l.b16 %v65
  %v362 = vunpack.c.l.b16 %v66
  %v363 = vunpack.c.l.b16 %v67
  %v364 = vunpack.c.l.b16 %v68
  %v365 = vunpack.c.l.b16 %v69
  %v366 = vunpack.c.l.b16 %v70
  %v367 = vunpack.c.l.b16 %v71
  %v368 = vunpack.c.l.b16 %v72
  %v369 = vunpack.c.l.b16 %v73
  %v370 = vunpack.c.l.b16 %v74
  %v371 = vunpack.c.l.b16 %v75
  %v372 = vunpack.c.l.b16 %v76
  %v373 = vunpack.c.l.b16 %v77
  %v374 = vunpack.c.l.b16 %v78
  %v375 = vunpack.c.l.b16 %v79
  %v376 = vunpack.c.l.b16 %v80
  %v377 = vunpack.c.l.b16 %v81
  %v378 = vunpack.c.l.b16 %v82
  %v379 = vunpack.c.l.b16 %v83
  %v380 = vunpack.c.l.b16 %v84
  %v381 = vunpack.c.l.b16 %v85
  %v382 = vunpack.c.l.b16 %v86
  %v383 = vunpack.c.l.b16 %v87
  %v384 = vunpack.c.l.b16 %v88
  %v385 = vunpack.c.l.b16 %v89
  %v386 = vunpack.c.l.b16 %v90
  %v387 = vunpack.c.l.b16 %v91
  %v388 = vunpack.c.l.b16 %v92
  %v389 = vunpack.c.l.b16 %v93
  %v390 = vunpack.c.l.b16 %v94
  %v391 = vunpack.c.l.b16 %v95
  %v392 = vunpack.c.l.b16 %v96
  %v393 = vunpack.c.l.b16 %v97
  %v394 = vunpack.c.l.b16 %v98
  %v395 = vunpack.c.l.b16 %v99
  %v396 = vunpack.c.l.b16 %v100
  %v397 = vunpack.c.l.b16 %v101
  %v398 = vunpack.c.l.b16 %v102
  %v399 = vunpack.c.l.b16 %v103
  %v400 = vunpack.c.l.b16 %v104
  %v401 = vunpack.c.l.b16 %v105
  %v402 = vunpack.c.l.b16 %v106
  %v403 = vunpack.c.l.b16 %v107
  %v404 = vunpack.c.l.b16 %v108
  %v405 = vunpack.c.l.b16 %v109
  %v406 = vunpack.c.l.b16 %v110
  %v407 = vunpack.c.l.b16 %v111
  %v408 = vunpack.c.l.b16 %v112
  %v409 = vunpack.c.l.b16 %v113
  %v410 = vunpack.c.l.b16 %v114
  %v411 = vunpack.c.l.b16 %v115
  %v412 = vunpack.c.l.b16 %v116
  %v413 = vunpack.c.l.b16 %v117
  %v414 = vunpack.c.l.b16 %v118
  %v415 = vunpack.c.l.b16 %v119
  %v416 = vunpack.c.l.b16 %v120
  %v417 = vunpack.c.l.b16 %v121
  %v418 = vunpack.c.l.b16 %v122
  %v419 = vunpack.c.l.b16 %v123
  %v420 = vunpack.c.l.b16 %v124
  %v421 = vunpack.c.l.b16 %v125
  %v422 = vunpack.c.l.b16 %v126
  %v423 = vunpack.c.l.b16 %v127
  %v424 = vunpack.c.l.b16 %v128
  %v425 = vunpack.c.l.b16 %v129
  %v426 = vunpack.c.l.b16 %v130
  %v427 = vunpack.c.l.b16 %v131
  %v428 = vunpack.c.l.b16 %v132
  %v429 = vunpack.c.l.b16 %v133
  %v430 = vunpack.c.l.b16 %v134
  %v431 = vunpack.c.l.b16 %v135
  %v432 = vunpack.c.l.b16 %v136
  %v433 = vunpack.c.l.b16 %v137
  %v434 = vunpack.c.l.b16 %v138
  %v435 = vunpack.c.l.b16 %v139
  %v436 = vunpack.c.l.b16 %v140
  %v437 = vunpack.c.l.b16 %v141
  %v438 = vunpack.c.l.b16 %v142
  %v439 = vunpack.c.l.b16 %v143
  %v440 = vunpack.c.l.b16 %v144
  %v441 = vunpack.c.l.b16 %v145
  %v442 = vunpack.c.l.b16 %v146
  %v443 = vunpack.c.l.b16 %v147
  %v444 = vunpack.c.l.b16 %v148
  %v445 = vunpack.c.l.b16 %v149
  %v446 = vpack.c.b16 %v319, %v318
  %v447 = vpack.c.b16 %v321, %v320
  %v448 = vpack.c.b16 %v323, %v322
  %v449 = vpack.c.b16 %v325, %v324
  %v450 = vpack.c.b16 %v327, %v326
  %v451 = vpack.c.b16 %v329, %v328
  %v452 = vpack.c.b16 %v331, %v330
  %v453 = vpack.c.b16 %v333, %v332
  %v454 = vpack.c.b16 %v335, %v334
  %v455 = vpack.c.b16 %v337, %v336
  %v456 = vpack.c.b16 %v339, %v338
  %v457 = vpack.c.b16 %v341, %v340
  %v458 = vpack.c.b16 %v343, %v342
  %v459 = vpack.c.b16 %v345, %v344
  %v460 = vpack.c.b16 %v347, %v346
  %v461 = vpack.c.b16 %v349, %v348
  %v462 = vpack.c.b16 %v351, %v350
  %v463 = vpack.c.b16 %v353, %v352
  %v464 = vpack.c.b16 %v355, %v354
  %v465 = vpack.c.b16 %v357, %v356
  %v466 = vpack.c.b16 %v359, %v358
  %v467 = vpack.c.b16 %v361, %v360
  %v468 = vpack.c.b16 %v363, %v362
  %v469 = vpack.c.b16 %v365, %v364
  %v470 = vpack.c.b16 %v367, %v366
  %v471 = vpack.c.b16 %v369, %v368
  %v472 = vpack.c.b16 %v371, %v370
  %v473 = vpack.c.b16 %v373, %v372
  %v474 = vpack.c.b16 %v375, %v374
  %v475 = vpack.c.b16 %v377, %v376
  %v476 = vpack.c.b16 %v379, %v378
  %v477 = vpack.c.b16 %v381, %v380
  %v478 = vpack.c.b16 %v383, %v382
  %v479 = vpack.c.b16 %v385, %v384
  %v480 = vpack.c.b16 %v387, %v386
  %v481 = vpack.c.b16 %v389, %v388
  %v482 = vpack.c.b16 %v391, %v390
  %v483 = vpack.c.b16 %v393, %v392
  %v484 = vpack.c.b16 %v395, %v394
  %v485 = vpack.c.b16 %v397, %v396
  %v486 = vpack.c.b16 %v399, %v398
  %v487 = vpack.c.b16 %v401, %v400
  %v488 = vpack.c.b16 %v403, %v402
  %v489 = vpack.c.b16 %v405, %v404
  %v490 = vpack.c.b16 %v407, %v406
  %v491 = vpack.c.b16 %v409, %v408
  %v492 = vpack.c.b16 %v411, %v410
  %v493 = vpack.c.b16 %v413, %v412
  %v494 = vpack.c.b16 %v415, %v414
  %v495 = vpack.c.b16 %v417, %v416
  %v496 = vpack.c.b16 %v419, %v418
  %v497 = vpack.c.b16 %v421, %v420
  %v498 = vpack.c.b16 %v423, %v422
  %v499 = vpack.c.b16 %v425, %v424
  %v500 = vpack.c.b16 %v427, %v426
  %v501 = vpack.c.b16 %v429, %v428
  %v502 = vpack.c.b16 %v431, %v430
  %v503 = vpack.c.b16 %v433, %v432
  %v504 = vpack.c.b16 %v435, %v434
  %v505 = vpack.c.b16 %v437, %v436
  %v506 = vpack.c.b16 %v439, %v438
  %v507 = vpack.c.b16 %v441, %v440
  %v508 = vpack.c.b16 %v443, %v442
  %v509 = vpack.c.b16 %v445, %v444
  %574 = vmatpush.bf16.msra.mxu0 %v453
  %575 = vmatpush.bf16.msra.mxu0 %v452
  %576 = vmatpush.bf16.msra.mxu0 %v451
  %577 = vmatpush.bf16.msra.mxu0 %v450
  %578 = vmatpush.bf16.msra.mxu0 %v449
  %579 = vmatpush.bf16.msra.mxu0 %v448
  %580 = vmatpush.bf16.msra.mxu0 %v447
  %581 = vmatpush.bf16.msra.mxu0 %v446
  %582 = vmatmul.bf16.gmra.mxu0 %v174
  %v583 = vpop.f32.mrf.mxu0
  %v584 = vadd.f32 0.0, %v583
  %v585 = vpop.f32.mrf.mxu0
  %v586 = vadd.f32 0.0, %v585
  %587 = vdwg.mxu0
  %588 = vmatpush.bf16.msra.mxu0 %v461
  %589 = vmatpush.bf16.msra.mxu0 %v460
  %590 = vmatpush.bf16.msra.mxu0 %v459
  %591 = vmatpush.bf16.msra.mxu0 %v458
  %592 = vmatpush.bf16.msra.mxu0 %v457
  %593 = vmatpush.bf16.msra.mxu0 %v456
  %594 = vmatpush.bf16.msra.mxu0 %v455
  %595 = vmatpush.bf16.msra.mxu0 %v454
  %596 = vmatmul.bf16.gmra.mxu0 %v175
  %v597 = vpop.f32.mrf.mxu0
  %v598 = vadd.f32 %v584, %v597
  %v599 = vpop.f32.mrf.mxu0
  %v600 = vadd.f32 %v586, %v599
  %601 = vdwg.mxu0
  %602 = vmatpush.bf16.msra.mxu0 %v469
  %603 = vmatpush.bf16.msra.mxu0 %v468
  %604 = vmatpush.bf16.msra.mxu0 %v467
  %605 = vmatpush.bf16.msra.mxu0 %v466
  %606 = vmatpush.bf16.msra.mxu0 %v465
  %607 = vmatpush.bf16.msra.mxu0 %v464
  %608 = vmatpush.bf16.msra.mxu0 %v463
  %609 = vmatpush.bf16.msra.mxu0 %v462
  %610 = vmatmul.bf16.gmra.mxu0 %v176
  %v611 = vpop.f32.mrf.mxu0
  %v612 = vadd.f32 %v598, %v611
  %v613 = vpop.f32.mrf.mxu0
  %v614 = vadd.f32 %v600, %v613
  %615 = vdwg.mxu0
  %616 = vmatpush.bf16.msra.mxu0 %v477
  %617 = vmatpush.bf16.msra.mxu0 %v476
  %618 = vmatpush.bf16.msra.mxu0 %v475
  %619 = vmatpush.bf16.msra.mxu0 %v474
  %620 = vmatpush.bf16.msra.mxu0 %v473
  %621 = vmatpush.bf16.msra.mxu0 %v472
  %622 = vmatpush.bf16.msra.mxu0 %v471
  %623 = vmatpush.bf16.msra.mxu0 %v470
  %624 = vmatmul.bf16.gmra.mxu0 %v177
  %v625 = vpop.f32.mrf.mxu0
  %v626 = vadd.f32 %v612, %v625
  %v627 = vpop.f32.mrf.mxu0
  %v628 = vadd.f32 %v614, %v627
  %629 = vdwg.mxu0
  %630 = vmatpush.bf16.msra.mxu0 %v485
  %631 = vmatpush.bf16.msra.mxu0 %v484
  %632 = vmatpush.bf16.msra.mxu0 %v483
  %633 = vmatpush.bf16.msra.mxu0 %v482
  %634 = vmatpush.bf16.msra.mxu0 %v481
  %635 = vmatpush.bf16.msra.mxu0 %v480
  %636 = vmatpush.bf16.msra.mxu0 %v479
  %637 = vmatpush.bf16.msra.mxu0 %v478
  %638 = vmatmul.bf16.gmra.mxu0 %v178
  %v639 = vpop.f32.mrf.mxu0
  %v640 = vadd.f32 %v626, %v639
  %v641 = vpop.f32.mrf.mxu0
  %v642 = vadd.f32 %v628, %v641
  %643 = vdwg.mxu0
  %644 = vmatpush.bf16.msra.mxu0 %v493
  %645 = vmatpush.bf16.msra.mxu0 %v492
  %646 = vmatpush.bf16.msra.mxu0 %v491
  %647 = vmatpush.bf16.msra.mxu0 %v490
  %648 = vmatpush.bf16.msra.mxu0 %v489
  %649 = vmatpush.bf16.msra.mxu0 %v488
  %650 = vmatpush.bf16.msra.mxu0 %v487
  %651 = vmatpush.bf16.msra.mxu0 %v486
  %652 = vmatmul.bf16.gmra.mxu0 %v179
  %v653 = vpop.f32.mrf.mxu0
  %v654 = vadd.f32 %v640, %v653
  %v655 = vpop.f32.mrf.mxu0
  %v656 = vadd.f32 %v642, %v655
  %657 = vdwg.mxu0
  %658 = vmatpush.bf16.msra.mxu0 %v501
  %659 = vmatpush.bf16.msra.mxu0 %v500
  %660 = vmatpush.bf16.msra.mxu0 %v499
  %661 = vmatpush.bf16.msra.mxu0 %v498
  %662 = vmatpush.bf16.msra.mxu0 %v497
  %663 = vmatpush.bf16.msra.mxu0 %v496
  %664 = vmatpush.bf16.msra.mxu0 %v495
  %665 = vmatpush.bf16.msra.mxu0 %v494
  %666 = vmatmul.bf16.gmra.mxu0 %v180
  %v667 = vpop.f32.mrf.mxu0
  %v668 = vadd.f32 %v654, %v667
  %v669 = vpop.f32.mrf.mxu0
  %v670 = vadd.f32 %v656, %v669
  %671 = vdwg.mxu0
  %672 = vmatpush.bf16.msra.mxu0 %v509
  %673 = vmatpush.bf16.msra.mxu0 %v508
  %674 = vmatpush.bf16.msra.mxu0 %v507
  %675 = vmatpush.bf16.msra.mxu0 %v506
  %676 = vmatpush.bf16.msra.mxu0 %v505
  %677 = vmatpush.bf16.msra.mxu0 %v504
  %678 = vmatpush.bf16.msra.mxu0 %v503
  %679 = vmatpush.bf16.msra.mxu0 %v502
  %680 = vmatmul.bf16.gmra.mxu0 %v181
  %v681 = vpop.f32.mrf.mxu0
  %v682 = vadd.f32 %v668, %v681
  %v683 = vpop.f32.mrf.mxu0
  %v684 = vadd.f32 %v670, %v683
  %685 = vdwg.mxu0
  %686 = vst [vmem:[%s2] sm:$0xff] %v682
  %687 = vst [vmem:[%s2 + $0x8] sm:$0xff] %v684
  %v688 = vadd.f32 %v682, %v684
  %v689 = vrot.slane %v688, 4
  %v690 = vadd.f32 %v688, %v689
  %v691 = vrot.slane %v690, 2
  %v692 = vadd.f32 %v690, %v691
  %v693 = vrot.slane %v692, 1
  %v694 = vadd.f32 %v692, %v693
  %v695 = vmul.f32 %v682, %v682
  %v696 = vmul.f32 %v684, %v684
  %v697 = vadd.f32 %v695, %v696
  %v698 = vrot.slane %v697, 4
  %v699 = vadd.f32 %v697, %v698
  %v700 = vrot.slane %v699, 2
  %v701 = vadd.f32 %v699, %v700
  %v702 = vrot.slane %v701, 1
  %v703 = vadd.f32 %v701, %v702
  %704 = vst [vmem:[%s3] sm:$0xff] %v694
  %705 = vst [vmem:[%s4] sm:$0xff] %v703
  // Predicated region
  $region10: #{discriminator_forward.13} parent=0 // pred_check
    _
  $region11: #{discriminator_forward.13} parent=0 // pred_check_branch
    %707 = sbr.rel (0) target = $region13
  $region12: #{discriminator_forward.13} parent=0 // pred_region
    _
  $region13: #{discriminator_forward.13} parent=0 // pred_fallthru
    _
  // Predicated region
  $region14: #{discriminator_forward.13} parent=0 // pred_check
    _
  $region15: #{discriminator_forward.13} parent=0 // pred_check_branch
    %709 = sbr.rel (0) target = $region17
  $region16: #{discriminator_forward.13} parent=0 // pred_region
    _
  $region17: #{discriminator_forward.13} parent=0 // pred_fallthru
    _
  // Predicated region
  $region18: #{discriminator_forward.13} parent=0 // pred_check
    _
  $region19: #{discriminator_forward.13} parent=0 // pred_check_branch
    %711 = sbr.rel (0) target = $region21
  $region20: #{discriminator_forward.13} parent=0 // pred_region
    _
  $region21: #{discriminator_forward.13} parent=0 // pred_fallthru
    _
  // Predicated region
  $region22: #{discriminator_forward.13} parent=0 // pred_check
    _
  $region23: #{discriminator_forward.13} parent=0 // pred_check_branch
    %713 = sbr.rel (0) target = $region25
  $region24: #{discriminator_forward.13} parent=0 // pred_region
    _
  $region25: #{discriminator_forward.13} parent=0 // pred_fallthru
    _
  // Predicated region
  $region26: #{discriminator_forward.13} parent=0 // pred_check
    _
  $region27: #{discriminator_forward.13} parent=0 // pred_check_branch
    %715 = sbr.rel (0) target = $region29
  $region28: #{discriminator_forward.13} parent=0 // pred_region
    _
  $region29: #{discriminator_forward.13} parent=0 // pred_fallthru
    _
  // Predicated region
  $region30: #{discriminator_forward.13} parent=0 // pred_check
    _
  $region31: #{discriminator_forward.13} parent=0 // pred_check_branch
    %717 = sbr.rel (0) target = $region33
  $region32: #{discriminator_forward.13} parent=0 // pred_region
    _
  $region33: #{discriminator_forward.13} parent=0 // pred_fallthru
    _

// kernel: discriminator_forward.15
$region0: #{discriminator_forward.15}
  #allocation0 [shape = 'u32[]', space=smem, size = 0x4, offset = 0x4, fixed_abs, tag = 'smem constant byte address 0x4 - core index']
  #allocation1 [shape = 'u32[72,128]{1,0:T(1,128)}', space=vmem, size = 0x9000, scoped, tag = 'internal scratch']
  %s0 = inlined_call_operand.vmem [shape: bf16[16,512], index: 0, kind: input, shape index: {}]
  %s1 = inlined_call_operand.vmem [shape: bf16[512,128], index: 1, kind: input, shape index: {}]
  %s2 = inlined_call_operand.vmem [shape: f32[16,128], index: 2, kind: output, shape index: {}]
  %s3 = sld [smem:[#allocation0]]
  $region18: #{discriminator_forward.15} parent=0
    _
  %s5 = ssub.s32 1, %s3
  %s6 = scalar_select 0, %s5, %s3
  // Predicated region
  $region2: #{discriminator_forward.15} parent=0 // pred_check
    _
  $region3: #{discriminator_forward.15} parent=0 // pred_check_branch
    %8 = sbr.rel (0) target = $region5
  $region4: #{discriminator_forward.15} parent=0 // pred_region
    _
  $region5: #{discriminator_forward.15} parent=0 // pred_fallthru
    _
  // Predicated region
  $region6: #{discriminator_forward.15} parent=0 // pred_check
    _
  $region7: #{discriminator_forward.15} parent=0 // pred_check_branch
    %10 = sbr.rel (0) target = $region9
  $region8: #{discriminator_forward.15} parent=0 // pred_region
    _
  $region9: #{discriminator_forward.15} parent=0 // pred_fallthru
    _
  %v11 = vld [vmem:[%s0] sm:$0xff]
  %v12 = vld [vmem:[%s0 + $0x8] sm:$0xff]
  %v13 = vld [vmem:[%s0 + $0x10] sm:$0xff]
  %v14 = vld [vmem:[%s0 + $0x18] sm:$0xff]
  %v15 = vld [vmem:[%s1] sm:$0xf]
  %v16 = vld [vmem:[%s1 + $0x4] sm:$0xf]
  %v17 = vld [vmem:[%s1 + $0x8] sm:$0xf]
  %v18 = vld [vmem:[%s1 + $0xc] sm:$0xf]
  %v19 = vld [vmem:[%s1 + $0x10] sm:$0xf]
  %v20 = vld [vmem:[%s1 + $0x14] sm:$0xf]
  %v21 = vld [vmem:[%s1 + $0x18] sm:$0xf]
  %v22 = vld [vmem:[%s1 + $0x1c] sm:$0xf]
  %v23 = vld [vmem:[%s1 + $0x20] sm:$0xf]
  %v24 = vld [vmem:[%s1 + $0x24] sm:$0xf]
  %v25 = vld [vmem:[%s1 + $0x28] sm:$0xf]
  %v26 = vld [vmem:[%s1 + $0x2c] sm:$0xf]
  %v27 = vld [vmem:[%s1 + $0x30] sm:$0xf]
  %v28 = vld [vmem:[%s1 + $0x34] sm:$0xf]
  %v29 = vld [vmem:[%s1 + $0x38] sm:$0xf]
  %v30 = vld [vmem:[%s1 + $0x3c] sm:$0xf]
  %v31 = vld [vmem:[%s1 + $0x40] sm:$0xf]
  %v32 = vld [vmem:[%s1 + $0x44] sm:$0xf]
  %v33 = vld [vmem:[%s1 + $0x48] sm:$0xf]
  %v34 = vld [vmem:[%s1 + $0x4c] sm:$0xf]
  %v35 = vld [vmem:[%s1 + $0x50] sm:$0xf]
  %v36 = vld [vmem:[%s1 + $0x54] sm:$0xf]
  %v37 = vld [vmem:[%s1 + $0x58] sm:$0xf]
  %v38 = vld [vmem:[%s1 + $0x5c] sm:$0xf]
  %v39 = vld [vmem:[%s1 + $0x60] sm:$0xf]
  %v40 = vld [vmem:[%s1 + $0x64] sm:$0xf]
  %v41 = vld [vmem:[%s1 + $0x68] sm:$0xf]
  %v42 = vld [vmem:[%s1 + $0x6c] sm:$0xf]
  %v43 = vld [vmem:[%s1 + $0x70] sm:$0xf]
  %v44 = vld [vmem:[%s1 + $0x74] sm:$0xf]
  %v45 = vld [vmem:[%s1 + $0x78] sm:$0xf]
  %v46 = vld [vmem:[%s1 + $0x7c] sm:$0xf]
  %v47 = vld [vmem:[%s1 + $0x80] sm:$0xf]
  %v48 = vld [vmem:[%s1 + $0x84] sm:$0xf]
  %v49 = vld [vmem:[%s1 + $0x88] sm:$0xf]
  %v50 = vld [vmem:[%s1 + $0x8c] sm:$0xf]
  %v51 = vld [vmem:[%s1 + $0x90] sm:$0xf]
  %v52 = vld [vmem:[%s1 + $0x94] sm:$0xf]
  %v53 = vld [vmem:[%s1 + $0x98] sm:$0xf]
  %v54 = vld [vmem:[%s1 + $0x9c] sm:$0xf]
  %v55 = vld [vmem:[%s1 + $0xa0] sm:$0xf]
  %v56 = vld [vmem:[%s1 + $0xa4] sm:$0xf]
  %v57 = vld [vmem:[%s1 + $0xa8] sm:$0xf]
  %v58 = vld [vmem:[%s1 + $0xac] sm:$0xf]
  %v59 = vld [vmem:[%s1 + $0xb0] sm:$0xf]
  %v60 = vld [vmem:[%s1 + $0xb4] sm:$0xf]
  %v61 = vld [vmem:[%s1 + $0xb8] sm:$0xf]
  %v62 = vld [vmem:[%s1 + $0xbc] sm:$0xf]
  %v63 = vld [vmem:[%s1 + $0xc0] sm:$0xf]
  %v64 = vld [vmem:[%s1 + $0xc4] sm:$0xf]
  %v65 = vld [vmem:[%s1 + $0xc8] sm:$0xf]
  %v66 = vld [vmem:[%s1 + $0xcc] sm:$0xf]
  %v67 = vld [vmem:[%s1 + $0xd0] sm:$0xf]
  %v68 = vld [vmem:[%s1 + $0xd4] sm:$0xf]
  %v69 = vld [vmem:[%s1 + $0xd8] sm:$0xf]
  %v70 = vld [vmem:[%s1 + $0xdc] sm:$0xf]
  %v71 = vld [vmem:[%s1 + $0xe0] sm:$0xf]
  %v72 = vld [vmem:[%s1 + $0xe4] sm:$0xf]
  %v73 = vld [vmem:[%s1 + $0xe8] sm:$0xf]
  %v74 = vld [vmem:[%s1 + $0xec] sm:$0xf]
  %v75 = vld [vmem:[%s1 + $0xf0] sm:$0xf]
  %v76 = vld [vmem:[%s1 + $0xf4] sm:$0xf]
  %v77 = vld [vmem:[%s1 + $0xf8] sm:$0xf]
  %v78 = vld [vmem:[%s1 + $0xfc] sm:$0xf]
  %v83 = vunpack.c.l.b16 %v11
  %v84 = vunpack.c.h.b16 %v11
  %v85 = vunpack.c.l.b16 %v12
  %v86 = vunpack.c.h.b16 %v12
  %v87 = vunpack.c.l.b16 %v13
  %v88 = vunpack.c.h.b16 %v13
  %v89 = vunpack.c.l.b16 %v14
  %v90 = vunpack.c.h.b16 %v14
  %v91 = vpack.c.b16 %v87, %v83
  %v92 = vpack.c.b16 %v88, %v84
  %v93 = vpack.c.b16 %v89, %v85
  %v94 = vpack.c.b16 %v90, %v86
  %v163 = vunpack.c.l.b16 %v15
  %v164 = vunpack.c.l.b16 %v16
  %v165 = vunpack.c.l.b16 %v17
  %v166 = vunpack.c.l.b16 %v18
  %v167 = vunpack.c.l.b16 %v19
  %v168 = vunpack.c.l.b16 %v20
  %v169 = vunpack.c.l.b16 %v21
  %v170 = vunpack.c.l.b16 %v22
  %v171 = vunpack.c.l.b16 %v23
  %v172 = vunpack.c.l.b16 %v24
  %v173 = vunpack.c.l.b16 %v25
  %v174 = vunpack.c.l.b16 %v26
  %v175 = vunpack.c.l.b16 %v27
  %v176 = vunpack.c.l.b16 %v28
  %v177 = vunpack.c.l.b16 %v29
  %v178 = vunpack.c.l.b16 %v30
  %v179 = vunpack.c.l.b16 %v31
  %v180 = vunpack.c.l.b16 %v32
  %v181 = vunpack.c.l.b16 %v33
  %v182 = vunpack.c.l.b16 %v34
  %v183 = vunpack.c.l.b16 %v35
  %v184 = vunpack.c.l.b16 %v36
  %v185 = vunpack.c.l.b16 %v37
  %v186 = vunpack.c.l.b16 %v38
  %v187 = vunpack.c.l.b16 %v39
  %v188 = vunpack.c.l.b16 %v40
  %v189 = vunpack.c.l.b16 %v41
  %v190 = vunpack.c.l.b16 %v42
  %v191 = vunpack.c.l.b16 %v43
  %v192 = vunpack.c.l.b16 %v44
  %v193 = vunpack.c.l.b16 %v45
  %v194 = vunpack.c.l.b16 %v46
  %v195 = vunpack.c.l.b16 %v47
  %v196 = vunpack.c.l.b16 %v48
  %v197 = vunpack.c.l.b16 %v49
  %v198 = vunpack.c.l.b16 %v50
  %v199 = vunpack.c.l.b16 %v51
  %v200 = vunpack.c.l.b16 %v52
  %v201 = vunpack.c.l.b16 %v53
  %v202 = vunpack.c.l.b16 %v54
  %v203 = vunpack.c.l.b16 %v55
  %v204 = vunpack.c.l.b16 %v56
  %v205 = vunpack.c.l.b16 %v57
  %v206 = vunpack.c.l.b16 %v58
  %v207 = vunpack.c.l.b16 %v59
  %v208 = vunpack.c.l.b16 %v60
  %v209 = vunpack.c.l.b16 %v61
  %v210 = vunpack.c.l.b16 %v62
  %v211 = vunpack.c.l.b16 %v63
  %v212 = vunpack.c.l.b16 %v64
  %v213 = vunpack.c.l.b16 %v65
  %v214 = vunpack.c.l.b16 %v66
  %v215 = vunpack.c.l.b16 %v67
  %v216 = vunpack.c.l.b16 %v68
  %v217 = vunpack.c.l.b16 %v69
  %v218 = vunpack.c.l.b16 %v70
  %v219 = vunpack.c.l.b16 %v71
  %v220 = vunpack.c.l.b16 %v72
  %v221 = vunpack.c.l.b16 %v73
  %v222 = vunpack.c.l.b16 %v74
  %v223 = vunpack.c.l.b16 %v75
  %v224 = vunpack.c.l.b16 %v76
  %v225 = vunpack.c.l.b16 %v77
  %v226 = vunpack.c.l.b16 %v78
  %v227 = vpack.c.b16 %v164, %v163
  %v228 = vpack.c.b16 %v166, %v165
  %v229 = vpack.c.b16 %v168, %v167
  %v230 = vpack.c.b16 %v170, %v169
  %v231 = vpack.c.b16 %v172, %v171
  %v232 = vpack.c.b16 %v174, %v173
  %v233 = vpack.c.b16 %v176, %v175
  %v234 = vpack.c.b16 %v178, %v177
  %v235 = vpack.c.b16 %v180, %v179
  %v236 = vpack.c.b16 %v182, %v181
  %v237 = vpack.c.b16 %v184, %v183
  %v238 = vpack.c.b16 %v186, %v185
  %v239 = vpack.c.b16 %v188, %v187
  %v240 = vpack.c.b16 %v190, %v189
  %v241 = vpack.c.b16 %v192, %v191
  %v242 = vpack.c.b16 %v194, %v193
  %v243 = vpack.c.b16 %v196, %v195
  %v244 = vpack.c.b16 %v198, %v197
  %v245 = vpack.c.b16 %v200, %v199
  %v246 = vpack.c.b16 %v202, %v201
  %v247 = vpack.c.b16 %v204, %v203
  %v248 = vpack.c.b16 %v206, %v205
  %v249 = vpack.c.b16 %v208, %v207
  %v250 = vpack.c.b16 %v210, %v209
  %v251 = vpack.c.b16 %v212, %v211
  %v252 = vpack.c.b16 %v214, %v213
  %v253 = vpack.c.b16 %v216, %v215
  %v254 = vpack.c.b16 %v218, %v217
  %v255 = vpack.c.b16 %v220, %v219
  %v256 = vpack.c.b16 %v222, %v221
  %v257 = vpack.c.b16 %v224, %v223
  %v258 = vpack.c.b16 %v226, %v225
  %291 = vmatpush.bf16.msra.mxu0 %v234
  %292 = vmatpush.bf16.msra.mxu0 %v233
  %293 = vmatpush.bf16.msra.mxu0 %v232
  %294 = vmatpush.bf16.msra.mxu0 %v231
  %295 = vmatpush.bf16.msra.mxu0 %v230
  %296 = vmatpush.bf16.msra.mxu0 %v229
  %297 = vmatpush.bf16.msra.mxu0 %v228
  %298 = vmatpush.bf16.msra.mxu0 %v227
  %299 = vmatmul.bf16.gmra.mxu0 %v91
  %v300 = vpop.f32.mrf.mxu0
  %v301 = vadd.f32 0.0, %v300
  %v302 = vpop.f32.mrf.mxu0
  %v303 = vadd.f32 0.0, %v302
  %304 = vdwg.mxu0
  %305 = vmatpush.bf16.msra.mxu0 %v242
  %306 = vmatpush.bf16.msra.mxu0 %v241
  %307 = vmatpush.bf16.msra.mxu0 %v240
  %308 = vmatpush.bf16.msra.mxu0 %v239
  %309 = vmatpush.bf16.msra.mxu0 %v238
  %310 = vmatpush.bf16.msra.mxu0 %v237
  %311 = vmatpush.bf16.msra.mxu0 %v236
  %312 = vmatpush.bf16.msra.mxu0 %v235
  %313 = vmatmul.bf16.gmra.mxu0 %v92
  %v314 = vpop.f32.mrf.mxu0
  %v315 = vadd.f32 %v301, %v314
  %v316 = vpop.f32.mrf.mxu0
  %v317 = vadd.f32 %v303, %v316
  %318 = vdwg.mxu0
  %319 = vmatpush.bf16.msra.mxu0 %v250
  %320 = vmatpush.bf16.msra.mxu0 %v249
  %321 = vmatpush.bf16.msra.mxu0 %v248
  %322 = vmatpush.bf16.msra.mxu0 %v247
  %323 = vmatpush.bf16.msra.mxu0 %v246
  %324 = vmatpush.bf16.msra.mxu0 %v245
  %325 = vmatpush.bf16.msra.mxu0 %v244
  %326 = vmatpush.bf16.msra.mxu0 %v243
  %327 = vmatmul.bf16.gmra.mxu0 %v93
  %v328 = vpop.f32.mrf.mxu0
  %v329 = vadd.f32 %v315, %v328
  %v330 = vpop.f32.mrf.mxu0
  %v331 = vadd.f32 %v317, %v330
  %332 = vdwg.mxu0
  %333 = vmatpush.bf16.msra.mxu0 %v258
  %334 = vmatpush.bf16.msra.mxu0 %v257
  %335 = vmatpush.bf16.msra.mxu0 %v256
  %336 = vmatpush.bf16.msra.mxu0 %v255
  %337 = vmatpush.bf16.msra.mxu0 %v254
  %338 = vmatpush.bf16.msra.mxu0 %v253
  %339 = vmatpush.bf16.msra.mxu0 %v252
  %340 = vmatpush.bf16.msra.mxu0 %v251
  %341 = vmatmul.bf16.gmra.mxu0 %v94
  %v342 = vpop.f32.mrf.mxu0
  %v343 = vadd.f32 %v329, %v342
  %v344 = vpop.f32.mrf.mxu0
  %v345 = vadd.f32 %v331, %v344
  %346 = vdwg.mxu0
  %347 = vst [vmem:[%s2] sm:$0xff] %v343
  %348 = vst [vmem:[%s2 + $0x8] sm:$0xff] %v345
  // Predicated region
  $region10: #{discriminator_forward.15} parent=0 // pred_check
    _
  $region11: #{discriminator_forward.15} parent=0 // pred_check_branch
    %350 = sbr.rel (0) target = $region13
  $region12: #{discriminator_forward.15} parent=0 // pred_region
    _
  $region13: #{discriminator_forward.15} parent=0 // pred_fallthru
    _
  // Predicated region
  $region14: #{discriminator_forward.15} parent=0 // pred_check
    _
  $region15: #{discriminator_forward.15} parent=0 // pred_check_branch
    %352 = sbr.rel (0) target = $region17
  $region16: #{discriminator_forward.15} parent=0 // pred_region
    _
  $region17: #{discriminator_forward.15} parent=0 // pred_fallthru
    _

</llo_original>
